<compile_context>
chip_gen: v6e
topology: v6e:2x2x1
jax: 0.10.0
libtpu: 0.0.40
codegen_flags: <defaults>
</compile_context>

<pallas_src>
import functools
import math

import jax
import jax.numpy as jnp
from jax import lax
from jax.experimental import pallas as pl
from jax.experimental.pallas import tpu as pltpu

_HIGHEST = lax.Precision.HIGHEST


# ---------------------------------------------------------------------------
# Fused kernel
# ---------------------------------------------------------------------------
def _latent_attn_kernel(
    xtT_ref,     # (B*L, C)    encoder input, sequence-major, batches stacked on sublanes
    wq_ref,      # (C, C)      encoder q weight (transposed: x @ W)
    wk_ref,      # (C, C)      encoder k weight
    wv_ref,      # (C, C)      encoder v weight
    bq_ref,      # (1, C)
    bk_ref,      # (1, C)
    bv_ref,      # (1, C)
    ws_ref,      # (nb, 1, C)  sin-basis weights (rows, broadcast over sublanes)
    wc_ref,      # (nb, 1, C)  cos-basis weights
    mask_ref,    # (1, C)      mask_token
    decw_ref,    # (C, C)      decoder_attn weight (transposed)
    decb_ref,    # (1, C)
    seg_ref,     # (head, C)   one-hot head-membership matrix
    segf_ref,    # (head*L, C) same, each head row repeated L times
    fc1_ref,     # (C, C)      fc conv1 weight (transposed)
    fc2_ref,     # (C, 3)      fc conv2 weight (transposed)
    xn_ref,      # out (B, C)  xn_pre column per batch (constant along N)
    pred_ref,    # out (B, 3)  fc-head output per batch (constant along N)
    *,
    B, L, head, num_basis, scale,
):
    f32 = jnp.float32
    xtT = xtT_ref[...]                       # (B*L, C)
    seg = seg_ref[...]                       # (head, C)
    segf = segf_ref[...]                     # (head*L, C)
    mask_row = mask_ref[...]                 # (1, C)

    def softmax_rows(s):
        s = s - jnp.max(s, axis=-1, keepdims=True)
        e = jnp.exp(s)
        return e * pl.reciprocal(jnp.sum(e, axis=-1, keepdims=True), approx=True)

    # ---- encoder 1x1 conv: both batches in one (B*L, C) @ (C, C) per q/k/v --
    qT = jnp.dot(xtT, wq_ref[...], preferred_element_type=f32) + bq_ref[...]
    kT = jnp.dot(xtT, wk_ref[...], preferred_element_type=f32) + bk_ref[...]
    vT = jnp.dot(xtT, wv_ref[...], preferred_element_type=f32) + bv_ref[...]

    # ---- multi-head self-attention: all heads of a batch in one matmul ------
    # Row h*L+l of the stacked query holds q[l, :] masked to head h's channels,
    # so one dot_general against k (contracting the channel/lane dim of both)
    # yields every head's (L, L) score block; one softmax covers all heads.
    attn_rows = []
    for b in range(B):                                   # B is tiny -> unrolled
        qb = qT[b * L:(b + 1) * L]                                    # (L, C)
        kb = kT[b * L:(b + 1) * L]
        vb = vT[b * L:(b + 1) * L]
        qs = jnp.concatenate([qb] * head, axis=0) * segf              # (head*L, C)
        s = lax.dot_general(qs, kb, (((1,), (1,)), ((), ())),
                            preferred_element_type=f32) * scale       # (head*L, L)
        p = softmax_rows(s)
        r = jnp.dot(p, vb, preferred_element_type=f32) * segf         # (head*L, C)
        o = r[0:L]                                                    # (L, C)
        for h in range(1, head):                        # assemble heads: 7 adds
            o = o + r[h * L:(h + 1) * L]
        attn_rows.append(o)
    attnT = jnp.concatenate(attn_rows, axis=0)                        # (B*L, C)

    # ---- spectral basis projection + residual (both batches at once) --------
    # sin(m*theta)/cos(m*theta) via angle-addition recurrence: 2 transcendentals.
    coef = math.pi / float(num_basis)
    theta = attnT * coef
    s1 = jnp.sin(theta)
    c1 = jnp.cos(theta)
    acc = xtT + wc_ref[0]          # m = 0: sin term is 0, cos term = weights[:, nb]
    sm, cm = s1, c1
    for m in range(1, num_basis):
        acc = acc + sm * ws_ref[m] + cm * wc_ref[m]
        if m + 1 < num_basis:
            sm, cm = sm * c1 + cm * s1, cm * c1 - sm * s1
    encT = acc                                                        # (B*L, C)

    # ---- decoder attention: rank-1 query (ratio == 1.0) ---------------------
    qdec = jnp.dot(mask_row, decw_ref[...],
                   preferred_element_type=f32) + decb_ref[...]        # (1, C)
    xn_rows = []
    for b in range(B):
        encb = encT[b * L:(b + 1) * L]                                # (L, C)
        prod = encb * qdec                                            # (L, C)
        sc = lax.dot_general(seg, prod, (((1,), (1,)), ((), ())),
                             preferred_element_type=f32) * scale      # (head, L)
        p = softmax_rows(sc)
        mix = jnp.dot(p, encb, preferred_element_type=f32)            # (head, C)
        dec_row = jnp.sum(mix * seg, axis=0, keepdims=True)           # (1, C)
        xn_rows.append(dec_row + mask_row)
    xn_mat = jnp.concatenate(xn_rows, axis=0)                         # (B, C)
    xn_ref[...] = xn_mat

    # ---- fc head: (Conv1d no-bias -> BN train-stats -> LeakyReLU(0.2)) x 2 --
    # xn_pre repeats along N, so BN stats over (B, N) reduce to stats over the
    # B rows.  Two-pass variance; HIGHEST precision (ill-conditioned fresh BN).
    eps = 1e-5

    def bn_leaky(h):
        mean = jnp.mean(h, axis=0, keepdims=True)
        d = h - mean
        var = jnp.mean(d * d, axis=0, keepdims=True)      # two-pass, stable
        z = d * lax.rsqrt(var + eps)
        return jnp.where(z >= 0, z, 0.2 * z)

    h1 = bn_leaky(jnp.dot(xn_mat, fc1_ref[...], precision=_HIGHEST,
                          preferred_element_type=f32))                # (B, C)
    pred_ref[...] = bn_leaky(jnp.dot(h1, fc2_ref[...], precision=_HIGHEST,
                                     preferred_element_type=f32))     # (B, 3)


# ---------------------------------------------------------------------------
# Wrapper
# ---------------------------------------------------------------------------
def _full_spec(shape):
    n = len(shape)
    return pl.BlockSpec(shape, lambda *_, n=n: (0,) * n)


def latent_attn_forward(params, xt, xn, *, head, num_basis, length):
    """Fused Pallas forward of LatentAttn (ratio=1.0, depth=1)."""
    f32 = jnp.float32
    B, C, L = xt.shape
    N = xn.shape[-1]                 # xn values are unused under ratio == 1.0
    assert C % head == 0 and L == length
    dh = C // head

    # One-time weight-layout plumbing (all activation reshapes live in-kernel).
    enc_w = params["enc_w"].astype(f32)                       # (3C, C)
    enc_b = params["enc_b"].astype(f32)                       # (3C,)
    wqT = jnp.transpose(enc_w[0:C, :])
    wkT = jnp.transpose(enc_w[C:2 * C, :])
    wvT = jnp.transpose(enc_w[2 * C:, :])
    bq = enc_b[0:C].reshape(1, C)
    bk = enc_b[C:2 * C].reshape(1, C)
    bv = enc_b[2 * C:].reshape(1, C)
    w = params["weights"].astype(f32)                         # (C, 2*nb)
    ws = jnp.transpose(w[:, :num_basis]).reshape(num_basis, 1, C)
    wc = jnp.transpose(w[:, num_basis:]).reshape(num_basis, 1, C)
    mask_row = params["mask_token"].reshape(1, C).astype(f32)
    dec_wT = jnp.transpose(params["dec_w"].astype(f32))       # (C, C)
    dec_b = params["dec_b"].reshape(1, C).astype(f32)
    seg = jnp.repeat(jnp.eye(head, dtype=f32), dh, axis=1)    # (head, C)
    segf = jnp.repeat(seg, L, axis=0)                         # (head*L, C)
    fc_w1T = jnp.transpose(params["fc_w1"].astype(f32))       # (C, C)
    fc_w2T = jnp.transpose(params["fc_w2"].astype(f32))       # (C, 3)

    # sequence-major, batches stacked along sublanes (L multiple of 8 -> aligned)
    xtT = jnp.transpose(xt.astype(f32), (0, 2, 1)).reshape(B * L, C)

    kernel = functools.partial(
        _latent_attn_kernel,
        B=B, L=L, head=head, num_basis=num_basis, scale=float(dh) ** 0.5,
    )

    xn_small, pred_small = pl.pallas_call(
        kernel,
        out_shape=(
            jax.ShapeDtypeStruct((B, C), f32),
            jax.ShapeDtypeStruct((B, 3), f32),
        ),
        grid=(1,),
        in_specs=[
            _full_spec((B * L, C)),
            _full_spec((C, C)), _full_spec((C, C)), _full_spec((C, C)),
            _full_spec((1, C)), _full_spec((1, C)), _full_spec((1, C)),
            _full_spec((num_basis, 1, C)), _full_spec((num_basis, 1, C)),
            _full_spec((1, C)),
            _full_spec((C, C)), _full_spec((1, C)),
            _full_spec((head, C)), _full_spec((head * L, C)),
            _full_spec((C, C)), _full_spec((C, 3)),
        ],
        out_specs=(
            _full_spec((B, C)),
            _full_spec((B, 3)),
        ),
        compiler_params=pltpu.CompilerParams(
            dimension_semantics=("arbitrary",),
        ),
    )(xtT, wqT, wkT, wvT, bq, bk, bv, ws, wc, mask_row, dec_wT, dec_b,
      seg, segf, fc_w1T, fc_w2T)

    # Outputs are constant along N under ratio == 1.0: broadcast with XLA.
    xn_pre = jnp.broadcast_to(xn_small[:, :, None], (B, C, N))
    pred = jnp.broadcast_to(pred_small[:, None, :], (B, N, 3))
    return xn_pre, pred


# ---------------------------------------------------------------------------
# Faithful plain-JAX (XLA) reference of the module, used for self-checks
# ---------------------------------------------------------------------------
def fc_head_reference(params, x):
    """Conv1D([C, C, 3]) head (Conv1d no-bias -> BN train -> LeakyReLU) x 2."""
    hp = _HIGHEST

    def conv_bn_act(h, wmat):
        h = jnp.einsum("oc,bcn->bon", wmat, h, precision=hp)
        mean = jnp.mean(h, axis=(0, 2), keepdims=True)
        var = jnp.mean((h - mean) ** 2, axis=(0, 2), keepdims=True)
        hn = (h - mean) / jnp.sqrt(var + 1e-5)
        return jnp.where(hn >= 0, hn, 0.2 * hn)

    g = conv_bn_act(conv_bn_act(x, params["fc_w1"]), params["fc_w2"])
    return jnp.transpose(g, (0, 2, 1))


def latent_attn_reference(params, xt, xn, *, head, num_basis, length):
    f32 = jnp.float32
    B, C, L = xt.shape
    N = xn.shape[-1]
    dh = C // head
    scale = float(dh) ** 0.5
    hp = _HIGHEST

    # _mask with ratio == 1.0
    x_masked = jnp.broadcast_to(params["mask_token"].astype(f32), (B, C, N))

    # encoder
    qkv = jnp.einsum("oc,bcl->bol", params["enc_w"], xt, precision=hp) \
        + params["enc_b"][None, :, None]
    qkv = qkv.reshape(B, 3, head, dh, L).transpose(1, 0, 2, 4, 3)   # (3,B,H,L,dh)
    q, k, v = qkv[0], qkv[1], qkv[2]
    s = jnp.einsum("bhld,bhsd->bhls", q, k, precision=hp) * scale
    p = jax.nn.softmax(s, axis=-1)
    att = jnp.einsum("bhls,bhsd->bhld", p, v, precision=hp)
    att = att.transpose(0, 1, 3, 2).reshape(B, C, L)
    modes = jnp.arange(num_basis, dtype=f32) / float(num_basis)
    phase = modes[None, None, None, :] * att[:, :, :, None] * math.pi
    basis = jnp.concatenate([jnp.sin(phase), jnp.cos(phase)], axis=-1)
    enc = jnp.einsum("bclm,cm->bcl", basis, params["weights"], precision=hp) + xt

    # decoder
    kv = enc.reshape(B, head, dh, length).transpose(0, 1, 3, 2)      # (B,H,L,dh)
    xq = jnp.einsum("oc,bcn->bon", params["dec_w"], x_masked, precision=hp) \
        + params["dec_b"][None, :, None]
    xq = xq.reshape(B, head, dh, N).transpose(0, 1, 3, 2)            # (B,H,N,dh)
    s2 = jnp.einsum("bhnd,bhsd->bhns", xq, kv, precision=hp) * scale
    p2 = jax.nn.softmax(s2, axis=-1)
    dec = jnp.einsum("bhns,bhsd->bhnd", p2, kv, precision=hp)
    xn_pre = dec.transpose(0, 1, 3, 2).reshape(B, C, N) + x_masked
    return xn_pre, fc_head_reference(params, xn_pre)


# ---------------------------------------------------------------------------
# Deterministic parameter initialization (synthetic; no checkpoint)
# ---------------------------------------------------------------------------
def init_params(key, width, num_basis):
    ks = jax.random.split(key, 8)
    return {
        "weights": (1.0 / width) * jax.random.uniform(
            ks[0], (width, 2 * num_basis), dtype=jnp.float32),
        "mask_token": 0.02 * jax.random.truncated_normal(
            ks[1], -2.0, 2.0, (1, width, 1), dtype=jnp.float32),
        "enc_w": 0.05 * jax.random.normal(ks[2], (3 * width, width), dtype=jnp.float32),
        "enc_b": 0.01 * jax.random.normal(ks[3], (3 * width,), dtype=jnp.float32),
        "dec_w": 0.05 * jax.random.normal(ks[4], (width, width), dtype=jnp.float32),
        "dec_b": 0.01 * jax.random.normal(ks[5], (width,), dtype=jnp.float32),
        "fc_w1": 0.05 * jax.random.normal(ks[6], (width, width), dtype=jnp.float32),
        "fc_w2": 0.05 * jax.random.normal(ks[7], (3, width), dtype=jnp.float32),
    }


if __name__ == "__main__":
    B, C, L, head, num_basis = 2, 32, 16, 8, 12   # width=32, length=16
    N = 16                                        # sequence length of xn

    key = jax.random.PRNGKey(0)
    kp, kx, kn = jax.random.split(key, 3)
    params = init_params(kp, C, num_basis)
    xt = jax.random.normal(kx, (B, C, L), dtype=jnp.float32)
    xn = jax.random.normal(kn, (B, C, N), dtype=jnp.float32)  # shape-only under ratio=1.0

    fwd = jax.jit(functools.partial(latent_attn_forward, head=head,
                                    num_basis=num_basis, length=L))
    xn_pre, pred = fwd(params, xt, xn)
    jax.block_until_ready((xn_pre, pred))

    assert xn_pre.shape == (B, C, N) and xn_pre.dtype == jnp.float32
    assert pred.shape == (B, N, 3) and pred.dtype == jnp.float32
    assert bool(jnp.all(jnp.isfinite(xn_pre))) and bool(jnp.all(jnp.isfinite(pred)))

    # cross-check against a faithful plain-JAX translation of the module
    xr, pr = latent_attn_reference(params, xt, xn, head=head,
                                   num_basis=num_basis, length=L)
    assert bool(jnp.allclose(xn_pre, xr, rtol=1e-2, atol=1e-2)), \
        float(jnp.max(jnp.abs(xn_pre - xr)))
    # The fresh double-BatchNorm over a batch of 2 amplifies tiny differences
    # in its input, so validate the fc head against the reference head applied
    # to the kernel's own xn_pre (identical BN inputs on both sides).
    pred_check = fc_head_reference(params, xn_pre)
    assert bool(jnp.max(jnp.abs(pred - pred_check)) < 2e-2), \
        float(jnp.max(jnp.abs(pred - pred_check)))
    assert bool(jnp.all(jnp.isfinite(pr)))

    print("KERNEL_OK")
</pallas_src>

<mosaic_0001>
module attributes {stable_mosaic.version = 11 : i64} {
  func.func @_latent_attn_kernel(%arg0: i32, %arg1: memref<32x32xf32, #tpu.memory_space<vmem>>, %arg2: memref<32x32xf32, #tpu.memory_space<vmem>>, %arg3: memref<32x32xf32, #tpu.memory_space<vmem>>, %arg4: memref<32x32xf32, #tpu.memory_space<vmem>>, %arg5: memref<1x32xf32, #tpu.memory_space<vmem>>, %arg6: memref<1x32xf32, #tpu.memory_space<vmem>>, %arg7: memref<1x32xf32, #tpu.memory_space<vmem>>, %arg8: memref<12x1x32xf32, #tpu.memory_space<vmem>>, %arg9: memref<12x1x32xf32, #tpu.memory_space<vmem>>, %arg10: memref<1x32xf32, #tpu.memory_space<vmem>>, %arg11: memref<32x32xf32, #tpu.memory_space<vmem>>, %arg12: memref<1x32xf32, #tpu.memory_space<vmem>>, %arg13: memref<8x32xf32, #tpu.memory_space<vmem>>, %arg14: memref<128x32xf32, #tpu.memory_space<vmem>>, %arg15: memref<32x32xf32, #tpu.memory_space<vmem>>, %arg16: memref<32x3xf32, #tpu.memory_space<vmem>>, %arg17: memref<2x32xf32, #tpu.memory_space<vmem>>, %arg18: memref<2x3xf32, #tpu.memory_space<vmem>>) attributes {dimension_semantics = [#tpu.dimension_semantics<arbitrary>], iteration_bounds = array<i64: 1>, scalar_prefetch = 0 : i64, scratch_operands = 0 : i64, tpu.core_type = #tpu.core_type<tc>, window_params = [{pipeline_mode = #tpu.pipeline_mode<synchronous>, transform_indices = @transform_0, window_bounds = array<i64: 32, 32>}, {pipeline_mode = #tpu.pipeline_mode<synchronous>, transform_indices = @transform_1, window_bounds = array<i64: 32, 32>}, {pipeline_mode = #tpu.pipeline_mode<synchronous>, transform_indices = @transform_2, window_bounds = array<i64: 32, 32>}, {pipeline_mode = #tpu.pipeline_mode<synchronous>, transform_indices = @transform_3, window_bounds = array<i64: 32, 32>}, {pipeline_mode = #tpu.pipeline_mode<synchronous>, transform_indices = @transform_4, window_bounds = array<i64: 1, 32>}, {pipeline_mode = #tpu.pipeline_mode<synchronous>, transform_indices = @transform_5, window_bounds = array<i64: 1, 32>}, {pipeline_mode = #tpu.pipeline_mode<synchronous>, transform_indices = @transform_6, window_bounds = array<i64: 1, 32>}, {pipeline_mode = #tpu.pipeline_mode<synchronous>, transform_indices = @transform_7, window_bounds = array<i64: 12, 1, 32>}, {pipeline_mode = #tpu.pipeline_mode<synchronous>, transform_indices = @transform_8, window_bounds = array<i64: 12, 1, 32>}, {pipeline_mode = #tpu.pipeline_mode<synchronous>, transform_indices = @transform_9, window_bounds = array<i64: 1, 32>}, {pipeline_mode = #tpu.pipeline_mode<synchronous>, transform_indices = @transform_10, window_bounds = array<i64: 32, 32>}, {pipeline_mode = #tpu.pipeline_mode<synchronous>, transform_indices = @transform_11, window_bounds = array<i64: 1, 32>}, {pipeline_mode = #tpu.pipeline_mode<synchronous>, transform_indices = @transform_12, window_bounds = array<i64: 8, 32>}, {pipeline_mode = #tpu.pipeline_mode<synchronous>, transform_indices = @transform_13, window_bounds = array<i64: 128, 32>}, {pipeline_mode = #tpu.pipeline_mode<synchronous>, transform_indices = @transform_14, window_bounds = array<i64: 32, 32>}, {pipeline_mode = #tpu.pipeline_mode<synchronous>, transform_indices = @transform_15, window_bounds = array<i64: 32, 3>}, {pipeline_mode = #tpu.pipeline_mode<synchronous>, transform_indices = @transform_16, window_bounds = array<i64: 2, 32>}, {pipeline_mode = #tpu.pipeline_mode<synchronous>, transform_indices = @transform_17, window_bounds = array<i64: 2, 3>}]} {
    %c0 = arith.constant 0 : index
    %c0_0 = arith.constant 0 : index
    %0 = vector.load %arg1[%c0, %c0_0] : memref<32x32xf32, #tpu.memory_space<vmem>>, vector<32x32xf32>
    %c0_1 = arith.constant 0 : index
    %c0_2 = arith.constant 0 : index
    %1 = vector.load %arg13[%c0_1, %c0_2] : memref<8x32xf32, #tpu.memory_space<vmem>>, vector<8x32xf32>
    %c0_3 = arith.constant 0 : index
    %c0_4 = arith.constant 0 : index
    %2 = vector.load %arg14[%c0_3, %c0_4] : memref<128x32xf32, #tpu.memory_space<vmem>>, vector<128x32xf32>
    %c0_5 = arith.constant 0 : index
    %c0_6 = arith.constant 0 : index
    %3 = vector.load %arg10[%c0_5, %c0_6] : memref<1x32xf32, #tpu.memory_space<vmem>>, vector<1x32xf32>
    %c0_7 = arith.constant 0 : index
    %c0_8 = arith.constant 0 : index
    %4 = vector.load %arg2[%c0_7, %c0_8] : memref<32x32xf32, #tpu.memory_space<vmem>>, vector<32x32xf32>
    %cst = arith.constant dense<0.000000e+00> : vector<32x32xf32>
    %5 = tpu.matmul %0, %4, %cst {dimension_numbers = #tpu.dot_dimension_numbers<[1], [0], [0], [1], [0, 0, 1, 1], [], []>} : vector<32x32xf32>, vector<32x32xf32>, vector<32x32xf32> -> vector<32x32xf32>
    %c0_9 = arith.constant 0 : index
    %c0_10 = arith.constant 0 : index
    %6 = vector.load %arg5[%c0_9, %c0_10] : memref<1x32xf32, #tpu.memory_space<vmem>>, vector<1x32xf32>
    %7 = vector.broadcast %6 : vector<1x32xf32> to vector<32x32xf32>
    %8 = arith.addf %5, %7 : vector<32x32xf32>
    %c0_11 = arith.constant 0 : index
    %c0_12 = arith.constant 0 : index
    %9 = vector.load %arg3[%c0_11, %c0_12] : memref<32x32xf32, #tpu.memory_space<vmem>>, vector<32x32xf32>
    %cst_13 = arith.constant dense<0.000000e+00> : vector<32x32xf32>
    %10 = tpu.matmul %0, %9, %cst_13 {dimension_numbers = #tpu.dot_dimension_numbers<[1], [0], [0], [1], [0, 0, 1, 1], [], []>} : vector<32x32xf32>, vector<32x32xf32>, vector<32x32xf32> -> vector<32x32xf32>
    %c0_14 = arith.constant 0 : index
    %c0_15 = arith.constant 0 : index
    %11 = vector.load %arg6[%c0_14, %c0_15] : memref<1x32xf32, #tpu.memory_space<vmem>>, vector<1x32xf32>
    %12 = vector.broadcast %11 : vector<1x32xf32> to vector<32x32xf32>
    %13 = arith.addf %10, %12 : vector<32x32xf32>
    %c0_16 = arith.constant 0 : index
    %c0_17 = arith.constant 0 : index
    %14 = vector.load %arg4[%c0_16, %c0_17] : memref<32x32xf32, #tpu.memory_space<vmem>>, vector<32x32xf32>
    %cst_18 = arith.constant dense<0.000000e+00> : vector<32x32xf32>
    %15 = tpu.matmul %0, %14, %cst_18 {dimension_numbers = #tpu.dot_dimension_numbers<[1], [0], [0], [1], [0, 0, 1, 1], [], []>} : vector<32x32xf32>, vector<32x32xf32>, vector<32x32xf32> -> vector<32x32xf32>
    %c0_19 = arith.constant 0 : index
    %c0_20 = arith.constant 0 : index
    %16 = vector.load %arg7[%c0_19, %c0_20] : memref<1x32xf32, #tpu.memory_space<vmem>>, vector<1x32xf32>
    %17 = vector.broadcast %16 : vector<1x32xf32> to vector<32x32xf32>
    %18 = arith.addf %15, %17 : vector<32x32xf32>
    %19 = vector.extract_strided_slice %8 {offsets = [0, 0], sizes = [16, 32], strides = [1, 1]} : vector<32x32xf32> to vector<16x32xf32>
    %20 = vector.extract_strided_slice %13 {offsets = [0, 0], sizes = [16, 32], strides = [1, 1]} : vector<32x32xf32> to vector<16x32xf32>
    %21 = vector.extract_strided_slice %18 {offsets = [0, 0], sizes = [16, 32], strides = [1, 1]} : vector<32x32xf32> to vector<16x32xf32>
    %22 = tpu.concatenate %19, %19, %19, %19, %19, %19, %19, %19 in 0 : vector<16x32xf32>, vector<16x32xf32>, vector<16x32xf32>, vector<16x32xf32>, vector<16x32xf32>, vector<16x32xf32>, vector<16x32xf32>, vector<16x32xf32> -> vector<128x32xf32>
    %23 = arith.mulf %22, %2 : vector<128x32xf32>
    %cst_21 = arith.constant dense<0.000000e+00> : vector<128x16xf32>
    %24 = tpu.matmul %23, %20, %cst_21 {dimension_numbers = #tpu.dot_dimension_numbers<[1], [1], [0], [0], [0, 0, 1, 0], [], []>} : vector<128x32xf32>, vector<16x32xf32>, vector<128x16xf32> -> vector<128x16xf32>
    %cst_22 = arith.constant 2.000000e+00 : f32
    %25 = vector.broadcast %cst_22 : f32 to vector<128x16xf32>
    %26 = arith.mulf %24, %25 : vector<128x16xf32>
    %cst_23 = arith.constant dense<0xFF800000> : vector<128xf32>
    %27 = vector.multi_reduction <maximumf>, %26, %cst_23 [1] : vector<128x16xf32> to vector<128xf32>
    %28 = vector.shape_cast %27 : vector<128xf32> to vector<128x1xf32>
    %29 = vector.broadcast %28 : vector<128x1xf32> to vector<128x16xf32>
    %30 = arith.subf %26, %29 : vector<128x16xf32>
    %31 = math.exp %30 : vector<128x16xf32>
    %cst_24 = arith.constant dense<0.000000e+00> : vector<128xf32>
    %32 = vector.multi_reduction <add>, %31, %cst_24 [1] : vector<128x16xf32> to vector<128xf32>
    %33 = vector.shape_cast %32 : vector<128xf32> to vector<128x1xf32>
    %34 = tpu.reciprocal %33 {approx = true} : vector<128x1xf32> -> vector<128x1xf32>
    %35 = vector.broadcast %34 : vector<128x1xf32> to vector<128x16xf32>
    %36 = arith.mulf %31, %35 : vector<128x16xf32>
    %cst_25 = arith.constant dense<0.000000e+00> : vector<128x32xf32>
    %37 = tpu.matmul %36, %21, %cst_25 {dimension_numbers = #tpu.dot_dimension_numbers<[1], [0], [0], [1], [0, 0, 1, 1], [], []>} : vector<128x16xf32>, vector<16x32xf32>, vector<128x32xf32> -> vector<128x32xf32>
    %38 = arith.mulf %37, %2 : vector<128x32xf32>
    %39 = vector.extract_strided_slice %38 {offsets = [0, 0], sizes = [16, 32], strides = [1, 1]} : vector<128x32xf32> to vector<16x32xf32>
    %40 = vector.extract_strided_slice %38 {offsets = [16, 0], sizes = [16, 32], strides = [1, 1]} : vector<128x32xf32> to vector<16x32xf32>
    %41 = arith.addf %39, %40 : vector<16x32xf32>
    %42 = vector.extract_strided_slice %38 {offsets = [32, 0], sizes = [16, 32], strides = [1, 1]} : vector<128x32xf32> to vector<16x32xf32>
    %43 = arith.addf %41, %42 : vector<16x32xf32>
    %44 = vector.extract_strided_slice %38 {offsets = [48, 0], sizes = [16, 32], strides = [1, 1]} : vector<128x32xf32> to vector<16x32xf32>
    %45 = arith.addf %43, %44 : vector<16x32xf32>
    %46 = vector.extract_strided_slice %38 {offsets = [64, 0], sizes = [16, 32], strides = [1, 1]} : vector<128x32xf32> to vector<16x32xf32>
    %47 = arith.addf %45, %46 : vector<16x32xf32>
    %48 = vector.extract_strided_slice %38 {offsets = [80, 0], sizes = [16, 32], strides = [1, 1]} : vector<128x32xf32> to vector<16x32xf32>
    %49 = arith.addf %47, %48 : vector<16x32xf32>
    %50 = vector.extract_strided_slice %38 {offsets = [96, 0], sizes = [16, 32], strides = [1, 1]} : vector<128x32xf32> to vector<16x32xf32>
    %51 = arith.addf %49, %50 : vector<16x32xf32>
    %52 = vector.extract_strided_slice %38 {offsets = [112, 0], sizes = [16, 32], strides = [1, 1]} : vector<128x32xf32> to vector<16x32xf32>
    %53 = arith.addf %51, %52 : vector<16x32xf32>
    %54 = vector.extract_strided_slice %8 {offsets = [16, 0], sizes = [16, 32], strides = [1, 1]} : vector<32x32xf32> to vector<16x32xf32>
    %55 = vector.extract_strided_slice %13 {offsets = [16, 0], sizes = [16, 32], strides = [1, 1]} : vector<32x32xf32> to vector<16x32xf32>
    %56 = vector.extract_strided_slice %18 {offsets = [16, 0], sizes = [16, 32], strides = [1, 1]} : vector<32x32xf32> to vector<16x32xf32>
    %57 = tpu.concatenate %54, %54, %54, %54, %54, %54, %54, %54 in 0 : vector<16x32xf32>, vector<16x32xf32>, vector<16x32xf32>, vector<16x32xf32>, vector<16x32xf32>, vector<16x32xf32>, vector<16x32xf32>, vector<16x32xf32> -> vector<128x32xf32>
    %58 = arith.mulf %57, %2 : vector<128x32xf32>
    %cst_26 = arith.constant dense<0.000000e+00> : vector<128x16xf32>
    %59 = tpu.matmul %58, %55, %cst_26 {dimension_numbers = #tpu.dot_dimension_numbers<[1], [1], [0], [0], [0, 0, 1, 0], [], []>} : vector<128x32xf32>, vector<16x32xf32>, vector<128x16xf32> -> vector<128x16xf32>
    %cst_27 = arith.constant 2.000000e+00 : f32
    %60 = vector.broadcast %cst_27 : f32 to vector<128x16xf32>
    %61 = arith.mulf %59, %60 : vector<128x16xf32>
    %cst_28 = arith.constant dense<0xFF800000> : vector<128xf32>
    %62 = vector.multi_reduction <maximumf>, %61, %cst_28 [1] : vector<128x16xf32> to vector<128xf32>
    %63 = vector.shape_cast %62 : vector<128xf32> to vector<128x1xf32>
    %64 = vector.broadcast %63 : vector<128x1xf32> to vector<128x16xf32>
    %65 = arith.subf %61, %64 : vector<128x16xf32>
    %66 = math.exp %65 : vector<128x16xf32>
    %cst_29 = arith.constant dense<0.000000e+00> : vector<128xf32>
    %67 = vector.multi_reduction <add>, %66, %cst_29 [1] : vector<128x16xf32> to vector<128xf32>
    %68 = vector.shape_cast %67 : vector<128xf32> to vector<128x1xf32>
    %69 = tpu.reciprocal %68 {approx = true} : vector<128x1xf32> -> vector<128x1xf32>
    %70 = vector.broadcast %69 : vector<128x1xf32> to vector<128x16xf32>
    %71 = arith.mulf %66, %70 : vector<128x16xf32>
    %cst_30 = arith.constant dense<0.000000e+00> : vector<128x32xf32>
    %72 = tpu.matmul %71, %56, %cst_30 {dimension_numbers = #tpu.dot_dimension_numbers<[1], [0], [0], [1], [0, 0, 1, 1], [], []>} : vector<128x16xf32>, vector<16x32xf32>, vector<128x32xf32> -> vector<128x32xf32>
    %73 = arith.mulf %72, %2 : vector<128x32xf32>
    %74 = vector.extract_strided_slice %73 {offsets = [0, 0], sizes = [16, 32], strides = [1, 1]} : vector<128x32xf32> to vector<16x32xf32>
    %75 = vector.extract_strided_slice %73 {offsets = [16, 0], sizes = [16, 32], strides = [1, 1]} : vector<128x32xf32> to vector<16x32xf32>
    %76 = arith.addf %74, %75 : vector<16x32xf32>
    %77 = vector.extract_strided_slice %73 {offsets = [32, 0], sizes = [16, 32], strides = [1, 1]} : vector<128x32xf32> to vector<16x32xf32>
    %78 = arith.addf %76, %77 : vector<16x32xf32>
    %79 = vector.extract_strided_slice %73 {offsets = [48, 0], sizes = [16, 32], strides = [1, 1]} : vector<128x32xf32> to vector<16x32xf32>
    %80 = arith.addf %78, %79 : vector<16x32xf32>
    %81 = vector.extract_strided_slice %73 {offsets = [64, 0], sizes = [16, 32], strides = [1, 1]} : vector<128x32xf32> to vector<16x32xf32>
    %82 = arith.addf %80, %81 : vector<16x32xf32>
    %83 = vector.extract_strided_slice %73 {offsets = [80, 0], sizes = [16, 32], strides = [1, 1]} : vector<128x32xf32> to vector<16x32xf32>
    %84 = arith.addf %82, %83 : vector<16x32xf32>
    %85 = vector.extract_strided_slice %73 {offsets = [96, 0], sizes = [16, 32], strides = [1, 1]} : vector<128x32xf32> to vector<16x32xf32>
    %86 = arith.addf %84, %85 : vector<16x32xf32>
    %87 = vector.extract_strided_slice %73 {offsets = [112, 0], sizes = [16, 32], strides = [1, 1]} : vector<128x32xf32> to vector<16x32xf32>
    %88 = arith.addf %86, %87 : vector<16x32xf32>
    %89 = tpu.concatenate %53, %88 in 0 : vector<16x32xf32>, vector<16x32xf32> -> vector<32x32xf32>
    %cst_31 = arith.constant 0.261799395 : f32
    %90 = vector.broadcast %cst_31 : f32 to vector<32x32xf32>
    %91 = arith.mulf %89, %90 : vector<32x32xf32>
    %92 = math.sin %91 : vector<32x32xf32>
    %93 = math.cos %91 : vector<32x32xf32>
    %c0_32 = arith.constant 0 : index
    %c0_33 = arith.constant 0 : index
    %c0_34 = arith.constant 0 : index
    %94 = vector.load %arg9[%c0_32, %c0_33, %c0_34] : memref<12x1x32xf32, #tpu.memory_space<vmem>>, vector<1x1x32xf32>
    %95 = vector.shape_cast %94 : vector<1x1x32xf32> to vector<1x32xf32>
    %96 = vector.broadcast %95 : vector<1x32xf32> to vector<32x32xf32>
    %97 = arith.addf %0, %96 : vector<32x32xf32>
    %c1 = arith.constant 1 : index
    %c0_35 = arith.constant 0 : index
    %c0_36 = arith.constant 0 : index
    %98 = vector.load %arg8[%c1, %c0_35, %c0_36] : memref<12x1x32xf32, #tpu.memory_space<vmem>>, vector<1x1x32xf32>
    %99 = vector.shape_cast %98 : vector<1x1x32xf32> to vector<1x32xf32>
    %100 = vector.broadcast %99 : vector<1x32xf32> to vector<32x32xf32>
    %101 = arith.mulf %92, %100 : vector<32x32xf32>
    %102 = arith.addf %97, %101 : vector<32x32xf32>
    %c1_37 = arith.constant 1 : index
    %c0_38 = arith.constant 0 : index
    %c0_39 = arith.constant 0 : index
    %103 = vector.load %arg9[%c1_37, %c0_38, %c0_39] : memref<12x1x32xf32, #tpu.memory_space<vmem>>, vector<1x1x32xf32>
    %104 = vector.shape_cast %103 : vector<1x1x32xf32> to vector<1x32xf32>
    %105 = vector.broadcast %104 : vector<1x32xf32> to vector<32x32xf32>
    %106 = arith.mulf %93, %105 : vector<32x32xf32>
    %107 = arith.addf %102, %106 : vector<32x32xf32>
    %108 = arith.mulf %92, %93 : vector<32x32xf32>
    %109 = arith.mulf %93, %92 : vector<32x32xf32>
    %110 = arith.addf %108, %109 : vector<32x32xf32>
    %111 = arith.mulf %93, %93 : vector<32x32xf32>
    %112 = arith.mulf %92, %92 : vector<32x32xf32>
    %113 = arith.subf %111, %112 : vector<32x32xf32>
    %c2 = arith.constant 2 : index
    %c0_40 = arith.constant 0 : index
    %c0_41 = arith.constant 0 : index
    %114 = vector.load %arg8[%c2, %c0_40, %c0_41] : memref<12x1x32xf32, #tpu.memory_space<vmem>>, vector<1x1x32xf32>
    %115 = vector.shape_cast %114 : vector<1x1x32xf32> to vector<1x32xf32>
    %116 = vector.broadcast %115 : vector<1x32xf32> to vector<32x32xf32>
    %117 = arith.mulf %110, %116 : vector<32x32xf32>
    %118 = arith.addf %107, %117 : vector<32x32xf32>
    %c2_42 = arith.constant 2 : index
    %c0_43 = arith.constant 0 : index
    %c0_44 = arith.constant 0 : index
    %119 = vector.load %arg9[%c2_42, %c0_43, %c0_44] : memref<12x1x32xf32, #tpu.memory_space<vmem>>, vector<1x1x32xf32>
    %120 = vector.shape_cast %119 : vector<1x1x32xf32> to vector<1x32xf32>
    %121 = vector.broadcast %120 : vector<1x32xf32> to vector<32x32xf32>
    %122 = arith.mulf %113, %121 : vector<32x32xf32>
    %123 = arith.addf %118, %122 : vector<32x32xf32>
    %124 = arith.mulf %110, %93 : vector<32x32xf32>
    %125 = arith.mulf %113, %92 : vector<32x32xf32>
    %126 = arith.addf %124, %125 : vector<32x32xf32>
    %127 = arith.mulf %113, %93 : vector<32x32xf32>
    %128 = arith.mulf %110, %92 : vector<32x32xf32>
    %129 = arith.subf %127, %128 : vector<32x32xf32>
    %c3 = arith.constant 3 : index
    %c0_45 = arith.constant 0 : index
    %c0_46 = arith.constant 0 : index
    %130 = vector.load %arg8[%c3, %c0_45, %c0_46] : memref<12x1x32xf32, #tpu.memory_space<vmem>>, vector<1x1x32xf32>
    %131 = vector.shape_cast %130 : vector<1x1x32xf32> to vector<1x32xf32>
    %132 = vector.broadcast %131 : vector<1x32xf32> to vector<32x32xf32>
    %133 = arith.mulf %126, %132 : vector<32x32xf32>
    %134 = arith.addf %123, %133 : vector<32x32xf32>
    %c3_47 = arith.constant 3 : index
    %c0_48 = arith.constant 0 : index
    %c0_49 = arith.constant 0 : index
    %135 = vector.load %arg9[%c3_47, %c0_48, %c0_49] : memref<12x1x32xf32, #tpu.memory_space<vmem>>, vector<1x1x32xf32>
    %136 = vector.shape_cast %135 : vector<1x1x32xf32> to vector<1x32xf32>
    %137 = vector.broadcast %136 : vector<1x32xf32> to vector<32x32xf32>
    %138 = arith.mulf %129, %137 : vector<32x32xf32>
    %139 = arith.addf %134, %138 : vector<32x32xf32>
    %140 = arith.mulf %126, %93 : vector<32x32xf32>
    %141 = arith.mulf %129, %92 : vector<32x32xf32>
    %142 = arith.addf %140, %141 : vector<32x32xf32>
    %143 = arith.mulf %129, %93 : vector<32x32xf32>
    %144 = arith.mulf %126, %92 : vector<32x32xf32>
    %145 = arith.subf %143, %144 : vector<32x32xf32>
    %c4 = arith.constant 4 : index
    %c0_50 = arith.constant 0 : index
    %c0_51 = arith.constant 0 : index
    %146 = vector.load %arg8[%c4, %c0_50, %c0_51] : memref<12x1x32xf32, #tpu.memory_space<vmem>>, vector<1x1x32xf32>
    %147 = vector.shape_cast %146 : vector<1x1x32xf32> to vector<1x32xf32>
    %148 = vector.broadcast %147 : vector<1x32xf32> to vector<32x32xf32>
    %149 = arith.mulf %142, %148 : vector<32x32xf32>
    %150 = arith.addf %139, %149 : vector<32x32xf32>
    %c4_52 = arith.constant 4 : index
    %c0_53 = arith.constant 0 : index
    %c0_54 = arith.constant 0 : index
    %151 = vector.load %arg9[%c4_52, %c0_53, %c0_54] : memref<12x1x32xf32, #tpu.memory_space<vmem>>, vector<1x1x32xf32>
    %152 = vector.shape_cast %151 : vector<1x1x32xf32> to vector<1x32xf32>
    %153 = vector.broadcast %152 : vector<1x32xf32> to vector<32x32xf32>
    %154 = arith.mulf %145, %153 : vector<32x32xf32>
    %155 = arith.addf %150, %154 : vector<32x32xf32>
    %156 = arith.mulf %142, %93 : vector<32x32xf32>
    %157 = arith.mulf %145, %92 : vector<32x32xf32>
    %158 = arith.addf %156, %157 : vector<32x32xf32>
    %159 = arith.mulf %145, %93 : vector<32x32xf32>
    %160 = arith.mulf %142, %92 : vector<32x32xf32>
    %161 = arith.subf %159, %160 : vector<32x32xf32>
    %c5 = arith.constant 5 : index
    %c0_55 = arith.constant 0 : index
    %c0_56 = arith.constant 0 : index
    %162 = vector.load %arg8[%c5, %c0_55, %c0_56] : memref<12x1x32xf32, #tpu.memory_space<vmem>>, vector<1x1x32xf32>
    %163 = vector.shape_cast %162 : vector<1x1x32xf32> to vector<1x32xf32>
    %164 = vector.broadcast %163 : vector<1x32xf32> to vector<32x32xf32>
    %165 = arith.mulf %158, %164 : vector<32x32xf32>
    %166 = arith.addf %155, %165 : vector<32x32xf32>
    %c5_57 = arith.constant 5 : index
    %c0_58 = arith.constant 0 : index
    %c0_59 = arith.constant 0 : index
    %167 = vector.load %arg9[%c5_57, %c0_58, %c0_59] : memref<12x1x32xf32, #tpu.memory_space<vmem>>, vector<1x1x32xf32>
    %168 = vector.shape_cast %167 : vector<1x1x32xf32> to vector<1x32xf32>
    %169 = vector.broadcast %168 : vector<1x32xf32> to vector<32x32xf32>
    %170 = arith.mulf %161, %169 : vector<32x32xf32>
    %171 = arith.addf %166, %170 : vector<32x32xf32>
    %172 = arith.mulf %158, %93 : vector<32x32xf32>
    %173 = arith.mulf %161, %92 : vector<32x32xf32>
    %174 = arith.addf %172, %173 : vector<32x32xf32>
    %175 = arith.mulf %161, %93 : vector<32x32xf32>
    %176 = arith.mulf %158, %92 : vector<32x32xf32>
    %177 = arith.subf %175, %176 : vector<32x32xf32>
    %c6 = arith.constant 6 : index
    %c0_60 = arith.constant 0 : index
    %c0_61 = arith.constant 0 : index
    %178 = vector.load %arg8[%c6, %c0_60, %c0_61] : memref<12x1x32xf32, #tpu.memory_space<vmem>>, vector<1x1x32xf32>
    %179 = vector.shape_cast %178 : vector<1x1x32xf32> to vector<1x32xf32>
    %180 = vector.broadcast %179 : vector<1x32xf32> to vector<32x32xf32>
    %181 = arith.mulf %174, %180 : vector<32x32xf32>
    %182 = arith.addf %171, %181 : vector<32x32xf32>
    %c6_62 = arith.constant 6 : index
    %c0_63 = arith.constant 0 : index
    %c0_64 = arith.constant 0 : index
    %183 = vector.load %arg9[%c6_62, %c0_63, %c0_64] : memref<12x1x32xf32, #tpu.memory_space<vmem>>, vector<1x1x32xf32>
    %184 = vector.shape_cast %183 : vector<1x1x32xf32> to vector<1x32xf32>
    %185 = vector.broadcast %184 : vector<1x32xf32> to vector<32x32xf32>
    %186 = arith.mulf %177, %185 : vector<32x32xf32>
    %187 = arith.addf %182, %186 : vector<32x32xf32>
    %188 = arith.mulf %174, %93 : vector<32x32xf32>
    %189 = arith.mulf %177, %92 : vector<32x32xf32>
    %190 = arith.addf %188, %189 : vector<32x32xf32>
    %191 = arith.mulf %177, %93 : vector<32x32xf32>
    %192 = arith.mulf %174, %92 : vector<32x32xf32>
    %193 = arith.subf %191, %192 : vector<32x32xf32>
    %c7 = arith.constant 7 : index
    %c0_65 = arith.constant 0 : index
    %c0_66 = arith.constant 0 : index
    %194 = vector.load %arg8[%c7, %c0_65, %c0_66] : memref<12x1x32xf32, #tpu.memory_space<vmem>>, vector<1x1x32xf32>
    %195 = vector.shape_cast %194 : vector<1x1x32xf32> to vector<1x32xf32>
    %196 = vector.broadcast %195 : vector<1x32xf32> to vector<32x32xf32>
    %197 = arith.mulf %190, %196 : vector<32x32xf32>
    %198 = arith.addf %187, %197 : vector<32x32xf32>
    %c7_67 = arith.constant 7 : index
    %c0_68 = arith.constant 0 : index
    %c0_69 = arith.constant 0 : index
    %199 = vector.load %arg9[%c7_67, %c0_68, %c0_69] : memref<12x1x32xf32, #tpu.memory_space<vmem>>, vector<1x1x32xf32>
    %200 = vector.shape_cast %199 : vector<1x1x32xf32> to vector<1x32xf32>
    %201 = vector.broadcast %200 : vector<1x32xf32> to vector<32x32xf32>
    %202 = arith.mulf %193, %201 : vector<32x32xf32>
    %203 = arith.addf %198, %202 : vector<32x32xf32>
    %204 = arith.mulf %190, %93 : vector<32x32xf32>
    %205 = arith.mulf %193, %92 : vector<32x32xf32>
    %206 = arith.addf %204, %205 : vector<32x32xf32>
    %207 = arith.mulf %193, %93 : vector<32x32xf32>
    %208 = arith.mulf %190, %92 : vector<32x32xf32>
    %209 = arith.subf %207, %208 : vector<32x32xf32>
    %c8 = arith.constant 8 : index
    %c0_70 = arith.constant 0 : index
    %c0_71 = arith.constant 0 : index
    %210 = vector.load %arg8[%c8, %c0_70, %c0_71] : memref<12x1x32xf32, #tpu.memory_space<vmem>>, vector<1x1x32xf32>
    %211 = vector.shape_cast %210 : vector<1x1x32xf32> to vector<1x32xf32>
    %212 = vector.broadcast %211 : vector<1x32xf32> to vector<32x32xf32>
    %213 = arith.mulf %206, %212 : vector<32x32xf32>
    %214 = arith.addf %203, %213 : vector<32x32xf32>
    %c8_72 = arith.constant 8 : index
    %c0_73 = arith.constant 0 : index
    %c0_74 = arith.constant 0 : index
    %215 = vector.load %arg9[%c8_72, %c0_73, %c0_74] : memref<12x1x32xf32, #tpu.memory_space<vmem>>, vector<1x1x32xf32>
    %216 = vector.shape_cast %215 : vector<1x1x32xf32> to vector<1x32xf32>
    %217 = vector.broadcast %216 : vector<1x32xf32> to vector<32x32xf32>
    %218 = arith.mulf %209, %217 : vector<32x32xf32>
    %219 = arith.addf %214, %218 : vector<32x32xf32>
    %220 = arith.mulf %206, %93 : vector<32x32xf32>
    %221 = arith.mulf %209, %92 : vector<32x32xf32>
    %222 = arith.addf %220, %221 : vector<32x32xf32>
    %223 = arith.mulf %209, %93 : vector<32x32xf32>
    %224 = arith.mulf %206, %92 : vector<32x32xf32>
    %225 = arith.subf %223, %224 : vector<32x32xf32>
    %c9 = arith.constant 9 : index
    %c0_75 = arith.constant 0 : index
    %c0_76 = arith.constant 0 : index
    %226 = vector.load %arg8[%c9, %c0_75, %c0_76] : memref<12x1x32xf32, #tpu.memory_space<vmem>>, vector<1x1x32xf32>
    %227 = vector.shape_cast %226 : vector<1x1x32xf32> to vector<1x32xf32>
    %228 = vector.broadcast %227 : vector<1x32xf32> to vector<32x32xf32>
    %229 = arith.mulf %222, %228 : vector<32x32xf32>
    %230 = arith.addf %219, %229 : vector<32x32xf32>
    %c9_77 = arith.constant 9 : index
    %c0_78 = arith.constant 0 : index
    %c0_79 = arith.constant 0 : index
    %231 = vector.load %arg9[%c9_77, %c0_78, %c0_79] : memref<12x1x32xf32, #tpu.memory_space<vmem>>, vector<1x1x32xf32>
    %232 = vector.shape_cast %231 : vector<1x1x32xf32> to vector<1x32xf32>
    %233 = vector.broadcast %232 : vector<1x32xf32> to vector<32x32xf32>
    %234 = arith.mulf %225, %233 : vector<32x32xf32>
    %235 = arith.addf %230, %234 : vector<32x32xf32>
    %236 = arith.mulf %222, %93 : vector<32x32xf32>
    %237 = arith.mulf %225, %92 : vector<32x32xf32>
    %238 = arith.addf %236, %237 : vector<32x32xf32>
    %239 = arith.mulf %225, %93 : vector<32x32xf32>
    %240 = arith.mulf %222, %92 : vector<32x32xf32>
    %241 = arith.subf %239, %240 : vector<32x32xf32>
    %c10 = arith.constant 10 : index
    %c0_80 = arith.constant 0 : index
    %c0_81 = arith.constant 0 : index
    %242 = vector.load %arg8[%c10, %c0_80, %c0_81] : memref<12x1x32xf32, #tpu.memory_space<vmem>>, vector<1x1x32xf32>
    %243 = vector.shape_cast %242 : vector<1x1x32xf32> to vector<1x32xf32>
    %244 = vector.broadcast %243 : vector<1x32xf32> to vector<32x32xf32>
    %245 = arith.mulf %238, %244 : vector<32x32xf32>
    %246 = arith.addf %235, %245 : vector<32x32xf32>
    %c10_82 = arith.constant 10 : index
    %c0_83 = arith.constant 0 : index
    %c0_84 = arith.constant 0 : index
    %247 = vector.load %arg9[%c10_82, %c0_83, %c0_84] : memref<12x1x32xf32, #tpu.memory_space<vmem>>, vector<1x1x32xf32>
    %248 = vector.shape_cast %247 : vector<1x1x32xf32> to vector<1x32xf32>
    %249 = vector.broadcast %248 : vector<1x32xf32> to vector<32x32xf32>
    %250 = arith.mulf %241, %249 : vector<32x32xf32>
    %251 = arith.addf %246, %250 : vector<32x32xf32>
    %252 = arith.mulf %238, %93 : vector<32x32xf32>
    %253 = arith.mulf %241, %92 : vector<32x32xf32>
    %254 = arith.addf %252, %253 : vector<32x32xf32>
    %255 = arith.mulf %241, %93 : vector<32x32xf32>
    %256 = arith.mulf %238, %92 : vector<32x32xf32>
    %257 = arith.subf %255, %256 : vector<32x32xf32>
    %c11 = arith.constant 11 : index
    %c0_85 = arith.constant 0 : index
    %c0_86 = arith.constant 0 : index
    %258 = vector.load %arg8[%c11, %c0_85, %c0_86] : memref<12x1x32xf32, #tpu.memory_space<vmem>>, vector<1x1x32xf32>
    %259 = vector.shape_cast %258 : vector<1x1x32xf32> to vector<1x32xf32>
    %260 = vector.broadcast %259 : vector<1x32xf32> to vector<32x32xf32>
    %261 = arith.mulf %254, %260 : vector<32x32xf32>
    %262 = arith.addf %251, %261 : vector<32x32xf32>
    %c11_87 = arith.constant 11 : index
    %c0_88 = arith.constant 0 : index
    %c0_89 = arith.constant 0 : index
    %263 = vector.load %arg9[%c11_87, %c0_88, %c0_89] : memref<12x1x32xf32, #tpu.memory_space<vmem>>, vector<1x1x32xf32>
    %264 = vector.shape_cast %263 : vector<1x1x32xf32> to vector<1x32xf32>
    %265 = vector.broadcast %264 : vector<1x32xf32> to vector<32x32xf32>
    %266 = arith.mulf %257, %265 : vector<32x32xf32>
    %267 = arith.addf %262, %266 : vector<32x32xf32>
    %c0_90 = arith.constant 0 : index
    %c0_91 = arith.constant 0 : index
    %268 = vector.load %arg11[%c0_90, %c0_91] : memref<32x32xf32, #tpu.memory_space<vmem>>, vector<32x32xf32>
    %cst_92 = arith.constant dense<0.000000e+00> : vector<1x32xf32>
    %269 = tpu.matmul %3, %268, %cst_92 {dimension_numbers = #tpu.dot_dimension_numbers<[1], [0], [0], [1], [0, 0, 1, 1], [], []>} : vector<1x32xf32>, vector<32x32xf32>, vector<1x32xf32> -> vector<1x32xf32>
    %c0_93 = arith.constant 0 : index
    %c0_94 = arith.constant 0 : index
    %270 = vector.load %arg12[%c0_93, %c0_94] : memref<1x32xf32, #tpu.memory_space<vmem>>, vector<1x32xf32>
    %271 = arith.addf %269, %270 : vector<1x32xf32>
    %272 = vector.extract_strided_slice %267 {offsets = [0, 0], sizes = [16, 32], strides = [1, 1]} : vector<32x32xf32> to vector<16x32xf32>
    %273 = vector.broadcast %271 : vector<1x32xf32> to vector<16x32xf32>
    %274 = arith.mulf %272, %273 : vector<16x32xf32>
    %cst_95 = arith.constant dense<0.000000e+00> : vector<8x16xf32>
    %275 = tpu.matmul %1, %274, %cst_95 {dimension_numbers = #tpu.dot_dimension_numbers<[1], [1], [0], [0], [0, 0, 1, 0], [], []>} : vector<8x32xf32>, vector<16x32xf32>, vector<8x16xf32> -> vector<8x16xf32>
    %cst_96 = arith.constant 2.000000e+00 : f32
    %276 = vector.broadcast %cst_96 : f32 to vector<8x16xf32>
    %277 = arith.mulf %275, %276 : vector<8x16xf32>
    %cst_97 = arith.constant dense<0xFF800000> : vector<8xf32>
    %278 = vector.multi_reduction <maximumf>, %277, %cst_97 [1] : vector<8x16xf32> to vector<8xf32>
    %279 = vector.shape_cast %278 : vector<8xf32> to vector<8x1xf32>
    %280 = vector.broadcast %279 : vector<8x1xf32> to vector<8x16xf32>
    %281 = arith.subf %277, %280 : vector<8x16xf32>
    %282 = math.exp %281 : vector<8x16xf32>
    %cst_98 = arith.constant dense<0.000000e+00> : vector<8xf32>
    %283 = vector.multi_reduction <add>, %282, %cst_98 [1] : vector<8x16xf32> to vector<8xf32>
    %284 = vector.shape_cast %283 : vector<8xf32> to vector<8x1xf32>
    %285 = tpu.reciprocal %284 {approx = true} : vector<8x1xf32> -> vector<8x1xf32>
    %286 = vector.broadcast %285 : vector<8x1xf32> to vector<8x16xf32>
    %287 = arith.mulf %282, %286 : vector<8x16xf32>
    %cst_99 = arith.constant dense<0.000000e+00> : vector<8x32xf32>
    %288 = tpu.matmul %287, %272, %cst_99 {dimension_numbers = #tpu.dot_dimension_numbers<[1], [0], [0], [1], [0, 0, 1, 1], [], []>} : vector<8x16xf32>, vector<16x32xf32>, vector<8x32xf32> -> vector<8x32xf32>
    %289 = arith.mulf %288, %1 : vector<8x32xf32>
    %cst_100 = arith.constant dense<0.000000e+00> : vector<32xf32>
    %290 = vector.multi_reduction <add>, %289, %cst_100 [0] : vector<8x32xf32> to vector<32xf32>
    %291 = vector.shape_cast %290 : vector<32xf32> to vector<1x32xf32>
    %292 = arith.addf %291, %3 : vector<1x32xf32>
    %293 = vector.extract_strided_slice %267 {offsets = [16, 0], sizes = [16, 32], strides = [1, 1]} : vector<32x32xf32> to vector<16x32xf32>
    %294 = vector.broadcast %271 : vector<1x32xf32> to vector<16x32xf32>
    %295 = arith.mulf %293, %294 : vector<16x32xf32>
    %cst_101 = arith.constant dense<0.000000e+00> : vector<8x16xf32>
    %296 = tpu.matmul %1, %295, %cst_101 {dimension_numbers = #tpu.dot_dimension_numbers<[1], [1], [0], [0], [0, 0, 1, 0], [], []>} : vector<8x32xf32>, vector<16x32xf32>, vector<8x16xf32> -> vector<8x16xf32>
    %cst_102 = arith.constant 2.000000e+00 : f32
    %297 = vector.broadcast %cst_102 : f32 to vector<8x16xf32>
    %298 = arith.mulf %296, %297 : vector<8x16xf32>
    %cst_103 = arith.constant dense<0xFF800000> : vector<8xf32>
    %299 = vector.multi_reduction <maximumf>, %298, %cst_103 [1] : vector<8x16xf32> to vector<8xf32>
    %300 = vector.shape_cast %299 : vector<8xf32> to vector<8x1xf32>
    %301 = vector.broadcast %300 : vector<8x1xf32> to vector<8x16xf32>
    %302 = arith.subf %298, %301 : vector<8x16xf32>
    %303 = math.exp %302 : vector<8x16xf32>
    %cst_104 = arith.constant dense<0.000000e+00> : vector<8xf32>
    %304 = vector.multi_reduction <add>, %303, %cst_104 [1] : vector<8x16xf32> to vector<8xf32>
    %305 = vector.shape_cast %304 : vector<8xf32> to vector<8x1xf32>
    %306 = tpu.reciprocal %305 {approx = true} : vector<8x1xf32> -> vector<8x1xf32>
    %307 = vector.broadcast %306 : vector<8x1xf32> to vector<8x16xf32>
    %308 = arith.mulf %303, %307 : vector<8x16xf32>
    %cst_105 = arith.constant dense<0.000000e+00> : vector<8x32xf32>
    %309 = tpu.matmul %308, %293, %cst_105 {dimension_numbers = #tpu.dot_dimension_numbers<[1], [0], [0], [1], [0, 0, 1, 1], [], []>} : vector<8x16xf32>, vector<16x32xf32>, vector<8x32xf32> -> vector<8x32xf32>
    %310 = arith.mulf %309, %1 : vector<8x32xf32>
    %cst_106 = arith.constant dense<0.000000e+00> : vector<32xf32>
    %311 = vector.multi_reduction <add>, %310, %cst_106 [0] : vector<8x32xf32> to vector<32xf32>
    %312 = vector.shape_cast %311 : vector<32xf32> to vector<1x32xf32>
    %313 = arith.addf %312, %3 : vector<1x32xf32>
    %314 = tpu.concatenate %292, %313 in 0 : vector<1x32xf32>, vector<1x32xf32> -> vector<2x32xf32>
    %c0_107 = arith.constant 0 : index
    %c0_108 = arith.constant 0 : index
    %315 = vector.load %arg17[%c0_107, %c0_108] : memref<2x32xf32, #tpu.memory_space<vmem>>, vector<2x32xf32>
    tpu.vector_store %arg17[%c0_107, %c0_108], %314 {strides = array<i32>} : memref<2x32xf32, #tpu.memory_space<vmem>>, vector<2x32xf32>,
    %c0_109 = arith.constant 0 : index
    %c0_110 = arith.constant 0 : index
    %316 = vector.load %arg15[%c0_109, %c0_110] : memref<32x32xf32, #tpu.memory_space<vmem>>, vector<32x32xf32>
    %cst_111 = arith.constant dense<0.000000e+00> : vector<2x32xf32>
    %317 = tpu.matmul %314, %316, %cst_111 {dimension_numbers = #tpu.dot_dimension_numbers<[1], [0], [0], [1], [0, 0, 1, 1], [], []>, precision = #tpu.contract_precision<fp32>} : vector<2x32xf32>, vector<32x32xf32>, vector<2x32xf32> -> vector<2x32xf32>
    %cst_112 = arith.constant dense<0.000000e+00> : vector<32xf32>
    %318 = vector.multi_reduction <add>, %317, %cst_112 [0] : vector<2x32xf32> to vector<32xf32>
    %319 = vector.shape_cast %318 : vector<32xf32> to vector<1x32xf32>
    %cst_113 = arith.constant 2.000000e+00 : f32
    %320 = vector.broadcast %cst_113 : f32 to vector<1x32xf32>
    %321 = arith.divf %319, %320 : vector<1x32xf32>
    %322 = vector.broadcast %321 : vector<1x32xf32> to vector<2x32xf32>
    %323 = arith.subf %317, %322 : vector<2x32xf32>
    %324 = arith.mulf %323, %323 : vector<2x32xf32>
    %cst_114 = arith.constant dense<0.000000e+00> : vector<32xf32>
    %325 = vector.multi_reduction <add>, %324, %cst_114 [0] : vector<2x32xf32> to vector<32xf32>
    %326 = vector.shape_cast %325 : vector<32xf32> to vector<1x32xf32>
    %cst_115 = arith.constant 2.000000e+00 : f32
    %327 = vector.broadcast %cst_115 : f32 to vector<1x32xf32>
    %328 = arith.divf %326, %327 : vector<1x32xf32>
    %cst_116 = arith.constant 9.99999974E-6 : f32
    %329 = vector.broadcast %cst_116 : f32 to vector<1x32xf32>
    %330 = arith.addf %328, %329 : vector<1x32xf32>
    %331 = math.rsqrt %330 : vector<1x32xf32>
    %332 = vector.broadcast %331 : vector<1x32xf32> to vector<2x32xf32>
    %333 = arith.mulf %323, %332 : vector<2x32xf32>
    %cst_117 = arith.constant 0.000000e+00 : f32
    %334 = vector.broadcast %cst_117 : f32 to vector<2x32xf32>
    %335 = arith.cmpf oge, %333, %334 : vector<2x32xf32>
    %cst_118 = arith.constant 2.000000e-01 : f32
    %336 = vector.broadcast %cst_118 : f32 to vector<2x32xf32>
    %337 = arith.mulf %336, %333 : vector<2x32xf32>
    %338 = arith.select %335, %333, %337 : vector<2x32xi1>, vector<2x32xf32>
    %c0_119 = arith.constant 0 : index
    %c0_120 = arith.constant 0 : index
    %339 = vector.load %arg16[%c0_119, %c0_120] : memref<32x3xf32, #tpu.memory_space<vmem>>, vector<32x3xf32>
    %cst_121 = arith.constant dense<0.000000e+00> : vector<2x3xf32>
    %340 = tpu.matmul %338, %339, %cst_121 {dimension_numbers = #tpu.dot_dimension_numbers<[1], [0], [0], [1], [0, 0, 1, 1], [], []>, precision = #tpu.contract_precision<fp32>} : vector<2x32xf32>, vector<32x3xf32>, vector<2x3xf32> -> vector<2x3xf32>
    %cst_122 = arith.constant dense<0.000000e+00> : vector<3xf32>
    %341 = vector.multi_reduction <add>, %340, %cst_122 [0] : vector<2x3xf32> to vector<3xf32>
    %342 = vector.shape_cast %341 : vector<3xf32> to vector<1x3xf32>
    %cst_123 = arith.constant 2.000000e+00 : f32
    %343 = vector.broadcast %cst_123 : f32 to vector<1x3xf32>
    %344 = arith.divf %342, %343 : vector<1x3xf32>
    %345 = vector.broadcast %344 : vector<1x3xf32> to vector<2x3xf32>
    %346 = arith.subf %340, %345 : vector<2x3xf32>
    %347 = arith.mulf %346, %346 : vector<2x3xf32>
    %cst_124 = arith.constant dense<0.000000e+00> : vector<3xf32>
    %348 = vector.multi_reduction <add>, %347, %cst_124 [0] : vector<2x3xf32> to vector<3xf32>
    %349 = vector.shape_cast %348 : vector<3xf32> to vector<1x3xf32>
    %cst_125 = arith.constant 2.000000e+00 : f32
    %350 = vector.broadcast %cst_125 : f32 to vector<1x3xf32>
    %351 = arith.divf %349, %350 : vector<1x3xf32>
    %cst_126 = arith.constant 9.99999974E-6 : f32
    %352 = vector.broadcast %cst_126 : f32 to vector<1x3xf32>
    %353 = arith.addf %351, %352 : vector<1x3xf32>
    %354 = math.rsqrt %353 : vector<1x3xf32>
    %355 = vector.broadcast %354 : vector<1x3xf32> to vector<2x3xf32>
    %356 = arith.mulf %346, %355 : vector<2x3xf32>
    %cst_127 = arith.constant 0.000000e+00 : f32
    %357 = vector.broadcast %cst_127 : f32 to vector<2x3xf32>
    %358 = arith.cmpf oge, %356, %357 : vector<2x3xf32>
    %cst_128 = arith.constant 2.000000e-01 : f32
    %359 = vector.broadcast %cst_128 : f32 to vector<2x3xf32>
    %360 = arith.mulf %359, %356 : vector<2x3xf32>
    %361 = arith.select %358, %356, %360 : vector<2x3xi1>, vector<2x3xf32>
    %c0_129 = arith.constant 0 : index
    %c0_130 = arith.constant 0 : index
    %362 = vector.load %arg18[%c0_129, %c0_130] : memref<2x3xf32, #tpu.memory_space<vmem>>, vector<2x3xf32>
    tpu.vector_store %arg18[%c0_129, %c0_130], %361 {strides = array<i32>} : memref<2x3xf32, #tpu.memory_space<vmem>>, vector<2x3xf32>,
    return
  }
  func.func @transform_0(%arg0: i32) -> (i32, i32) {
    %c0_i32 = arith.constant 0 : i32
    %c0_i32_0 = arith.constant 0 : i32
    %c0_i32_1 = arith.constant 0 : i32
    return %c0_i32, %c0_i32_0 : i32, i32
  }
  func.func @transform_1(%arg0: i32) -> (i32, i32) {
    %c0_i32 = arith.constant 0 : i32
    %c0_i32_0 = arith.constant 0 : i32
    %c0_i32_1 = arith.constant 0 : i32
    return %c0_i32, %c0_i32_0 : i32, i32
  }
  func.func @transform_2(%arg0: i32) -> (i32, i32) {
    %c0_i32 = arith.constant 0 : i32
    %c0_i32_0 = arith.constant 0 : i32
    %c0_i32_1 = arith.constant 0 : i32
    return %c0_i32, %c0_i32_0 : i32, i32
  }
  func.func @transform_3(%arg0: i32) -> (i32, i32) {
    %c0_i32 = arith.constant 0 : i32
    %c0_i32_0 = arith.constant 0 : i32
    %c0_i32_1 = arith.constant 0 : i32
    return %c0_i32, %c0_i32_0 : i32, i32
  }
  func.func @transform_4(%arg0: i32) -> (i32, i32) {
    %c0_i32 = arith.constant 0 : i32
    %c0_i32_0 = arith.constant 0 : i32
    %c0_i32_1 = arith.constant 0 : i32
    return %c0_i32, %c0_i32_0 : i32, i32
  }
  func.func @transform_5(%arg0: i32) -> (i32, i32) {
    %c0_i32 = arith.constant 0 : i32
    %c0_i32_0 = arith.constant 0 : i32
    %c0_i32_1 = arith.constant 0 : i32
    return %c0_i32, %c0_i32_0 : i32, i32
  }
  func.func @transform_6(%arg0: i32) -> (i32, i32) {
    %c0_i32 = arith.constant 0 : i32
    %c0_i32_0 = arith.constant 0 : i32
    %c0_i32_1 = arith.constant 0 : i32
    return %c0_i32, %c0_i32_0 : i32, i32
  }
  func.func @transform_7(%arg0: i32) -> (i32, i32, i32) {
    %c0_i32 = arith.constant 0 : i32
    %c0_i32_0 = arith.constant 0 : i32
    %c0_i32_1 = arith.constant 0 : i32
    %c0_i32_2 = arith.constant 0 : i32
    return %c0_i32, %c0_i32_0, %c0_i32_1 : i32, i32, i32
  }
  func.func @transform_8(%arg0: i32) -> (i32, i32, i32) {
    %c0_i32 = arith.constant 0 : i32
    %c0_i32_0 = arith.constant 0 : i32
    %c0_i32_1 = arith.constant 0 : i32
    %c0_i32_2 = arith.constant 0 : i32
    return %c0_i32, %c0_i32_0, %c0_i32_1 : i32, i32, i32
  }
  func.func @transform_9(%arg0: i32) -> (i32, i32) {
    %c0_i32 = arith.constant 0 : i32
    %c0_i32_0 = arith.constant 0 : i32
    %c0_i32_1 = arith.constant 0 : i32
    return %c0_i32, %c0_i32_0 : i32, i32
  }
  func.func @transform_10(%arg0: i32) -> (i32, i32) {
    %c0_i32 = arith.constant 0 : i32
    %c0_i32_0 = arith.constant 0 : i32
    %c0_i32_1 = arith.constant 0 : i32
    return %c0_i32, %c0_i32_0 : i32, i32
  }
  func.func @transform_11(%arg0: i32) -> (i32, i32) {
    %c0_i32 = arith.constant 0 : i32
    %c0_i32_0 = arith.constant 0 : i32
    %c0_i32_1 = arith.constant 0 : i32
    return %c0_i32, %c0_i32_0 : i32, i32
  }
  func.func @transform_12(%arg0: i32) -> (i32, i32) {
    %c0_i32 = arith.constant 0 : i32
    %c0_i32_0 = arith.constant 0 : i32
    %c0_i32_1 = arith.constant 0 : i32
    return %c0_i32, %c0_i32_0 : i32, i32
  }
  func.func @transform_13(%arg0: i32) -> (i32, i32) {
    %c0_i32 = arith.constant 0 : i32
    %c0_i32_0 = arith.constant 0 : i32
    %c0_i32_1 = arith.constant 0 : i32
    return %c0_i32, %c0_i32_0 : i32, i32
  }
  func.func @transform_14(%arg0: i32) -> (i32, i32) {
    %c0_i32 = arith.constant 0 : i32
    %c0_i32_0 = arith.constant 0 : i32
    %c0_i32_1 = arith.constant 0 : i32
    return %c0_i32, %c0_i32_0 : i32, i32
  }
  func.func @transform_15(%arg0: i32) -> (i32, i32) {
    %c0_i32 = arith.constant 0 : i32
    %c0_i32_0 = arith.constant 0 : i32
    %c0_i32_1 = arith.constant 0 : i32
    return %c0_i32, %c0_i32_0 : i32, i32
  }
  func.func @transform_16(%arg0: i32) -> (i32, i32) {
    %c0_i32 = arith.constant 0 : i32
    %c0_i32_0 = arith.constant 0 : i32
    %c0_i32_1 = arith.constant 0 : i32
    return %c0_i32, %c0_i32_0 : i32, i32
  }
  func.func @transform_17(%arg0: i32) -> (i32, i32) {
    %c0_i32 = arith.constant 0 : i32
    %c0_i32_0 = arith.constant 0 : i32
    %c0_i32_1 = arith.constant 0 : i32
    return %c0_i32, %c0_i32_0 : i32, i32
  }
}

</mosaic_0001>

<llo_original>
// kernel: latent_attn_forward.1
$region0: #{latent_attn_forward.1}
  #allocation0 [shape = 'u32[]', space=smem, size = 0x4, offset = 0x4, fixed_abs, tag = 'smem constant byte address 0x4 - core index']
  #allocation1 [shape = 'u32[144,128]{1,0:T(1,128)}', space=vmem, size = 0x12000, scoped, tag = 'internal scratch']
  %s0 = inlined_call_operand.vmem [shape: f32[32,32], index: 0, kind: input, shape index: {}]
  %s1 = inlined_call_operand.vmem [shape: f32[32,32], index: 1, kind: input, shape index: {}]
  %s2 = inlined_call_operand.vmem [shape: f32[32,32], index: 2, kind: input, shape index: {}]
  %s3 = inlined_call_operand.vmem [shape: f32[32,32], index: 3, kind: input, shape index: {}]
  %s4 = inlined_call_operand.vmem [shape: f32[1,32], index: 4, kind: input, shape index: {}]
  %s5 = inlined_call_operand.vmem [shape: f32[1,32], index: 5, kind: input, shape index: {}]
  %s6 = inlined_call_operand.vmem [shape: f32[1,32], index: 6, kind: input, shape index: {}]
  %s7 = inlined_call_operand.vmem [shape: f32[12,1,32], index: 7, kind: input, shape index: {}]
  %s8 = inlined_call_operand.vmem [shape: f32[12,1,32], index: 8, kind: input, shape index: {}]
  %s9 = inlined_call_operand.vmem [shape: f32[1,32], index: 9, kind: input, shape index: {}]
  %s10 = inlined_call_operand.vmem [shape: f32[32,32], index: 10, kind: input, shape index: {}]
  %s11 = inlined_call_operand.vmem [shape: f32[1,32], index: 11, kind: input, shape index: {}]
  %s12 = inlined_call_operand.vmem [shape: f32[8,32], index: 12, kind: input, shape index: {}]
  %s13 = inlined_call_operand.vmem [shape: f32[128,32], index: 13, kind: input, shape index: {}]
  %s14 = inlined_call_operand.vmem [shape: f32[32,32], index: 14, kind: input, shape index: {}]
  %s15 = inlined_call_operand.vmem [shape: f32[32,3], index: 15, kind: input, shape index: {}]
  %s16 = inlined_call_operand.vmem [shape: f32[2,32], index: 16, kind: output, shape index: {0}]
  %s17 = inlined_call_operand.vmem [shape: f32[2,3], index: 17, kind: output, shape index: {1}]
  %18 = xla_tuple %s16, %s17
  %s19 = sld [smem:[#allocation0]]
  $region82: #{latent_attn_forward.1} parent=0
    _
  %s21 = ssub.s32 1, %s19
  %s22 = scalar_select 0, %s21, %s19
  // Predicated region
  $region2: #{latent_attn_forward.1} parent=0 // pred_check
    _
  $region3: #{latent_attn_forward.1} parent=0 // pred_check_branch
    %24 = sbr.rel (0) target = $region5
  $region4: #{latent_attn_forward.1} parent=0 // pred_region
    _
  $region5: #{latent_attn_forward.1} parent=0 // pred_fallthru
    _
  // Predicated region
  $region6: #{latent_attn_forward.1} parent=0 // pred_check
    _
  $region7: #{latent_attn_forward.1} parent=0 // pred_check_branch
    %26 = sbr.rel (0) target = $region9
  $region8: #{latent_attn_forward.1} parent=0 // pred_region
    _
  $region9: #{latent_attn_forward.1} parent=0 // pred_fallthru
    _
  // Predicated region
  $region10: #{latent_attn_forward.1} parent=0 // pred_check
    _
  $region11: #{latent_attn_forward.1} parent=0 // pred_check_branch
    %28 = sbr.rel (0) target = $region13
  $region12: #{latent_attn_forward.1} parent=0 // pred_region
    _
  $region13: #{latent_attn_forward.1} parent=0 // pred_fallthru
    _
  // Predicated region
  $region14: #{latent_attn_forward.1} parent=0 // pred_check
    _
  $region15: #{latent_attn_forward.1} parent=0 // pred_check_branch
    %30 = sbr.rel (0) target = $region17
  $region16: #{latent_attn_forward.1} parent=0 // pred_region
    _
  $region17: #{latent_attn_forward.1} parent=0 // pred_fallthru
    _
  // Predicated region
  $region18: #{latent_attn_forward.1} parent=0 // pred_check
    _
  $region19: #{latent_attn_forward.1} parent=0 // pred_check_branch
    %32 = sbr.rel (0) target = $region21
  $region20: #{latent_attn_forward.1} parent=0 // pred_region
    _
  $region21: #{latent_attn_forward.1} parent=0 // pred_fallthru
    _
  // Predicated region
  $region22: #{latent_attn_forward.1} parent=0 // pred_check
    _
  $region23: #{latent_attn_forward.1} parent=0 // pred_check_branch
    %34 = sbr.rel (0) target = $region25
  $region24: #{latent_attn_forward.1} parent=0 // pred_region
    _
  $region25: #{latent_attn_forward.1} parent=0 // pred_fallthru
    _
  // Predicated region
  $region26: #{latent_attn_forward.1} parent=0 // pred_check
    _
  $region27: #{latent_attn_forward.1} parent=0 // pred_check_branch
    %36 = sbr.rel (0) target = $region29
  $region28: #{latent_attn_forward.1} parent=0 // pred_region
    _
  $region29: #{latent_attn_forward.1} parent=0 // pred_fallthru
    _
  // Predicated region
  $region30: #{latent_attn_forward.1} parent=0 // pred_check
    _
  $region31: #{latent_attn_forward.1} parent=0 // pred_check_branch
    %38 = sbr.rel (0) target = $region33
  $region32: #{latent_attn_forward.1} parent=0 // pred_region
    _
  $region33: #{latent_attn_forward.1} parent=0 // pred_fallthru
    _
  // Predicated region
  $region34: #{latent_attn_forward.1} parent=0 // pred_check
    _
  $region35: #{latent_attn_forward.1} parent=0 // pred_check_branch
    %40 = sbr.rel (0) target = $region37
  $region36: #{latent_attn_forward.1} parent=0 // pred_region
    _
  $region37: #{latent_attn_forward.1} parent=0 // pred_fallthru
    _
  // Predicated region
  $region38: #{latent_attn_forward.1} parent=0 // pred_check
    _
  $region39: #{latent_attn_forward.1} parent=0 // pred_check_branch
    %42 = sbr.rel (0) target = $region41
  $region40: #{latent_attn_forward.1} parent=0 // pred_region
    _
  $region41: #{latent_attn_forward.1} parent=0 // pred_fallthru
    _
  // Predicated region
  $region42: #{latent_attn_forward.1} parent=0 // pred_check
    _
  $region43: #{latent_attn_forward.1} parent=0 // pred_check_branch
    %44 = sbr.rel (0) target = $region45
  $region44: #{latent_attn_forward.1} parent=0 // pred_region
    _
  $region45: #{latent_attn_forward.1} parent=0 // pred_fallthru
    _
  // Predicated region
  $region46: #{latent_attn_forward.1} parent=0 // pred_check
    _
  $region47: #{latent_attn_forward.1} parent=0 // pred_check_branch
    %46 = sbr.rel (0) target = $region49
  $region48: #{latent_attn_forward.1} parent=0 // pred_region
    _
  $region49: #{latent_attn_forward.1} parent=0 // pred_fallthru
    _
  // Predicated region
  $region50: #{latent_attn_forward.1} parent=0 // pred_check
    _
  $region51: #{latent_attn_forward.1} parent=0 // pred_check_branch
    %48 = sbr.rel (0) target = $region53
  $region52: #{latent_attn_forward.1} parent=0 // pred_region
    _
  $region53: #{latent_attn_forward.1} parent=0 // pred_fallthru
    _
  // Predicated region
  $region54: #{latent_attn_forward.1} parent=0 // pred_check
    _
  $region55: #{latent_attn_forward.1} parent=0 // pred_check_branch
    %50 = sbr.rel (0) target = $region57
  $region56: #{latent_attn_forward.1} parent=0 // pred_region
    _
  $region57: #{latent_attn_forward.1} parent=0 // pred_fallthru
    _
  // Predicated region
  $region58: #{latent_attn_forward.1} parent=0 // pred_check
    _
  $region59: #{latent_attn_forward.1} parent=0 // pred_check_branch
    %52 = sbr.rel (0) target = $region61
  $region60: #{latent_attn_forward.1} parent=0 // pred_region
    _
  $region61: #{latent_attn_forward.1} parent=0 // pred_fallthru
    _
  // Predicated region
  $region62: #{latent_attn_forward.1} parent=0 // pred_check
    _
  $region63: #{latent_attn_forward.1} parent=0 // pred_check_branch
    %54 = sbr.rel (0) target = $region65
  $region64: #{latent_attn_forward.1} parent=0 // pred_region
    _
  $region65: #{latent_attn_forward.1} parent=0 // pred_fallthru
    _
  %v55 = vld [vmem:[%s0] sm:$0xff]
  %v56 = vld [vmem:[%s0 + $0x8] sm:$0xff]
  %v57 = vld [vmem:[%s0 + $0x10] sm:$0xff]
  %v58 = vld [vmem:[%s0 + $0x18] sm:$0xff]
  %v59 = vld [vmem:[%s12] sm:$0xff]
  %v60 = vld [vmem:[%s13] sm:$0xff]
  %v61 = vld [vmem:[%s13 + $0x8] sm:$0xff]
  %v62 = vld [vmem:[%s13 + $0x10] sm:$0xff]
  %v63 = vld [vmem:[%s13 + $0x18] sm:$0xff]
  %v64 = vld [vmem:[%s13 + $0x20] sm:$0xff]
  %v65 = vld [vmem:[%s13 + $0x28] sm:$0xff]
  %v66 = vld [vmem:[%s13 + $0x30] sm:$0xff]
  %v67 = vld [vmem:[%s13 + $0x38] sm:$0xff]
  %v68 = vld [vmem:[%s13 + $0x40] sm:$0xff]
  %v69 = vld [vmem:[%s13 + $0x48] sm:$0xff]
  %v70 = vld [vmem:[%s13 + $0x50] sm:$0xff]
  %v71 = vld [vmem:[%s13 + $0x58] sm:$0xff]
  %v72 = vld [vmem:[%s13 + $0x60] sm:$0xff]
  %v73 = vld [vmem:[%s13 + $0x68] sm:$0xff]
  %v74 = vld [vmem:[%s13 + $0x70] sm:$0xff]
  %v75 = vld [vmem:[%s13 + $0x78] sm:$0xff]
  %v76 = vld [vmem:[%s9] sm:$0x1]
  %v77 = vld [vmem:[%s1] sm:$0xff]
  %v78 = vld [vmem:[%s1 + $0x8] sm:$0xff]
  %v79 = vld [vmem:[%s1 + $0x10] sm:$0xff]
  %v80 = vld [vmem:[%s1 + $0x18] sm:$0xff]
  %v81 = vld [vmem:[%s4] sm:$0x1]
  %v83 = vlaneseq
  %v84 = vshrl.u32 %v83, 7
  %v85 = vsub.s32 0, %v84
  %v86 = vrot.slane %v81, %v85
  %vm88 = vcmask 261120
  %v90 = vsel %vm88, %v55, 0
  %v93 = vsel %vm88, %v56, 0
  %v96 = vsel %vm88, %v57, 0
  %v99 = vsel %vm88, %v58, 0
  %101 = vmatprep.subr.mxu0 0.0
  %102 = vmatpush1.msra.mxu0 0.0
  %103 = vmatprep.subr.mxu0 0.0
  %104 = vmatpush1.msra.mxu0 0.0
  %105 = vmatprep.subr.mxu0 0.0
  %106 = vmatpush1.msra.mxu0 0.0
  %107 = vmatprep.subr.mxu0 0.0
  %108 = vmatpush1.msra.mxu0 0.0
  %109 = vmatprep.subr.mxu0 0.0
  %110 = vmatpush1.msra.mxu0 0.0
  %111 = vmatprep.subr.mxu0 0.0
  %112 = vmatpush1.msra.mxu0 0.0
  %113 = vmatprep.subr.mxu0 0.0
  %114 = vmatpush1.msra.mxu0 0.0
  %115 = vmatprep.subr.mxu0 0.0
  %116 = vmatpush1.msra.mxu0 0.0
  %117 = vmatprep.subr.mxu0 0.0
  %118 = vmatpush1.msra.mxu0 0.0
  %119 = vmatprep.subr.mxu0 0.0
  %120 = vmatpush1.msra.mxu0 0.0
  %121 = vmatprep.subr.mxu0 0.0
  %122 = vmatpush1.msra.mxu0 0.0
  %123 = vmatprep.subr.mxu0 0.0
  %124 = vmatpush1.msra.mxu0 0.0
  %125 = vmatprep.subr.mxu0 0.0
  %126 = vmatpush1.msra.mxu0 %v80
  %127 = vmatprep.subr.mxu0 0.0
  %128 = vmatpush1.msra.mxu0 %v79
  %129 = vmatprep.subr.mxu0 0.0
  %130 = vmatpush1.msra.mxu0 %v78
  %131 = vmatprep.subr.mxu0 0.0
  %132 = vmatpush1.msra.mxu0 %v77
  %133 = vmatprep.subr.mxu0 0.0
  %134 = vmatpush2.msra.mxu0 0.0
  %135 = vmatprep.subr.mxu0 0.0
  %136 = vmatpush2.msra.mxu0 0.0
  %137 = vmatprep.subr.mxu0 0.0
  %138 = vmatpush2.msra.mxu0 0.0
  %139 = vmatprep.subr.mxu0 0.0
  %140 = vmatpush2.msra.mxu0 0.0
  %141 = vmatprep.subr.mxu0 0.0
  %142 = vmatpush2.msra.mxu0 0.0
  %143 = vmatprep.subr.mxu0 0.0
  %144 = vmatpush2.msra.mxu0 0.0
  %145 = vmatprep.subr.mxu0 0.0
  %146 = vmatpush2.msra.mxu0 0.0
  %147 = vmatprep.subr.mxu0 0.0
  %148 = vmatpush2.msra.mxu0 0.0
  %149 = vmatprep.subr.mxu0 0.0
  %150 = vmatpush2.msra.mxu0 0.0
  %151 = vmatprep.subr.mxu0 0.0
  %152 = vmatpush2.msra.mxu0 0.0
  %153 = vmatprep.subr.mxu0 0.0
  %154 = vmatpush2.msra.mxu0 0.0
  %155 = vmatprep.subr.mxu0 0.0
  %156 = vmatpush2.msra.mxu0 0.0
  %157 = vmatprep.subr.mxu0 0.0
  %158 = vmatpush2.msra.mxu0 0.0
  %159 = vmatprep.subr.mxu0 0.0
  %160 = vmatpush2.msra.mxu0 0.0
  %161 = vmatprep.subr.mxu0 0.0
  %162 = vmatpush2.msra.mxu0 0.0
  %163 = vmatprep.subr.mxu0 0.0
  %164 = vmatpush2.msra.mxu0 0.0
  %165 = vmatprep.mubr.f32.mxu0 0.0
  %166 = vmatmul.mubr.f32.gmra.mxu0 %v90
  %v167 = vpop.f32.mrf.mxu0
  %v168 = vadd.f32 %v86, %v167
  %v169 = vpop.f32.mrf.mxu0
  %170 = vmatprep.mubr.f32.mxu0 0.0
  %171 = vmatmul.mubr.f32.gmra.mxu0 %v93
  %v172 = vpop.f32.mrf.mxu0
  %v173 = vadd.f32 %v86, %v172
  %v174 = vpop.f32.mrf.mxu0
  %175 = vmatprep.mubr.f32.mxu0 0.0
  %176 = vmatmul.mubr.f32.gmra.mxu0 %v96
  %v177 = vpop.f32.mrf.mxu0
  %v178 = vadd.f32 %v86, %v177
  %v179 = vpop.f32.mrf.mxu0
  %180 = vmatprep.mubr.f32.mxu0 0.0
  %181 = vmatmul.mubr.f32.gmra.mxu0 %v99
  %v182 = vpop.f32.mrf.mxu0
  %v183 = vadd.f32 %v86, %v182
  %v184 = vpop.f32.mrf.mxu0
  %185 = vdwg.mxu0
  %v186 = vld [vmem:[%s2] sm:$0xff]
  %v187 = vld [vmem:[%s2 + $0x8] sm:$0xff]
  %v188 = vld [vmem:[%s2 + $0x10] sm:$0xff]
  %v189 = vld [vmem:[%s2 + $0x18] sm:$0xff]
  %v190 = vld [vmem:[%s5] sm:$0x1]
  %v192 = vlaneseq
  %v193 = vshrl.u32 %v192, 7
  %v194 = vsub.s32 0, %v193
  %v195 = vrot.slane %v190, %v194
  %197 = vmatprep.subr.mxu0 0.0
  %198 = vmatpush1.msra.mxu0 0.0
  %199 = vmatprep.subr.mxu0 0.0
  %200 = vmatpush1.msra.mxu0 0.0
  %201 = vmatprep.subr.mxu0 0.0
  %202 = vmatpush1.msra.mxu0 0.0
  %203 = vmatprep.subr.mxu0 0.0
  %204 = vmatpush1.msra.mxu0 0.0
  %205 = vmatprep.subr.mxu0 0.0
  %206 = vmatpush1.msra.mxu0 0.0
  %207 = vmatprep.subr.mxu0 0.0
  %208 = vmatpush1.msra.mxu0 0.0
  %209 = vmatprep.subr.mxu0 0.0
  %210 = vmatpush1.msra.mxu0 0.0
  %211 = vmatprep.subr.mxu0 0.0
  %212 = vmatpush1.msra.mxu0 0.0
  %213 = vmatprep.subr.mxu0 0.0
  %214 = vmatpush1.msra.mxu0 0.0
  %215 = vmatprep.subr.mxu0 0.0
  %216 = vmatpush1.msra.mxu0 0.0
  %217 = vmatprep.subr.mxu0 0.0
  %218 = vmatpush1.msra.mxu0 0.0
  %219 = vmatprep.subr.mxu0 0.0
  %220 = vmatpush1.msra.mxu0 0.0
  %221 = vmatprep.subr.mxu0 0.0
  %222 = vmatpush1.msra.mxu0 %v189
  %223 = vmatprep.subr.mxu0 0.0
  %224 = vmatpush1.msra.mxu0 %v188
  %225 = vmatprep.subr.mxu0 0.0
  %226 = vmatpush1.msra.mxu0 %v187
  %227 = vmatprep.subr.mxu0 0.0
  %228 = vmatpush1.msra.mxu0 %v186
  %229 = vmatprep.subr.mxu0 0.0
  %230 = vmatpush2.msra.mxu0 0.0
  %231 = vmatprep.subr.mxu0 0.0
  %232 = vmatpush2.msra.mxu0 0.0
  %233 = vmatprep.subr.mxu0 0.0
  %234 = vmatpush2.msra.mxu0 0.0
  %235 = vmatprep.subr.mxu0 0.0
  %236 = vmatpush2.msra.mxu0 0.0
  %237 = vmatprep.subr.mxu0 0.0
  %238 = vmatpush2.msra.mxu0 0.0
  %239 = vmatprep.subr.mxu0 0.0
  %240 = vmatpush2.msra.mxu0 0.0
  %241 = vmatprep.subr.mxu0 0.0
  %242 = vmatpush2.msra.mxu0 0.0
  %243 = vmatprep.subr.mxu0 0.0
  %244 = vmatpush2.msra.mxu0 0.0
  %245 = vmatprep.subr.mxu0 0.0
  %246 = vmatpush2.msra.mxu0 0.0
  %247 = vmatprep.subr.mxu0 0.0
  %248 = vmatpush2.msra.mxu0 0.0
  %249 = vmatprep.subr.mxu0 0.0
  %250 = vmatpush2.msra.mxu0 0.0
  %251 = vmatprep.subr.mxu0 0.0
  %252 = vmatpush2.msra.mxu0 0.0
  %253 = vmatprep.subr.mxu0 0.0
  %254 = vmatpush2.msra.mxu0 0.0
  %255 = vmatprep.subr.mxu0 0.0
  %256 = vmatpush2.msra.mxu0 0.0
  %257 = vmatprep.subr.mxu0 0.0
  %258 = vmatpush2.msra.mxu0 0.0
  %259 = vmatprep.subr.mxu0 0.0
  %260 = vmatpush2.msra.mxu0 0.0
  %261 = vmatprep.mubr.f32.mxu0 0.0
  %262 = vmatmul.mubr.f32.gmra.mxu0 %v90
  %v263 = vpop.f32.mrf.mxu0
  %v264 = vadd.f32 %v195, %v263
  %v265 = vpop.f32.mrf.mxu0
  %266 = vmatprep.mubr.f32.mxu0 0.0
  %267 = vmatmul.mubr.f32.gmra.mxu0 %v93
  %v268 = vpop.f32.mrf.mxu0
  %v269 = vadd.f32 %v195, %v268
  %v270 = vpop.f32.mrf.mxu0
  %271 = vmatprep.mubr.f32.mxu0 0.0
  %272 = vmatmul.mubr.f32.gmra.mxu0 %v96
  %v273 = vpop.f32.mrf.mxu0
  %v274 = vadd.f32 %v195, %v273
  %v275 = vpop.f32.mrf.mxu0
  %276 = vmatprep.mubr.f32.mxu0 0.0
  %277 = vmatmul.mubr.f32.gmra.mxu0 %v99
  %v278 = vpop.f32.mrf.mxu0
  %v279 = vadd.f32 %v195, %v278
  %v280 = vpop.f32.mrf.mxu0
  %281 = vdwg.mxu0
  %v282 = vld [vmem:[%s3] sm:$0xff]
  %v283 = vld [vmem:[%s3 + $0x8] sm:$0xff]
  %v284 = vld [vmem:[%s3 + $0x10] sm:$0xff]
  %v285 = vld [vmem:[%s3 + $0x18] sm:$0xff]
  %v286 = vld [vmem:[%s6] sm:$0x1]
  %v288 = vlaneseq
  %v289 = vshrl.u32 %v288, 7
  %v290 = vsub.s32 0, %v289
  %v291 = vrot.slane %v286, %v290
  %293 = vmatprep.subr.mxu0 0.0
  %294 = vmatpush1.msra.mxu0 0.0
  %295 = vmatprep.subr.mxu0 0.0
  %296 = vmatpush1.msra.mxu0 0.0
  %297 = vmatprep.subr.mxu0 0.0
  %298 = vmatpush1.msra.mxu0 0.0
  %299 = vmatprep.subr.mxu0 0.0
  %300 = vmatpush1.msra.mxu0 0.0
  %301 = vmatprep.subr.mxu0 0.0
  %302 = vmatpush1.msra.mxu0 0.0
  %303 = vmatprep.subr.mxu0 0.0
  %304 = vmatpush1.msra.mxu0 0.0
  %305 = vmatprep.subr.mxu0 0.0
  %306 = vmatpush1.msra.mxu0 0.0
  %307 = vmatprep.subr.mxu0 0.0
  %308 = vmatpush1.msra.mxu0 0.0
  %309 = vmatprep.subr.mxu0 0.0
  %310 = vmatpush1.msra.mxu0 0.0
  %311 = vmatprep.subr.mxu0 0.0
  %312 = vmatpush1.msra.mxu0 0.0
  %313 = vmatprep.subr.mxu0 0.0
  %314 = vmatpush1.msra.mxu0 0.0
  %315 = vmatprep.subr.mxu0 0.0
  %316 = vmatpush1.msra.mxu0 0.0
  %317 = vmatprep.subr.mxu0 0.0
  %318 = vmatpush1.msra.mxu0 %v285
  %319 = vmatprep.subr.mxu0 0.0
  %320 = vmatpush1.msra.mxu0 %v284
  %321 = vmatprep.subr.mxu0 0.0
  %322 = vmatpush1.msra.mxu0 %v283
  %323 = vmatprep.subr.mxu0 0.0
  %324 = vmatpush1.msra.mxu0 %v282
  %325 = vmatprep.subr.mxu0 0.0
  %326 = vmatpush2.msra.mxu0 0.0
  %327 = vmatprep.subr.mxu0 0.0
  %328 = vmatpush2.msra.mxu0 0.0
  %329 = vmatprep.subr.mxu0 0.0
  %330 = vmatpush2.msra.mxu0 0.0
  %331 = vmatprep.subr.mxu0 0.0
  %332 = vmatpush2.msra.mxu0 0.0
  %333 = vmatprep.subr.mxu0 0.0
  %334 = vmatpush2.msra.mxu0 0.0
  %335 = vmatprep.subr.mxu0 0.0
  %336 = vmatpush2.msra.mxu0 0.0
  %337 = vmatprep.subr.mxu0 0.0
  %338 = vmatpush2.msra.mxu0 0.0
  %339 = vmatprep.subr.mxu0 0.0
  %340 = vmatpush2.msra.mxu0 0.0
  %341 = vmatprep.subr.mxu0 0.0
  %342 = vmatpush2.msra.mxu0 0.0
  %343 = vmatprep.subr.mxu0 0.0
  %344 = vmatpush2.msra.mxu0 0.0
  %345 = vmatprep.subr.mxu0 0.0
  %346 = vmatpush2.msra.mxu0 0.0
  %347 = vmatprep.subr.mxu0 0.0
  %348 = vmatpush2.msra.mxu0 0.0
  %349 = vmatprep.subr.mxu0 0.0
  %350 = vmatpush2.msra.mxu0 0.0
  %351 = vmatprep.subr.mxu0 0.0
  %352 = vmatpush2.msra.mxu0 0.0
  %353 = vmatprep.subr.mxu0 0.0
  %354 = vmatpush2.msra.mxu0 0.0
  %355 = vmatprep.subr.mxu0 0.0
  %356 = vmatpush2.msra.mxu0 0.0
  %357 = vmatprep.mubr.f32.mxu0 0.0
  %358 = vmatmul.mubr.f32.gmra.mxu0 %v90
  %v359 = vpop.f32.mrf.mxu0
  %v360 = vadd.f32 %v291, %v359
  %v361 = vpop.f32.mrf.mxu0
  %362 = vmatprep.mubr.f32.mxu0 0.0
  %363 = vmatmul.mubr.f32.gmra.mxu0 %v93
  %v364 = vpop.f32.mrf.mxu0
  %v365 = vadd.f32 %v291, %v364
  %v366 = vpop.f32.mrf.mxu0
  %367 = vmatprep.mubr.f32.mxu0 0.0
  %368 = vmatmul.mubr.f32.gmra.mxu0 %v96
  %v369 = vpop.f32.mrf.mxu0
  %v370 = vadd.f32 %v291, %v369
  %v371 = vpop.f32.mrf.mxu0
  %372 = vmatprep.mubr.f32.mxu0 0.0
  %373 = vmatmul.mubr.f32.gmra.mxu0 %v99
  %v374 = vpop.f32.mrf.mxu0
  %v375 = vadd.f32 %v291, %v374
  %v376 = vpop.f32.mrf.mxu0
  %377 = vdwg.mxu0
  %v378 = vmul.f32 %v168, %v60
  %v379 = vmul.f32 %v173, %v61
  %v380 = vmul.f32 %v168, %v62
  %v381 = vmul.f32 %v173, %v63
  %v382 = vmul.f32 %v168, %v64
  %v383 = vmul.f32 %v173, %v65
  %v384 = vmul.f32 %v168, %v66
  %v385 = vmul.f32 %v173, %v67
  %v386 = vmul.f32 %v168, %v68
  %v387 = vmul.f32 %v173, %v69
  %v388 = vmul.f32 %v168, %v70
  %v389 = vmul.f32 %v173, %v71
  %v390 = vmul.f32 %v168, %v72
  %v391 = vmul.f32 %v173, %v73
  %v392 = vmul.f32 %v168, %v74
  %v393 = vmul.f32 %v173, %v75
  %v395 = vsel %vm88, %v378, 0
  %v398 = vsel %vm88, %v379, 0
  %v401 = vsel %vm88, %v380, 0
  %v404 = vsel %vm88, %v381, 0
  %v407 = vsel %vm88, %v382, 0
  %v410 = vsel %vm88, %v383, 0
  %v413 = vsel %vm88, %v384, 0
  %v416 = vsel %vm88, %v385, 0
  %v419 = vsel %vm88, %v386, 0
  %v422 = vsel %vm88, %v387, 0
  %v425 = vsel %vm88, %v388, 0
  %v428 = vsel %vm88, %v389, 0
  %v431 = vsel %vm88, %v390, 0
  %v434 = vsel %vm88, %v391, 0
  %v437 = vsel %vm88, %v392, 0
  %v440 = vsel %vm88, %v393, 0
  %v443 = vsel %vm88, %v264, 0
  %v446 = vsel %vm88, %v269, 0
  %448 = vmatprep.subr.mxu0 0.0
  %449 = vmatpush1.xpose.msra.mxu0 0.0
  %450 = vmatprep.subr.mxu0 0.0
  %451 = vmatpush1.xpose.msra.mxu0 0.0
  %452 = vmatprep.subr.mxu0 0.0
  %453 = vmatpush1.xpose.msra.mxu0 0.0
  %454 = vmatprep.subr.mxu0 0.0
  %455 = vmatpush1.xpose.msra.mxu0 0.0
  %456 = vmatprep.subr.mxu0 0.0
  %457 = vmatpush1.xpose.msra.mxu0 0.0
  %458 = vmatprep.subr.mxu0 0.0
  %459 = vmatpush1.xpose.msra.mxu0 0.0
  %460 = vmatprep.subr.mxu0 0.0
  %461 = vmatpush1.xpose.msra.mxu0 0.0
  %462 = vmatprep.subr.mxu0 0.0
  %463 = vmatpush1.xpose.msra.mxu0 0.0
  %464 = vmatprep.subr.mxu0 0.0
  %465 = vmatpush1.xpose.msra.mxu0 0.0
  %466 = vmatprep.subr.mxu0 0.0
  %467 = vmatpush1.xpose.msra.mxu0 0.0
  %468 = vmatprep.subr.mxu0 0.0
  %469 = vmatpush1.xpose.msra.mxu0 0.0
  %470 = vmatprep.subr.mxu0 0.0
  %471 = vmatpush1.xpose.msra.mxu0 0.0
  %472 = vmatprep.subr.mxu0 0.0
  %473 = vmatpush1.xpose.msra.mxu0 0.0
  %474 = vmatprep.subr.mxu0 0.0
  %475 = vmatpush1.xpose.msra.mxu0 0.0
  %476 = vmatprep.subr.mxu0 0.0
  %477 = vmatpush1.xpose.msra.mxu0 %v446
  %478 = vmatprep.subr.mxu0 0.0
  %479 = vmatpush1.xpose.msra.mxu0 %v443
  %480 = vmatprep.subr.mxu0 0.0
  %481 = vmatpush2.xpose.msra.mxu0 0.0
  %482 = vmatprep.subr.mxu0 0.0
  %483 = vmatpush2.xpose.msra.mxu0 0.0
  %484 = vmatprep.subr.mxu0 0.0
  %485 = vmatpush2.xpose.msra.mxu0 0.0
  %486 = vmatprep.subr.mxu0 0.0
  %487 = vmatpush2.xpose.msra.mxu0 0.0
  %488 = vmatprep.subr.mxu0 0.0
  %489 = vmatpush2.xpose.msra.mxu0 0.0
  %490 = vmatprep.subr.mxu0 0.0
  %491 = vmatpush2.xpose.msra.mxu0 0.0
  %492 = vmatprep.subr.mxu0 0.0
  %493 = vmatpush2.xpose.msra.mxu0 0.0
  %494 = vmatprep.subr.mxu0 0.0
  %495 = vmatpush2.xpose.msra.mxu0 0.0
  %496 = vmatprep.subr.mxu0 0.0
  %497 = vmatpush2.xpose.msra.mxu0 0.0
  %498 = vmatprep.subr.mxu0 0.0
  %499 = vmatpush2.xpose.msra.mxu0 0.0
  %500 = vmatprep.subr.mxu0 0.0
  %501 = vmatpush2.xpose.msra.mxu0 0.0
  %502 = vmatprep.subr.mxu0 0.0
  %503 = vmatpush2.xpose.msra.mxu0 0.0
  %504 = vmatprep.subr.mxu0 0.0
  %505 = vmatpush2.xpose.msra.mxu0 0.0
  %506 = vmatprep.subr.mxu0 0.0
  %507 = vmatpush2.xpose.msra.mxu0 0.0
  %508 = vmatprep.subr.mxu0 0.0
  %509 = vmatpush2.xpose.msra.mxu0 0.0
  %510 = vmatprep.subr.mxu0 0.0
  %511 = vmatpush2.xpose.msra.mxu0 0.0
  %512 = vmatprep.mubr.f32.mxu0 0.0
  %513 = vmatmul.mubr.f32.gmra.mxu0 %v395
  %v514 = vpop.f32.mrf.mxu0
  %v515 = vadd.f32 0.0, %v514
  %v516 = vpop.f32.mrf.mxu0
  %517 = vmatprep.mubr.f32.mxu0 0.0
  %518 = vmatmul.mubr.f32.gmra.mxu0 %v398
  %v519 = vpop.f32.mrf.mxu0
  %v520 = vadd.f32 0.0, %v519
  %v521 = vpop.f32.mrf.mxu0
  %522 = vmatprep.mubr.f32.mxu0 0.0
  %523 = vmatmul.mubr.f32.gmra.mxu0 %v401
  %v524 = vpop.f32.mrf.mxu0
  %v525 = vadd.f32 0.0, %v524
  %v526 = vpop.f32.mrf.mxu0
  %527 = vmatprep.mubr.f32.mxu0 0.0
  %528 = vmatmul.mubr.f32.gmra.mxu0 %v404
  %v529 = vpop.f32.mrf.mxu0
  %v530 = vadd.f32 0.0, %v529
  %v531 = vpop.f32.mrf.mxu0
  %532 = vmatprep.mubr.f32.mxu0 0.0
  %533 = vmatmul.mubr.f32.gmra.mxu0 %v407
  %v534 = vpop.f32.mrf.mxu0
  %v535 = vadd.f32 0.0, %v534
  %v536 = vpop.f32.mrf.mxu0
  %537 = vmatprep.mubr.f32.mxu0 0.0
  %538 = vmatmul.mubr.f32.gmra.mxu0 %v410
  %v539 = vpop.f32.mrf.mxu0
  %v540 = vadd.f32 0.0, %v539
  %v541 = vpop.f32.mrf.mxu0
  %542 = vmatprep.mubr.f32.mxu0 0.0
  %543 = vmatmul.mubr.f32.gmra.mxu0 %v413
  %v544 = vpop.f32.mrf.mxu0
  %v545 = vadd.f32 0.0, %v544
  %v546 = vpop.f32.mrf.mxu0
  %547 = vmatprep.mubr.f32.mxu0 0.0
  %548 = vmatmul.mubr.f32.gmra.mxu0 %v416
  %v549 = vpop.f32.mrf.mxu0
  %v550 = vadd.f32 0.0, %v549
  %v551 = vpop.f32.mrf.mxu0
  %552 = vmatprep.mubr.f32.mxu0 0.0
  %553 = vmatmul.mubr.f32.gmra.mxu0 %v419
  %v554 = vpop.f32.mrf.mxu0
  %v555 = vadd.f32 0.0, %v554
  %v556 = vpop.f32.mrf.mxu0
  %557 = vmatprep.mubr.f32.mxu0 0.0
  %558 = vmatmul.mubr.f32.gmra.mxu0 %v422
  %v559 = vpop.f32.mrf.mxu0
  %v560 = vadd.f32 0.0, %v559
  %v561 = vpop.f32.mrf.mxu0
  %562 = vmatprep.mubr.f32.mxu0 0.0
  %563 = vmatmul.mubr.f32.gmra.mxu0 %v425
  %v564 = vpop.f32.mrf.mxu0
  %v565 = vadd.f32 0.0, %v564
  %v566 = vpop.f32.mrf.mxu0
  %567 = vmatprep.mubr.f32.mxu0 0.0
  %568 = vmatmul.mubr.f32.gmra.mxu0 %v428
  %v569 = vpop.f32.mrf.mxu0
  %v570 = vadd.f32 0.0, %v569
  %v571 = vpop.f32.mrf.mxu0
  %572 = vmatprep.mubr.f32.mxu0 0.0
  %573 = vmatmul.mubr.f32.gmra.mxu0 %v431
  %v574 = vpop.f32.mrf.mxu0
  %v575 = vadd.f32 0.0, %v574
  %v576 = vpop.f32.mrf.mxu0
  %577 = vmatprep.mubr.f32.mxu0 0.0
  %578 = vmatmul.mubr.f32.gmra.mxu0 %v434
  %v579 = vpop.f32.mrf.mxu0
  %v580 = vadd.f32 0.0, %v579
  %v581 = vpop.f32.mrf.mxu0
  %582 = vmatprep.mubr.f32.mxu0 0.0
  %583 = vmatmul.mubr.f32.gmra.mxu0 %v437
  %v584 = vpop.f32.mrf.mxu0
  %v585 = vadd.f32 0.0, %v584
  %v586 = vpop.f32.mrf.mxu0
  %587 = vmatprep.mubr.f32.mxu0 0.0
  %588 = vmatmul.mubr.f32.gmra.mxu0 %v440
  %v589 = vpop.f32.mrf.mxu0
  %v590 = vadd.f32 0.0, %v589
  %v591 = vpop.f32.mrf.mxu0
  %592 = vdwg.mxu0
  %v593 = vmul.f32 %v515, 2.0
  %v594 = vmul.f32 %v520, 2.0
  %v595 = vmul.f32 %v525, 2.0
  %v596 = vmul.f32 %v530, 2.0
  %v597 = vmul.f32 %v535, 2.0
  %v598 = vmul.f32 %v540, 2.0
  %v599 = vmul.f32 %v545, 2.0
  %v600 = vmul.f32 %v550, 2.0
  %v601 = vmul.f32 %v555, 2.0
  %v602 = vmul.f32 %v560, 2.0
  %v603 = vmul.f32 %v565, 2.0
  %v604 = vmul.f32 %v570, 2.0
  %v605 = vmul.f32 %v575, 2.0
  %v606 = vmul.f32 %v580, 2.0
  %v607 = vmul.f32 %v585, 2.0
  %v608 = vmul.f32 %v590, 2.0
  %vm609 = vcmask 130048
  %v610 = vsel %vm609, %v593, -inf
  %611 = vmax.xlane.f32.xlu0 %v610
  %v612 = vpop.xlane.xlu0 %611
  %v613 = vsel %vm609, %v594, -inf
  %614 = vmax.xlane.f32.xlu0 %v613
  %v615 = vpop.xlane.xlu0 %614
  %v616 = vsel %vm609, %v595, -inf
  %617 = vmax.xlane.f32.xlu0 %v616
  %v618 = vpop.xlane.xlu0 %617
  %v619 = vsel %vm609, %v596, -inf
  %620 = vmax.xlane.f32.xlu0 %v619
  %v621 = vpop.xlane.xlu0 %620
  %v622 = vsel %vm609, %v597, -inf
  %623 = vmax.xlane.f32.xlu0 %v622
  %v624 = vpop.xlane.xlu0 %623
  %v625 = vsel %vm609, %v598, -inf
  %626 = vmax.xlane.f32.xlu0 %v625
  %v627 = vpop.xlane.xlu0 %626
  %v628 = vsel %vm609, %v599, -inf
  %629 = vmax.xlane.f32.xlu0 %v628
  %v630 = vpop.xlane.xlu0 %629
  %v631 = vsel %vm609, %v600, -inf
  %632 = vmax.xlane.f32.xlu0 %v631
  %v633 = vpop.xlane.xlu0 %632
  %v634 = vsel %vm609, %v601, -inf
  %635 = vmax.xlane.f32.xlu0 %v634
  %v636 = vpop.xlane.xlu0 %635
  %v637 = vsel %vm609, %v602, -inf
  %638 = vmax.xlane.f32.xlu0 %v637
  %v639 = vpop.xlane.xlu0 %638
  %v640 = vsel %vm609, %v603, -inf
  %641 = vmax.xlane.f32.xlu0 %v640
  %v642 = vpop.xlane.xlu0 %641
  %v643 = vsel %vm609, %v604, -inf
  %644 = vmax.xlane.f32.xlu0 %v643
  %v645 = vpop.xlane.xlu0 %644
  %v646 = vsel %vm609, %v605, -inf
  %647 = vmax.xlane.f32.xlu0 %v646
  %v648 = vpop.xlane.xlu0 %647
  %v649 = vsel %vm609, %v606, -inf
  %650 = vmax.xlane.f32.xlu0 %v649
  %v651 = vpop.xlane.xlu0 %650
  %v652 = vsel %vm609, %v607, -inf
  %653 = vmax.xlane.f32.xlu0 %v652
  %v654 = vpop.xlane.xlu0 %653
  %v655 = vsel %vm609, %v608, -inf
  %656 = vmax.xlane.f32.xlu0 %v655
  %v657 = vpop.xlane.xlu0 %656
  %v658 = vsub.f32 %v593, %v612
  %v659 = vsub.f32 %v594, %v615
  %v660 = vsub.f32 %v595, %v618
  %v661 = vsub.f32 %v596, %v621
  %v662 = vsub.f32 %v597, %v624
  %v663 = vsub.f32 %v598, %v627
  %v664 = vsub.f32 %v599, %v630
  %v665 = vsub.f32 %v600, %v633
  %v666 = vsub.f32 %v601, %v636
  %v667 = vsub.f32 %v602, %v639
  %v668 = vsub.f32 %v603, %v642
  %v669 = vsub.f32 %v604, %v645
  %v670 = vsub.f32 %v605, %v648
  %v671 = vsub.f32 %v606, %v651
  %v672 = vsub.f32 %v607, %v654
  %v673 = vsub.f32 %v608, %v657
  %v674 = vmul.f32 %v658, 1.442695
  %v675 = vpow.pop %v674
  %v676 = vmul.f32 %v659, 1.442695
  %v677 = vpow.pop %v676
  %v678 = vmul.f32 %v660, 1.442695
  %v679 = vpow.pop %v678
  %v680 = vmul.f32 %v661, 1.442695
  %v681 = vpow.pop %v680
  %v682 = vmul.f32 %v662, 1.442695
  %v683 = vpow.pop %v682
  %v684 = vmul.f32 %v663, 1.442695
  %v685 = vpow.pop %v684
  %v686 = vmul.f32 %v664, 1.442695
  %v687 = vpow.pop %v686
  %v688 = vmul.f32 %v665, 1.442695
  %v689 = vpow.pop %v688
  %v690 = vmul.f32 %v666, 1.442695
  %v691 = vpow.pop %v690
  %v692 = vmul.f32 %v667, 1.442695
  %v693 = vpow.pop %v692
  %v694 = vmul.f32 %v668, 1.442695
  %v695 = vpow.pop %v694
  %v696 = vmul.f32 %v669, 1.442695
  %v697 = vpow.pop %v696
  %v698 = vmul.f32 %v670, 1.442695
  %v699 = vpow.pop %v698
  %v700 = vmul.f32 %v671, 1.442695
  %v701 = vpow.pop %v700
  %v702 = vmul.f32 %v672, 1.442695
  %v703 = vpow.pop %v702
  %v704 = vmul.f32 %v673, 1.442695
  %v705 = vpow.pop %v704
  %v706 = vsel %vm609, %v675, 0.0
  %707 = vadd.xlane.f32.xlu0 %v706
  %v708 = vpop.xlane.xlu0 %707
  %v709 = vsel %vm609, %v677, 0.0
  %710 = vadd.xlane.f32.xlu0 %v709
  %v711 = vpop.xlane.xlu0 %710
  %v712 = vsel %vm609, %v679, 0.0
  %713 = vadd.xlane.f32.xlu0 %v712
  %v714 = vpop.xlane.xlu0 %713
  %v715 = vsel %vm609, %v681, 0.0
  %716 = vadd.xlane.f32.xlu0 %v715
  %v717 = vpop.xlane.xlu0 %716
  %v718 = vsel %vm609, %v683, 0.0
  %719 = vadd.xlane.f32.xlu0 %v718
  %v720 = vpop.xlane.xlu0 %719
  %v721 = vsel %vm609, %v685, 0.0
  %722 = vadd.xlane.f32.xlu0 %v721
  %v723 = vpop.xlane.xlu0 %722
  %v724 = vsel %vm609, %v687, 0.0
  %725 = vadd.xlane.f32.xlu0 %v724
  %v726 = vpop.xlane.xlu0 %725
  %v727 = vsel %vm609, %v689, 0.0
  %728 = vadd.xlane.f32.xlu0 %v727
  %v729 = vpop.xlane.xlu0 %728
  %v730 = vsel %vm609, %v691, 0.0
  %731 = vadd.xlane.f32.xlu0 %v730
  %v732 = vpop.xlane.xlu0 %731
  %v733 = vsel %vm609, %v693, 0.0
  %734 = vadd.xlane.f32.xlu0 %v733
  %v735 = vpop.xlane.xlu0 %734
  %v736 = vsel %vm609, %v695, 0.0
  %737 = vadd.xlane.f32.xlu0 %v736
  %v738 = vpop.xlane.xlu0 %737
  %v739 = vsel %vm609, %v697, 0.0
  %740 = vadd.xlane.f32.xlu0 %v739
  %v741 = vpop.xlane.xlu0 %740
  %v742 = vsel %vm609, %v699, 0.0
  %743 = vadd.xlane.f32.xlu0 %v742
  %v744 = vpop.xlane.xlu0 %743
  %v745 = vsel %vm609, %v701, 0.0
  %746 = vadd.xlane.f32.xlu0 %v745
  %v747 = vpop.xlane.xlu0 %746
  %v748 = vsel %vm609, %v703, 0.0
  %749 = vadd.xlane.f32.xlu0 %v748
  %v750 = vpop.xlane.xlu0 %749
  %v751 = vsel %vm609, %v705, 0.0
  %752 = vadd.xlane.f32.xlu0 %v751
  %v753 = vpop.xlane.xlu0 %752
  %v754 = vrcp.pop %v708
  %v755 = vrcp.pop %v711
  %v756 = vrcp.pop %v714
  %v757 = vrcp.pop %v717
  %v758 = vrcp.pop %v720
  %v759 = vrcp.pop %v723
  %v760 = vrcp.pop %v726
  %v761 = vrcp.pop %v729
  %v762 = vrcp.pop %v732
  %v763 = vrcp.pop %v735
  %v764 = vrcp.pop %v738
  %v765 = vrcp.pop %v741
  %v766 = vrcp.pop %v744
  %v767 = vrcp.pop %v747
  %v768 = vrcp.pop %v750
  %v769 = vrcp.pop %v753
  %v770 = vmul.f32 %v675, %v754
  %v771 = vmul.f32 %v677, %v755
  %v772 = vmul.f32 %v679, %v756
  %v773 = vmul.f32 %v681, %v757
  %v774 = vmul.f32 %v683, %v758
  %v775 = vmul.f32 %v685, %v759
  %v776 = vmul.f32 %v687, %v760
  %v777 = vmul.f32 %v689, %v761
  %v778 = vmul.f32 %v691, %v762
  %v779 = vmul.f32 %v693, %v763
  %v780 = vmul.f32 %v695, %v764
  %v781 = vmul.f32 %v697, %v765
  %v782 = vmul.f32 %v699, %v766
  %v783 = vmul.f32 %v701, %v767
  %v784 = vmul.f32 %v703, %v768
  %v785 = vmul.f32 %v705, %v769
  %v787 = vsel %vm609, %v770, 0
  %v790 = vsel %vm609, %v771, 0
  %v793 = vsel %vm609, %v772, 0
  %v796 = vsel %vm609, %v773, 0
  %v799 = vsel %vm609, %v774, 0
  %v802 = vsel %vm609, %v775, 0
  %v805 = vsel %vm609, %v776, 0
  %v808 = vsel %vm609, %v777, 0
  %v811 = vsel %vm609, %v778, 0
  %v814 = vsel %vm609, %v779, 0
  %v817 = vsel %vm609, %v780, 0
  %v820 = vsel %vm609, %v781, 0
  %v823 = vsel %vm609, %v782, 0
  %v826 = vsel %vm609, %v783, 0
  %v829 = vsel %vm609, %v784, 0
  %v832 = vsel %vm609, %v785, 0
  %834 = vmatprep.subr.mxu0 0.0
  %835 = vmatpush1.msra.mxu0 0.0
  %836 = vmatprep.subr.mxu0 0.0
  %837 = vmatpush1.msra.mxu0 0.0
  %838 = vmatprep.subr.mxu0 0.0
  %839 = vmatpush1.msra.mxu0 0.0
  %840 = vmatprep.subr.mxu0 0.0
  %841 = vmatpush1.msra.mxu0 0.0
  %842 = vmatprep.subr.mxu0 0.0
  %843 = vmatpush1.msra.mxu0 0.0
  %844 = vmatprep.subr.mxu0 0.0
  %845 = vmatpush1.msra.mxu0 0.0
  %846 = vmatprep.subr.mxu0 0.0
  %847 = vmatpush1.msra.mxu0 0.0
  %848 = vmatprep.subr.mxu0 0.0
  %849 = vmatpush1.msra.mxu0 0.0
  %850 = vmatprep.subr.mxu0 0.0
  %851 = vmatpush1.msra.mxu0 0.0
  %852 = vmatprep.subr.mxu0 0.0
  %853 = vmatpush1.msra.mxu0 0.0
  %854 = vmatprep.subr.mxu0 0.0
  %855 = vmatpush1.msra.mxu0 0.0
  %856 = vmatprep.subr.mxu0 0.0
  %857 = vmatpush1.msra.mxu0 0.0
  %858 = vmatprep.subr.mxu0 0.0
  %859 = vmatpush1.msra.mxu0 0.0
  %860 = vmatprep.subr.mxu0 0.0
  %861 = vmatpush1.msra.mxu0 0.0
  %862 = vmatprep.subr.mxu0 0.0
  %863 = vmatpush1.msra.mxu0 %v365
  %864 = vmatprep.subr.mxu0 0.0
  %865 = vmatpush1.msra.mxu0 %v360
  %866 = vmatprep.subr.mxu0 0.0
  %867 = vmatpush2.msra.mxu0 0.0
  %868 = vmatprep.subr.mxu0 0.0
  %869 = vmatpush2.msra.mxu0 0.0
  %870 = vmatprep.subr.mxu0 0.0
  %871 = vmatpush2.msra.mxu0 0.0
  %872 = vmatprep.subr.mxu0 0.0
  %873 = vmatpush2.msra.mxu0 0.0
  %874 = vmatprep.subr.mxu0 0.0
  %875 = vmatpush2.msra.mxu0 0.0
  %876 = vmatprep.subr.mxu0 0.0
  %877 = vmatpush2.msra.mxu0 0.0
  %878 = vmatprep.subr.mxu0 0.0
  %879 = vmatpush2.msra.mxu0 0.0
  %880 = vmatprep.subr.mxu0 0.0
  %881 = vmatpush2.msra.mxu0 0.0
  %882 = vmatprep.subr.mxu0 0.0
  %883 = vmatpush2.msra.mxu0 0.0
  %884 = vmatprep.subr.mxu0 0.0
  %885 = vmatpush2.msra.mxu0 0.0
  %886 = vmatprep.subr.mxu0 0.0
  %887 = vmatpush2.msra.mxu0 0.0
  %888 = vmatprep.subr.mxu0 0.0
  %889 = vmatpush2.msra.mxu0 0.0
  %890 = vmatprep.subr.mxu0 0.0
  %891 = vmatpush2.msra.mxu0 0.0
  %892 = vmatprep.subr.mxu0 0.0
  %893 = vmatpush2.msra.mxu0 0.0
  %894 = vmatprep.subr.mxu0 0.0
  %895 = vmatpush2.msra.mxu0 0.0
  %896 = vmatprep.subr.mxu0 0.0
  %897 = vmatpush2.msra.mxu0 0.0
  %898 = vmatprep.mubr.f32.mxu0 0.0
  %899 = vmatmul.mubr.f32.gmra.mxu0 %v787
  %v900 = vpop.f32.mrf.mxu0
  %v901 = vadd.f32 0.0, %v900
  %v902 = vpop.f32.mrf.mxu0
  %903 = vmatprep.mubr.f32.mxu0 0.0
  %904 = vmatmul.mubr.f32.gmra.mxu0 %v790
  %v905 = vpop.f32.mrf.mxu0
  %v906 = vadd.f32 0.0, %v905
  %v907 = vpop.f32.mrf.mxu0
  %908 = vmatprep.mubr.f32.mxu0 0.0
  %909 = vmatmul.mubr.f32.gmra.mxu0 %v793
  %v910 = vpop.f32.mrf.mxu0
  %v911 = vadd.f32 0.0, %v910
  %v912 = vpop.f32.mrf.mxu0
  %913 = vmatprep.mubr.f32.mxu0 0.0
  %914 = vmatmul.mubr.f32.gmra.mxu0 %v796
  %v915 = vpop.f32.mrf.mxu0
  %v916 = vadd.f32 0.0, %v915
  %v917 = vpop.f32.mrf.mxu0
  %918 = vmatprep.mubr.f32.mxu0 0.0
  %919 = vmatmul.mubr.f32.gmra.mxu0 %v799
  %v920 = vpop.f32.mrf.mxu0
  %v921 = vadd.f32 0.0, %v920
  %v922 = vpop.f32.mrf.mxu0
  %923 = vmatprep.mubr.f32.mxu0 0.0
  %924 = vmatmul.mubr.f32.gmra.mxu0 %v802
  %v925 = vpop.f32.mrf.mxu0
  %v926 = vadd.f32 0.0, %v925
  %v927 = vpop.f32.mrf.mxu0
  %928 = vmatprep.mubr.f32.mxu0 0.0
  %929 = vmatmul.mubr.f32.gmra.mxu0 %v805
  %v930 = vpop.f32.mrf.mxu0
  %v931 = vadd.f32 0.0, %v930
  %v932 = vpop.f32.mrf.mxu0
  %933 = vmatprep.mubr.f32.mxu0 0.0
  %934 = vmatmul.mubr.f32.gmra.mxu0 %v808
  %v935 = vpop.f32.mrf.mxu0
  %v936 = vadd.f32 0.0, %v935
  %v937 = vpop.f32.mrf.mxu0
  %938 = vmatprep.mubr.f32.mxu0 0.0
  %939 = vmatmul.mubr.f32.gmra.mxu0 %v811
  %v940 = vpop.f32.mrf.mxu0
  %v941 = vadd.f32 0.0, %v940
  %v942 = vpop.f32.mrf.mxu0
  %943 = vmatprep.mubr.f32.mxu0 0.0
  %944 = vmatmul.mubr.f32.gmra.mxu0 %v814
  %v945 = vpop.f32.mrf.mxu0
  %v946 = vadd.f32 0.0, %v945
  %v947 = vpop.f32.mrf.mxu0
  %948 = vmatprep.mubr.f32.mxu0 0.0
  %949 = vmatmul.mubr.f32.gmra.mxu0 %v817
  %v950 = vpop.f32.mrf.mxu0
  %v951 = vadd.f32 0.0, %v950
  %v952 = vpop.f32.mrf.mxu0
  %953 = vmatprep.mubr.f32.mxu0 0.0
  %954 = vmatmul.mubr.f32.gmra.mxu0 %v820
  %v955 = vpop.f32.mrf.mxu0
  %v956 = vadd.f32 0.0, %v955
  %v957 = vpop.f32.mrf.mxu0
  %958 = vmatprep.mubr.f32.mxu0 0.0
  %959 = vmatmul.mubr.f32.gmra.mxu0 %v823
  %v960 = vpop.f32.mrf.mxu0
  %v961 = vadd.f32 0.0, %v960
  %v962 = vpop.f32.mrf.mxu0
  %963 = vmatprep.mubr.f32.mxu0 0.0
  %964 = vmatmul.mubr.f32.gmra.mxu0 %v826
  %v965 = vpop.f32.mrf.mxu0
  %v966 = vadd.f32 0.0, %v965
  %v967 = vpop.f32.mrf.mxu0
  %968 = vmatprep.mubr.f32.mxu0 0.0
  %969 = vmatmul.mubr.f32.gmra.mxu0 %v829
  %v970 = vpop.f32.mrf.mxu0
  %v971 = vadd.f32 0.0, %v970
  %v972 = vpop.f32.mrf.mxu0
  %973 = vmatprep.mubr.f32.mxu0 0.0
  %974 = vmatmul.mubr.f32.gmra.mxu0 %v832
  %v975 = vpop.f32.mrf.mxu0
  %v976 = vadd.f32 0.0, %v975
  %v977 = vpop.f32.mrf.mxu0
  %978 = vdwg.mxu0
  %v979 = vmul.f32 %v901, %v60
  %v980 = vmul.f32 %v906, %v61
  %v981 = vmul.f32 %v911, %v62
  %v982 = vmul.f32 %v916, %v63
  %v983 = vmul.f32 %v921, %v64
  %v984 = vmul.f32 %v926, %v65
  %v985 = vmul.f32 %v931, %v66
  %v986 = vmul.f32 %v936, %v67
  %v987 = vmul.f32 %v941, %v68
  %v988 = vmul.f32 %v946, %v69
  %v989 = vmul.f32 %v951, %v70
  %v990 = vmul.f32 %v956, %v71
  %v991 = vmul.f32 %v961, %v72
  %v992 = vmul.f32 %v966, %v73
  %v993 = vmul.f32 %v971, %v74
  %v994 = vmul.f32 %v976, %v75
  %v995 = vadd.f32 %v979, %v981
  %v996 = vadd.f32 %v980, %v982
  %v997 = vadd.f32 %v995, %v983
  %v998 = vadd.f32 %v996, %v984
  %v999 = vadd.f32 %v997, %v985
  %v1000 = vadd.f32 %v998, %v986
  %v1001 = vadd.f32 %v999, %v987
  %v1002 = vadd.f32 %v1000, %v988
  %v1003 = vadd.f32 %v1001, %v989
  %v1004 = vadd.f32 %v1002, %v990
  %v1005 = vadd.f32 %v1003, %v991
  %v1006 = vadd.f32 %v1004, %v992
  %v1007 = vadd.f32 %v1005, %v993
  %v1008 = vadd.f32 %v1006, %v994
  %v1009 = vmul.f32 %v178, %v60
  %v1010 = vmul.f32 %v183, %v61
  %v1011 = vmul.f32 %v178, %v62
  %v1012 = vmul.f32 %v183, %v63
  %v1013 = vmul.f32 %v178, %v64
  %v1014 = vmul.f32 %v183, %v65
  %v1015 = vmul.f32 %v178, %v66
  %v1016 = vmul.f32 %v183, %v67
  %v1017 = vmul.f32 %v178, %v68
  %v1018 = vmul.f32 %v183, %v69
  %v1019 = vmul.f32 %v178, %v70
  %v1020 = vmul.f32 %v183, %v71
  %v1021 = vmul.f32 %v178, %v72
  %v1022 = vmul.f32 %v183, %v73
  %v1023 = vmul.f32 %v178, %v74
  %v1024 = vmul.f32 %v183, %v75
  %v1026 = vsel %vm88, %v1009, 0
  %v1029 = vsel %vm88, %v1010, 0
  %v1032 = vsel %vm88, %v1011, 0
  %v1035 = vsel %vm88, %v1012, 0
  %v1038 = vsel %vm88, %v1013, 0
  %v1041 = vsel %vm88, %v1014, 0
  %v1044 = vsel %vm88, %v1015, 0
  %v1047 = vsel %vm88, %v1016, 0
  %v1050 = vsel %vm88, %v1017, 0
  %v1053 = vsel %vm88, %v1018, 0
  %v1056 = vsel %vm88, %v1019, 0
  %v1059 = vsel %vm88, %v1020, 0
  %v1062 = vsel %vm88, %v1021, 0
  %v1065 = vsel %vm88, %v1022, 0
  %v1068 = vsel %vm88, %v1023, 0
  %v1071 = vsel %vm88, %v1024, 0
  %v1074 = vsel %vm88, %v274, 0
  %v1077 = vsel %vm88, %v279, 0
  %1079 = vmatprep.subr.mxu0 0.0
  %1080 = vmatpush1.xpose.msra.mxu0 0.0
  %1081 = vmatprep.subr.mxu0 0.0
  %1082 = vmatpush1.xpose.msra.mxu0 0.0
  %1083 = vmatprep.subr.mxu0 0.0
  %1084 = vmatpush1.xpose.msra.mxu0 0.0
  %1085 = vmatprep.subr.mxu0 0.0
  %1086 = vmatpush1.xpose.msra.mxu0 0.0
  %1087 = vmatprep.subr.mxu0 0.0
  %1088 = vmatpush1.xpose.msra.mxu0 0.0
  %1089 = vmatprep.subr.mxu0 0.0
  %1090 = vmatpush1.xpose.msra.mxu0 0.0
  %1091 = vmatprep.subr.mxu0 0.0
  %1092 = vmatpush1.xpose.msra.mxu0 0.0
  %1093 = vmatprep.subr.mxu0 0.0
  %1094 = vmatpush1.xpose.msra.mxu0 0.0
  %1095 = vmatprep.subr.mxu0 0.0
  %1096 = vmatpush1.xpose.msra.mxu0 0.0
  %1097 = vmatprep.subr.mxu0 0.0
  %1098 = vmatpush1.xpose.msra.mxu0 0.0
  %1099 = vmatprep.subr.mxu0 0.0
  %1100 = vmatpush1.xpose.msra.mxu0 0.0
  %1101 = vmatprep.subr.mxu0 0.0
  %1102 = vmatpush1.xpose.msra.mxu0 0.0
  %1103 = vmatprep.subr.mxu0 0.0
  %1104 = vmatpush1.xpose.msra.mxu0 0.0
  %1105 = vmatprep.subr.mxu0 0.0
  %1106 = vmatpush1.xpose.msra.mxu0 0.0
  %1107 = vmatprep.subr.mxu0 0.0
  %1108 = vmatpush1.xpose.msra.mxu0 %v1077
  %1109 = vmatprep.subr.mxu0 0.0
  %1110 = vmatpush1.xpose.msra.mxu0 %v1074
  %1111 = vmatprep.subr.mxu0 0.0
  %1112 = vmatpush2.xpose.msra.mxu0 0.0
  %1113 = vmatprep.subr.mxu0 0.0
  %1114 = vmatpush2.xpose.msra.mxu0 0.0
  %1115 = vmatprep.subr.mxu0 0.0
  %1116 = vmatpush2.xpose.msra.mxu0 0.0
  %1117 = vmatprep.subr.mxu0 0.0
  %1118 = vmatpush2.xpose.msra.mxu0 0.0
  %1119 = vmatprep.subr.mxu0 0.0
  %1120 = vmatpush2.xpose.msra.mxu0 0.0
  %1121 = vmatprep.subr.mxu0 0.0
  %1122 = vmatpush2.xpose.msra.mxu0 0.0
  %1123 = vmatprep.subr.mxu0 0.0
  %1124 = vmatpush2.xpose.msra.mxu0 0.0
  %1125 = vmatprep.subr.mxu0 0.0
  %1126 = vmatpush2.xpose.msra.mxu0 0.0
  %1127 = vmatprep.subr.mxu0 0.0
  %1128 = vmatpush2.xpose.msra.mxu0 0.0
  %1129 = vmatprep.subr.mxu0 0.0
  %1130 = vmatpush2.xpose.msra.mxu0 0.0
  %1131 = vmatprep.subr.mxu0 0.0
  %1132 = vmatpush2.xpose.msra.mxu0 0.0
  %1133 = vmatprep.subr.mxu0 0.0
  %1134 = vmatpush2.xpose.msra.mxu0 0.0
  %1135 = vmatprep.subr.mxu0 0.0
  %1136 = vmatpush2.xpose.msra.mxu0 0.0
  %1137 = vmatprep.subr.mxu0 0.0
  %1138 = vmatpush2.xpose.msra.mxu0 0.0
  %1139 = vmatprep.subr.mxu0 0.0
  %1140 = vmatpush2.xpose.msra.mxu0 0.0
  %1141 = vmatprep.subr.mxu0 0.0
  %1142 = vmatpush2.xpose.msra.mxu0 0.0
  %1143 = vmatprep.mubr.f32.mxu0 0.0
  %1144 = vmatmul.mubr.f32.gmra.mxu0 %v1026
  %v1145 = vpop.f32.mrf.mxu0
  %v1146 = vadd.f32 0.0, %v1145
  %v1147 = vpop.f32.mrf.mxu0
  %1148 = vmatprep.mubr.f32.mxu0 0.0
  %1149 = vmatmul.mubr.f32.gmra.mxu0 %v1029
  %v1150 = vpop.f32.mrf.mxu0
  %v1151 = vadd.f32 0.0, %v1150
  %v1152 = vpop.f32.mrf.mxu0
  %1153 = vmatprep.mubr.f32.mxu0 0.0
  %1154 = vmatmul.mubr.f32.gmra.mxu0 %v1032
  %v1155 = vpop.f32.mrf.mxu0
  %v1156 = vadd.f32 0.0, %v1155
  %v1157 = vpop.f32.mrf.mxu0
  %1158 = vmatprep.mubr.f32.mxu0 0.0
  %1159 = vmatmul.mubr.f32.gmra.mxu0 %v1035
  %v1160 = vpop.f32.mrf.mxu0
  %v1161 = vadd.f32 0.0, %v1160
  %v1162 = vpop.f32.mrf.mxu0
  %1163 = vmatprep.mubr.f32.mxu0 0.0
  %1164 = vmatmul.mubr.f32.gmra.mxu0 %v1038
  %v1165 = vpop.f32.mrf.mxu0
  %v1166 = vadd.f32 0.0, %v1165
  %v1167 = vpop.f32.mrf.mxu0
  %1168 = vmatprep.mubr.f32.mxu0 0.0
  %1169 = vmatmul.mubr.f32.gmra.mxu0 %v1041
  %v1170 = vpop.f32.mrf.mxu0
  %v1171 = vadd.f32 0.0, %v1170
  %v1172 = vpop.f32.mrf.mxu0
  %1173 = vmatprep.mubr.f32.mxu0 0.0
  %1174 = vmatmul.mubr.f32.gmra.mxu0 %v1044
  %v1175 = vpop.f32.mrf.mxu0
  %v1176 = vadd.f32 0.0, %v1175
  %v1177 = vpop.f32.mrf.mxu0
  %1178 = vmatprep.mubr.f32.mxu0 0.0
  %1179 = vmatmul.mubr.f32.gmra.mxu0 %v1047
  %v1180 = vpop.f32.mrf.mxu0
  %v1181 = vadd.f32 0.0, %v1180
  %v1182 = vpop.f32.mrf.mxu0
  %1183 = vmatprep.mubr.f32.mxu0 0.0
  %1184 = vmatmul.mubr.f32.gmra.mxu0 %v1050
  %v1185 = vpop.f32.mrf.mxu0
  %v1186 = vadd.f32 0.0, %v1185
  %v1187 = vpop.f32.mrf.mxu0
  %1188 = vmatprep.mubr.f32.mxu0 0.0
  %1189 = vmatmul.mubr.f32.gmra.mxu0 %v1053
  %v1190 = vpop.f32.mrf.mxu0
  %v1191 = vadd.f32 0.0, %v1190
  %v1192 = vpop.f32.mrf.mxu0
  %1193 = vmatprep.mubr.f32.mxu0 0.0
  %1194 = vmatmul.mubr.f32.gmra.mxu0 %v1056
  %v1195 = vpop.f32.mrf.mxu0
  %v1196 = vadd.f32 0.0, %v1195
  %v1197 = vpop.f32.mrf.mxu0
  %1198 = vmatprep.mubr.f32.mxu0 0.0
  %1199 = vmatmul.mubr.f32.gmra.mxu0 %v1059
  %v1200 = vpop.f32.mrf.mxu0
  %v1201 = vadd.f32 0.0, %v1200
  %v1202 = vpop.f32.mrf.mxu0
  %1203 = vmatprep.mubr.f32.mxu0 0.0
  %1204 = vmatmul.mubr.f32.gmra.mxu0 %v1062
  %v1205 = vpop.f32.mrf.mxu0
  %v1206 = vadd.f32 0.0, %v1205
  %v1207 = vpop.f32.mrf.mxu0
  %1208 = vmatprep.mubr.f32.mxu0 0.0
  %1209 = vmatmul.mubr.f32.gmra.mxu0 %v1065
  %v1210 = vpop.f32.mrf.mxu0
  %v1211 = vadd.f32 0.0, %v1210
  %v1212 = vpop.f32.mrf.mxu0
  %1213 = vmatprep.mubr.f32.mxu0 0.0
  %1214 = vmatmul.mubr.f32.gmra.mxu0 %v1068
  %v1215 = vpop.f32.mrf.mxu0
  %v1216 = vadd.f32 0.0, %v1215
  %v1217 = vpop.f32.mrf.mxu0
  %1218 = vmatprep.mubr.f32.mxu0 0.0
  %1219 = vmatmul.mubr.f32.gmra.mxu0 %v1071
  %v1220 = vpop.f32.mrf.mxu0
  %v1221 = vadd.f32 0.0, %v1220
  %v1222 = vpop.f32.mrf.mxu0
  %1223 = vdwg.mxu0
  %v1224 = vmul.f32 %v1146, 2.0
  %v1225 = vmul.f32 %v1151, 2.0
  %v1226 = vmul.f32 %v1156, 2.0
  %v1227 = vmul.f32 %v1161, 2.0
  %v1228 = vmul.f32 %v1166, 2.0
  %v1229 = vmul.f32 %v1171, 2.0
  %v1230 = vmul.f32 %v1176, 2.0
  %v1231 = vmul.f32 %v1181, 2.0
  %v1232 = vmul.f32 %v1186, 2.0
  %v1233 = vmul.f32 %v1191, 2.0
  %v1234 = vmul.f32 %v1196, 2.0
  %v1235 = vmul.f32 %v1201, 2.0
  %v1236 = vmul.f32 %v1206, 2.0
  %v1237 = vmul.f32 %v1211, 2.0
  %v1238 = vmul.f32 %v1216, 2.0
  %v1239 = vmul.f32 %v1221, 2.0
  %v1240 = vsel %vm609, %v1224, -inf
  %1241 = vmax.xlane.f32.xlu0 %v1240
  %v1242 = vpop.xlane.xlu0 %1241
  %v1243 = vsel %vm609, %v1225, -inf
  %1244 = vmax.xlane.f32.xlu0 %v1243
  %v1245 = vpop.xlane.xlu0 %1244
  %v1246 = vsel %vm609, %v1226, -inf
  %1247 = vmax.xlane.f32.xlu0 %v1246
  %v1248 = vpop.xlane.xlu0 %1247
  %v1249 = vsel %vm609, %v1227, -inf
  %1250 = vmax.xlane.f32.xlu0 %v1249
  %v1251 = vpop.xlane.xlu0 %1250
  %v1252 = vsel %vm609, %v1228, -inf
  %1253 = vmax.xlane.f32.xlu0 %v1252
  %v1254 = vpop.xlane.xlu0 %1253
  %v1255 = vsel %vm609, %v1229, -inf
  %1256 = vmax.xlane.f32.xlu0 %v1255
  %v1257 = vpop.xlane.xlu0 %1256
  %v1258 = vsel %vm609, %v1230, -inf
  %1259 = vmax.xlane.f32.xlu0 %v1258
  %v1260 = vpop.xlane.xlu0 %1259
  %v1261 = vsel %vm609, %v1231, -inf
  %1262 = vmax.xlane.f32.xlu0 %v1261
  %v1263 = vpop.xlane.xlu0 %1262
  %v1264 = vsel %vm609, %v1232, -inf
  %1265 = vmax.xlane.f32.xlu0 %v1264
  %v1266 = vpop.xlane.xlu0 %1265
  %v1267 = vsel %vm609, %v1233, -inf
  %1268 = vmax.xlane.f32.xlu0 %v1267
  %v1269 = vpop.xlane.xlu0 %1268
  %v1270 = vsel %vm609, %v1234, -inf
  %1271 = vmax.xlane.f32.xlu0 %v1270
  %v1272 = vpop.xlane.xlu0 %1271
  %v1273 = vsel %vm609, %v1235, -inf
  %1274 = vmax.xlane.f32.xlu0 %v1273
  %v1275 = vpop.xlane.xlu0 %1274
  %v1276 = vsel %vm609, %v1236, -inf
  %1277 = vmax.xlane.f32.xlu0 %v1276
  %v1278 = vpop.xlane.xlu0 %1277
  %v1279 = vsel %vm609, %v1237, -inf
  %1280 = vmax.xlane.f32.xlu0 %v1279
  %v1281 = vpop.xlane.xlu0 %1280
  %v1282 = vsel %vm609, %v1238, -inf
  %1283 = vmax.xlane.f32.xlu0 %v1282
  %v1284 = vpop.xlane.xlu0 %1283
  %v1285 = vsel %vm609, %v1239, -inf
  %1286 = vmax.xlane.f32.xlu0 %v1285
  %v1287 = vpop.xlane.xlu0 %1286
  %v1288 = vsub.f32 %v1224, %v1242
  %v1289 = vsub.f32 %v1225, %v1245
  %v1290 = vsub.f32 %v1226, %v1248
  %v1291 = vsub.f32 %v1227, %v1251
  %v1292 = vsub.f32 %v1228, %v1254
  %v1293 = vsub.f32 %v1229, %v1257
  %v1294 = vsub.f32 %v1230, %v1260
  %v1295 = vsub.f32 %v1231, %v1263
  %v1296 = vsub.f32 %v1232, %v1266
  %v1297 = vsub.f32 %v1233, %v1269
  %v1298 = vsub.f32 %v1234, %v1272
  %v1299 = vsub.f32 %v1235, %v1275
  %v1300 = vsub.f32 %v1236, %v1278
  %v1301 = vsub.f32 %v1237, %v1281
  %v1302 = vsub.f32 %v1238, %v1284
  %v1303 = vsub.f32 %v1239, %v1287
  %v1304 = vmul.f32 %v1288, 1.442695
  %v1305 = vpow.pop %v1304
  %v1306 = vmul.f32 %v1289, 1.442695
  %v1307 = vpow.pop %v1306
  %v1308 = vmul.f32 %v1290, 1.442695
  %v1309 = vpow.pop %v1308
  %v1310 = vmul.f32 %v1291, 1.442695
  %v1311 = vpow.pop %v1310
  %v1312 = vmul.f32 %v1292, 1.442695
  %v1313 = vpow.pop %v1312
  %v1314 = vmul.f32 %v1293, 1.442695
  %v1315 = vpow.pop %v1314
  %v1316 = vmul.f32 %v1294, 1.442695
  %v1317 = vpow.pop %v1316
  %v1318 = vmul.f32 %v1295, 1.442695
  %v1319 = vpow.pop %v1318
  %v1320 = vmul.f32 %v1296, 1.442695
  %v1321 = vpow.pop %v1320
  %v1322 = vmul.f32 %v1297, 1.442695
  %v1323 = vpow.pop %v1322
  %v1324 = vmul.f32 %v1298, 1.442695
  %v1325 = vpow.pop %v1324
  %v1326 = vmul.f32 %v1299, 1.442695
  %v1327 = vpow.pop %v1326
  %v1328 = vmul.f32 %v1300, 1.442695
  %v1329 = vpow.pop %v1328
  %v1330 = vmul.f32 %v1301, 1.442695
  %v1331 = vpow.pop %v1330
  %v1332 = vmul.f32 %v1302, 1.442695
  %v1333 = vpow.pop %v1332
  %v1334 = vmul.f32 %v1303, 1.442695
  %v1335 = vpow.pop %v1334
  %v1336 = vsel %vm609, %v1305, 0.0
  %1337 = vadd.xlane.f32.xlu0 %v1336
  %v1338 = vpop.xlane.xlu0 %1337
  %v1339 = vsel %vm609, %v1307, 0.0
  %1340 = vadd.xlane.f32.xlu0 %v1339
  %v1341 = vpop.xlane.xlu0 %1340
  %v1342 = vsel %vm609, %v1309, 0.0
  %1343 = vadd.xlane.f32.xlu0 %v1342
  %v1344 = vpop.xlane.xlu0 %1343
  %v1345 = vsel %vm609, %v1311, 0.0
  %1346 = vadd.xlane.f32.xlu0 %v1345
  %v1347 = vpop.xlane.xlu0 %1346
  %v1348 = vsel %vm609, %v1313, 0.0
  %1349 = vadd.xlane.f32.xlu0 %v1348
  %v1350 = vpop.xlane.xlu0 %1349
  %v1351 = vsel %vm609, %v1315, 0.0
  %1352 = vadd.xlane.f32.xlu0 %v1351
  %v1353 = vpop.xlane.xlu0 %1352
  %v1354 = vsel %vm609, %v1317, 0.0
  %1355 = vadd.xlane.f32.xlu0 %v1354
  %v1356 = vpop.xlane.xlu0 %1355
  %v1357 = vsel %vm609, %v1319, 0.0
  %1358 = vadd.xlane.f32.xlu0 %v1357
  %v1359 = vpop.xlane.xlu0 %1358
  %v1360 = vsel %vm609, %v1321, 0.0
  %1361 = vadd.xlane.f32.xlu0 %v1360
  %v1362 = vpop.xlane.xlu0 %1361
  %v1363 = vsel %vm609, %v1323, 0.0
  %1364 = vadd.xlane.f32.xlu0 %v1363
  %v1365 = vpop.xlane.xlu0 %1364
  %v1366 = vsel %vm609, %v1325, 0.0
  %1367 = vadd.xlane.f32.xlu0 %v1366
  %v1368 = vpop.xlane.xlu0 %1367
  %v1369 = vsel %vm609, %v1327, 0.0
  %1370 = vadd.xlane.f32.xlu0 %v1369
  %v1371 = vpop.xlane.xlu0 %1370
  %v1372 = vsel %vm609, %v1329, 0.0
  %1373 = vadd.xlane.f32.xlu0 %v1372
  %v1374 = vpop.xlane.xlu0 %1373
  %v1375 = vsel %vm609, %v1331, 0.0
  %1376 = vadd.xlane.f32.xlu0 %v1375
  %v1377 = vpop.xlane.xlu0 %1376
  %v1378 = vsel %vm609, %v1333, 0.0
  %1379 = vadd.xlane.f32.xlu0 %v1378
  %v1380 = vpop.xlane.xlu0 %1379
  %v1381 = vsel %vm609, %v1335, 0.0
  %1382 = vadd.xlane.f32.xlu0 %v1381
  %v1383 = vpop.xlane.xlu0 %1382
  %v1384 = vrcp.pop %v1338
  %v1385 = vrcp.pop %v1341
  %v1386 = vrcp.pop %v1344
  %v1387 = vrcp.pop %v1347
  %v1388 = vrcp.pop %v1350
  %v1389 = vrcp.pop %v1353
  %v1390 = vrcp.pop %v1356
  %v1391 = vrcp.pop %v1359
  %v1392 = vrcp.pop %v1362
  %v1393 = vrcp.pop %v1365
  %v1394 = vrcp.pop %v1368
  %v1395 = vrcp.pop %v1371
  %v1396 = vrcp.pop %v1374
  %v1397 = vrcp.pop %v1377
  %v1398 = vrcp.pop %v1380
  %v1399 = vrcp.pop %v1383
  %v1400 = vmul.f32 %v1305, %v1384
  %v1401 = vmul.f32 %v1307, %v1385
  %v1402 = vmul.f32 %v1309, %v1386
  %v1403 = vmul.f32 %v1311, %v1387
  %v1404 = vmul.f32 %v1313, %v1388
  %v1405 = vmul.f32 %v1315, %v1389
  %v1406 = vmul.f32 %v1317, %v1390
  %v1407 = vmul.f32 %v1319, %v1391
  %v1408 = vmul.f32 %v1321, %v1392
  %v1409 = vmul.f32 %v1323, %v1393
  %v1410 = vmul.f32 %v1325, %v1394
  %v1411 = vmul.f32 %v1327, %v1395
  %v1412 = vmul.f32 %v1329, %v1396
  %v1413 = vmul.f32 %v1331, %v1397
  %v1414 = vmul.f32 %v1333, %v1398
  %v1415 = vmul.f32 %v1335, %v1399
  %v1417 = vsel %vm609, %v1400, 0
  %v1420 = vsel %vm609, %v1401, 0
  %v1423 = vsel %vm609, %v1402, 0
  %v1426 = vsel %vm609, %v1403, 0
  %v1429 = vsel %vm609, %v1404, 0
  %v1432 = vsel %vm609, %v1405, 0
  %v1435 = vsel %vm609, %v1406, 0
  %v1438 = vsel %vm609, %v1407, 0
  %v1441 = vsel %vm609, %v1408, 0
  %v1444 = vsel %vm609, %v1409, 0
  %v1447 = vsel %vm609, %v1410, 0
  %v1450 = vsel %vm609, %v1411, 0
  %v1453 = vsel %vm609, %v1412, 0
  %v1456 = vsel %vm609, %v1413, 0
  %v1459 = vsel %vm609, %v1414, 0
  %v1462 = vsel %vm609, %v1415, 0
  %1464 = vmatprep.subr.mxu0 0.0
  %1465 = vmatpush1.msra.mxu0 0.0
  %1466 = vmatprep.subr.mxu0 0.0
  %1467 = vmatpush1.msra.mxu0 0.0
  %1468 = vmatprep.subr.mxu0 0.0
  %1469 = vmatpush1.msra.mxu0 0.0
  %1470 = vmatprep.subr.mxu0 0.0
  %1471 = vmatpush1.msra.mxu0 0.0
  %1472 = vmatprep.subr.mxu0 0.0
  %1473 = vmatpush1.msra.mxu0 0.0
  %1474 = vmatprep.subr.mxu0 0.0
  %1475 = vmatpush1.msra.mxu0 0.0
  %1476 = vmatprep.subr.mxu0 0.0
  %1477 = vmatpush1.msra.mxu0 0.0
  %1478 = vmatprep.subr.mxu0 0.0
  %1479 = vmatpush1.msra.mxu0 0.0
  %1480 = vmatprep.subr.mxu0 0.0
  %1481 = vmatpush1.msra.mxu0 0.0
  %1482 = vmatprep.subr.mxu0 0.0
  %1483 = vmatpush1.msra.mxu0 0.0
  %1484 = vmatprep.subr.mxu0 0.0
  %1485 = vmatpush1.msra.mxu0 0.0
  %1486 = vmatprep.subr.mxu0 0.0
  %1487 = vmatpush1.msra.mxu0 0.0
  %1488 = vmatprep.subr.mxu0 0.0
  %1489 = vmatpush1.msra.mxu0 0.0
  %1490 = vmatprep.subr.mxu0 0.0
  %1491 = vmatpush1.msra.mxu0 0.0
  %1492 = vmatprep.subr.mxu0 0.0
  %1493 = vmatpush1.msra.mxu0 %v375
  %1494 = vmatprep.subr.mxu0 0.0
  %1495 = vmatpush1.msra.mxu0 %v370
  %1496 = vmatprep.subr.mxu0 0.0
  %1497 = vmatpush2.msra.mxu0 0.0
  %1498 = vmatprep.subr.mxu0 0.0
  %1499 = vmatpush2.msra.mxu0 0.0
  %1500 = vmatprep.subr.mxu0 0.0
  %1501 = vmatpush2.msra.mxu0 0.0
  %1502 = vmatprep.subr.mxu0 0.0
  %1503 = vmatpush2.msra.mxu0 0.0
  %1504 = vmatprep.subr.mxu0 0.0
  %1505 = vmatpush2.msra.mxu0 0.0
  %1506 = vmatprep.subr.mxu0 0.0
  %1507 = vmatpush2.msra.mxu0 0.0
  %1508 = vmatprep.subr.mxu0 0.0
  %1509 = vmatpush2.msra.mxu0 0.0
  %1510 = vmatprep.subr.mxu0 0.0
  %1511 = vmatpush2.msra.mxu0 0.0
  %1512 = vmatprep.subr.mxu0 0.0
  %1513 = vmatpush2.msra.mxu0 0.0
  %1514 = vmatprep.subr.mxu0 0.0
  %1515 = vmatpush2.msra.mxu0 0.0
  %1516 = vmatprep.subr.mxu0 0.0
  %1517 = vmatpush2.msra.mxu0 0.0
  %1518 = vmatprep.subr.mxu0 0.0
  %1519 = vmatpush2.msra.mxu0 0.0
  %1520 = vmatprep.subr.mxu0 0.0
  %1521 = vmatpush2.msra.mxu0 0.0
  %1522 = vmatprep.subr.mxu0 0.0
  %1523 = vmatpush2.msra.mxu0 0.0
  %1524 = vmatprep.subr.mxu0 0.0
  %1525 = vmatpush2.msra.mxu0 0.0
  %1526 = vmatprep.subr.mxu0 0.0
  %1527 = vmatpush2.msra.mxu0 0.0
  %1528 = vmatprep.mubr.f32.mxu0 0.0
  %1529 = vmatmul.mubr.f32.gmra.mxu0 %v1417
  %v1530 = vpop.f32.mrf.mxu0
  %v1531 = vadd.f32 0.0, %v1530
  %v1532 = vpop.f32.mrf.mxu0
  %1533 = vmatprep.mubr.f32.mxu0 0.0
  %1534 = vmatmul.mubr.f32.gmra.mxu0 %v1420
  %v1535 = vpop.f32.mrf.mxu0
  %v1536 = vadd.f32 0.0, %v1535
  %v1537 = vpop.f32.mrf.mxu0
  %1538 = vmatprep.mubr.f32.mxu0 0.0
  %1539 = vmatmul.mubr.f32.gmra.mxu0 %v1423
  %v1540 = vpop.f32.mrf.mxu0
  %v1541 = vadd.f32 0.0, %v1540
  %v1542 = vpop.f32.mrf.mxu0
  %1543 = vmatprep.mubr.f32.mxu0 0.0
  %1544 = vmatmul.mubr.f32.gmra.mxu0 %v1426
  %v1545 = vpop.f32.mrf.mxu0
  %v1546 = vadd.f32 0.0, %v1545
  %v1547 = vpop.f32.mrf.mxu0
  %1548 = vmatprep.mubr.f32.mxu0 0.0
  %1549 = vmatmul.mubr.f32.gmra.mxu0 %v1429
  %v1550 = vpop.f32.mrf.mxu0
  %v1551 = vadd.f32 0.0, %v1550
  %v1552 = vpop.f32.mrf.mxu0
  %1553 = vmatprep.mubr.f32.mxu0 0.0
  %1554 = vmatmul.mubr.f32.gmra.mxu0 %v1432
  %v1555 = vpop.f32.mrf.mxu0
  %v1556 = vadd.f32 0.0, %v1555
  %v1557 = vpop.f32.mrf.mxu0
  %1558 = vmatprep.mubr.f32.mxu0 0.0
  %1559 = vmatmul.mubr.f32.gmra.mxu0 %v1435
  %v1560 = vpop.f32.mrf.mxu0
  %v1561 = vadd.f32 0.0, %v1560
  %v1562 = vpop.f32.mrf.mxu0
  %1563 = vmatprep.mubr.f32.mxu0 0.0
  %1564 = vmatmul.mubr.f32.gmra.mxu0 %v1438
  %v1565 = vpop.f32.mrf.mxu0
  %v1566 = vadd.f32 0.0, %v1565
  %v1567 = vpop.f32.mrf.mxu0
  %1568 = vmatprep.mubr.f32.mxu0 0.0
  %1569 = vmatmul.mubr.f32.gmra.mxu0 %v1441
  %v1570 = vpop.f32.mrf.mxu0
  %v1571 = vadd.f32 0.0, %v1570
  %v1572 = vpop.f32.mrf.mxu0
  %1573 = vmatprep.mubr.f32.mxu0 0.0
  %1574 = vmatmul.mubr.f32.gmra.mxu0 %v1444
  %v1575 = vpop.f32.mrf.mxu0
  %v1576 = vadd.f32 0.0, %v1575
  %v1577 = vpop.f32.mrf.mxu0
  %1578 = vmatprep.mubr.f32.mxu0 0.0
  %1579 = vmatmul.mubr.f32.gmra.mxu0 %v1447
  %v1580 = vpop.f32.mrf.mxu0
  %v1581 = vadd.f32 0.0, %v1580
  %v1582 = vpop.f32.mrf.mxu0
  %1583 = vmatprep.mubr.f32.mxu0 0.0
  %1584 = vmatmul.mubr.f32.gmra.mxu0 %v1450
  %v1585 = vpop.f32.mrf.mxu0
  %v1586 = vadd.f32 0.0, %v1585
  %v1587 = vpop.f32.mrf.mxu0
  %1588 = vmatprep.mubr.f32.mxu0 0.0
  %1589 = vmatmul.mubr.f32.gmra.mxu0 %v1453
  %v1590 = vpop.f32.mrf.mxu0
  %v1591 = vadd.f32 0.0, %v1590
  %v1592 = vpop.f32.mrf.mxu0
  %1593 = vmatprep.mubr.f32.mxu0 0.0
  %1594 = vmatmul.mubr.f32.gmra.mxu0 %v1456
  %v1595 = vpop.f32.mrf.mxu0
  %v1596 = vadd.f32 0.0, %v1595
  %v1597 = vpop.f32.mrf.mxu0
  %1598 = vmatprep.mubr.f32.mxu0 0.0
  %1599 = vmatmul.mubr.f32.gmra.mxu0 %v1459
  %v1600 = vpop.f32.mrf.mxu0
  %v1601 = vadd.f32 0.0, %v1600
  %v1602 = vpop.f32.mrf.mxu0
  %1603 = vmatprep.mubr.f32.mxu0 0.0
  %1604 = vmatmul.mubr.f32.gmra.mxu0 %v1462
  %v1605 = vpop.f32.mrf.mxu0
  %v1606 = vadd.f32 0.0, %v1605
  %v1607 = vpop.f32.mrf.mxu0
  %1608 = vdwg.mxu0
  %v1609 = vmul.f32 %v1531, %v60
  %v1610 = vmul.f32 %v1536, %v61
  %v1611 = vmul.f32 %v1541, %v62
  %v1612 = vmul.f32 %v1546, %v63
  %v1613 = vmul.f32 %v1551, %v64
  %v1614 = vmul.f32 %v1556, %v65
  %v1615 = vmul.f32 %v1561, %v66
  %v1616 = vmul.f32 %v1566, %v67
  %v1617 = vmul.f32 %v1571, %v68
  %v1618 = vmul.f32 %v1576, %v69
  %v1619 = vmul.f32 %v1581, %v70
  %v1620 = vmul.f32 %v1586, %v71
  %v1621 = vmul.f32 %v1591, %v72
  %v1622 = vmul.f32 %v1596, %v73
  %v1623 = vmul.f32 %v1601, %v74
  %v1624 = vmul.f32 %v1606, %v75
  %v1625 = vadd.f32 %v1609, %v1611
  %v1626 = vadd.f32 %v1610, %v1612
  %v1627 = vadd.f32 %v1625, %v1613
  %v1628 = vadd.f32 %v1626, %v1614
  %v1629 = vadd.f32 %v1627, %v1615
  %v1630 = vadd.f32 %v1628, %v1616
  %v1631 = vadd.f32 %v1629, %v1617
  %v1632 = vadd.f32 %v1630, %v1618
  %v1633 = vadd.f32 %v1631, %v1619
  %v1634 = vadd.f32 %v1632, %v1620
  %v1635 = vadd.f32 %v1633, %v1621
  %v1636 = vadd.f32 %v1634, %v1622
  %v1637 = vadd.f32 %v1635, %v1623
  %v1638 = vadd.f32 %v1636, %v1624
  %v1639 = vmul.f32 %v1007, 0.2617994
  %v1640 = vmul.f32 %v1008, 0.2617994
  %v1641 = vmul.f32 %v1637, 0.2617994
  %v1642 = vmul.f32 %v1638, 0.2617994
  %v1643 = vand.u32 2147483647, %v1639
  %vm1644 = vcmp.le.f32.partialorder %v1643, 0.7853982
  %vm1645 = vcmp.lt.s32.totalorder %v1639, 0
  %v1646 = vand.u32 %v1639, 2139095040
  %v1647 = vshrl.u32 %v1646, 23
  %v1648 = vsub.s32 %v1647, 127
  %v1649 = vand.u32 2147483647, %v1639
  %v1650 = vand.u32 %v1649, 8388607
  %v1651 = vor.u32 %v1650, 8388608
  %v1652 = vsub.s32 0, %v1651
  %v1653 = vadd.s32 %v1648, 1
  %vm1654 = vcmp.gt.s32.totalorder %v1653, 0
  %v1655 = vsel %vm1654, %v1653, 0
  %v1656 = vshrl.u32 %v1655, 5
  %v1657 = vand.u32 %v1655, 31
  %v1658 = vsub.s32 32, %v1657
  %v1659 = vshrl.u32 683565275, %v1658
  %v1660 = vshll.u32 683565275, %v1657
  %v1661 = vshrl.u32 2475754826, %v1658
  %v1662 = vor.u32 %v1660, %v1661
  %v1663 = vshll.u32 2475754826, %v1657
  %v1664 = vshrl.u32 2131351028, %v1658
  %v1665 = vor.u32 %v1663, %v1664
  %v1666 = vshll.u32 2131351028, %v1657
  %v1667 = vshrl.u32 2102212464, %v1658
  %v1668 = vor.u32 %v1666, %v1667
  %v1669 = vshll.u32 2102212464, %v1657
  %v1670 = vshrl.u32 920167782, %v1658
  %v1671 = vor.u32 %v1669, %v1670
  %v1672 = vshll.u32 920167782, %v1657
  %v1673 = vshrl.u32 1326507024, %v1658
  %v1674 = vor.u32 %v1672, %v1673
  %vm1675 = vcmp.lt.s32.totalorder %v1656, 1
  %vm1676 = vcmp.lt.s32.totalorder %v1656, 2
  %vm1677 = vcmp.lt.s32.totalorder %v1656, 3
  %vm1678 = vcmp.lt.s32.totalorder %v1656, 4
  %v1679 = vsel %vm1675, %v1659, %v1662
  %v1680 = vsel %vm1678, %v1668, 2102212464
  %v1681 = vsel %vm1677, %v1665, %v1680
  %v1682 = vsel %vm1676, %v1679, %v1681
  %v1683 = vsel %vm1675, %v1662, %v1665
  %v1684 = vsel %vm1678, %v1671, 920167782
  %v1685 = vsel %vm1677, %v1668, %v1684
  %v1686 = vsel %vm1676, %v1683, %v1685
  %v1687 = vsel %vm1675, %v1665, %v1668
  %v1688 = vsel %vm1678, %v1674, 1326507024
  %v1689 = vsel %vm1677, %v1671, %v1688
  %v1690 = vsel %vm1676, %v1687, %v1689
  %v1691 = vshll.u32 %v1651, 8
  %v1692 = vmul.u32.u64.compose %v1691, %v1690
  %v1693 = vextract.low.u32 %v1692
  %v1694 = vextract.high.u32 %v1692
  %v1695 = vmul.u32.u64.compose %v1691, %v1686
  %v1696 = vextract.low.u32 %v1695
  %v1697 = vextract.high.u32 %v1695
  %v1698 = vmul.u32 %v1691, %v1682
  %v1699 = vadd.s32 %v1694, %v1696
  %vm1700 = vc.u32 %v1694, %v1696
  %v1701 = vadd.s32 %v1697, 1
  %v1702 = vsel %vm1700, %v1701, %v1697
  %v1703 = vadd.s32 %v1698, %v1702
  %v1704 = vadd.s32 %v1703, 536870912
  %v1705 = vshrl.u32 %v1704, 30
  %v1706 = vshll.u32 %v1705, 30
  %v1707 = vsub.s32 %v1703, %v1706
  %vm1708 = vcmp.lt.s32.totalorder %v1707, 0
  %v1709 = vsub.s32 0, %v1707
  %v1710 = vsel %vm1708, %v1709, %v1707
  %v1711 = vclz %v1710
  %v1712 = vsub.s32 %v1711, 2
  %vm1713 = vcmp.gt.s32.totalorder 0, %v1712
  %v1714 = vsel %vm1713, 0, %v1712
  %v1715 = vsub.s32 32, %v1714
  %v1716 = vshll.u32 %v1707, %v1714
  %v1717 = vshrl.u32 %v1699, %v1715
  %v1718 = vor.u32 %v1716, %v1717
  %v1719 = vsub.s32 4294967266, %v1714
  %v1720 = vadd.s32 %v1719, 127
  %v1721 = vshll.u32 %v1720, 23
  %v1722 = vor.u32 4788187, %v1721
  %v1723 = vand.u32 2147483647, %v1722
  %v1725 = vcvt.s32.f32 %v1718
  %v1726 = vmul.f32 %v1725, %v1723
  %v1727 = vxor.u32 %v1726, 2147483648
  %v1728 = vsel %vm1645, %v1727, %v1726
  %v1729 = vsub.s32 4, %v1705
  %v1730 = vsel %vm1645, %v1729, %v1705
  %v1731 = vsel %vm1644, %v1639, %v1728
  %v1732 = vsel %vm1644, 0, %v1730
  %v1733 = vcosq.f32.pop %v1731
  %v1734 = vsinq.f32.pop %v1731
  %vm1735 = vweird.f32 %v1639
  %v1736 = vadd.s32 %v1732, 3
  %v1737 = vand.u32 %v1736, 3
  %vm1738 = vcmp.lt.s32.totalorder %v1737, 2
  %vm1739 = vcmp.eq.s32.totalorder %v1737, 0
  %v1740 = vxor.u32 %v1734, 2147483648
  %v1741 = vsel %vm1739, %v1733, %v1740
  %vm1742 = vcmp.eq.s32.totalorder %v1737, 2
  %v1743 = vxor.u32 %v1733, 2147483648
  %v1744 = vsel %vm1742, %v1743, %v1734
  %v1745 = vsel %vm1738, %v1741, %v1744
  %v1746 = vsel %vm1735, nan, %v1745
  %v1747 = vand.u32 2147483647, %v1640
  %vm1748 = vcmp.le.f32.partialorder %v1747, 0.7853982
  %vm1749 = vcmp.lt.s32.totalorder %v1640, 0
  %v1750 = vand.u32 %v1640, 2139095040
  %v1751 = vshrl.u32 %v1750, 23
  %v1752 = vsub.s32 %v1751, 127
  %v1753 = vand.u32 2147483647, %v1640
  %v1754 = vand.u32 %v1753, 8388607
  %v1755 = vor.u32 %v1754, 8388608
  %v1756 = vsub.s32 0, %v1755
  %v1757 = vadd.s32 %v1752, 1
  %vm1758 = vcmp.gt.s32.totalorder %v1757, 0
  %v1759 = vsel %vm1758, %v1757, 0
  %v1760 = vshrl.u32 %v1759, 5
  %v1761 = vand.u32 %v1759, 31
  %v1762 = vsub.s32 32, %v1761
  %v1763 = vshrl.u32 683565275, %v1762
  %v1764 = vshll.u32 683565275, %v1761
  %v1765 = vshrl.u32 2475754826, %v1762
  %v1766 = vor.u32 %v1764, %v1765
  %v1767 = vshll.u32 2475754826, %v1761
  %v1768 = vshrl.u32 2131351028, %v1762
  %v1769 = vor.u32 %v1767, %v1768
  %v1770 = vshll.u32 2131351028, %v1761
  %v1771 = vshrl.u32 2102212464, %v1762
  %v1772 = vor.u32 %v1770, %v1771
  %v1773 = vshll.u32 2102212464, %v1761
  %v1774 = vshrl.u32 920167782, %v1762
  %v1775 = vor.u32 %v1773, %v1774
  %v1776 = vshll.u32 920167782, %v1761
  %v1777 = vshrl.u32 1326507024, %v1762
  %v1778 = vor.u32 %v1776, %v1777
  %vm1779 = vcmp.lt.s32.totalorder %v1760, 1
  %vm1780 = vcmp.lt.s32.totalorder %v1760, 2
  %vm1781 = vcmp.lt.s32.totalorder %v1760, 3
  %vm1782 = vcmp.lt.s32.totalorder %v1760, 4
  %v1783 = vsel %vm1779, %v1763, %v1766
  %v1784 = vsel %vm1782, %v1772, 2102212464
  %v1785 = vsel %vm1781, %v1769, %v1784
  %v1786 = vsel %vm1780, %v1783, %v1785
  %v1787 = vsel %vm1779, %v1766, %v1769
  %v1788 = vsel %vm1782, %v1775, 920167782
  %v1789 = vsel %vm1781, %v1772, %v1788
  %v1790 = vsel %vm1780, %v1787, %v1789
  %v1791 = vsel %vm1779, %v1769, %v1772
  %v1792 = vsel %vm1782, %v1778, 1326507024
  %v1793 = vsel %vm1781, %v1775, %v1792
  %v1794 = vsel %vm1780, %v1791, %v1793
  %v1795 = vshll.u32 %v1755, 8
  %v1796 = vmul.u32.u64.compose %v1795, %v1794
  %v1797 = vextract.low.u32 %v1796
  %v1798 = vextract.high.u32 %v1796
  %v1799 = vmul.u32.u64.compose %v1795, %v1790
  %v1800 = vextract.low.u32 %v1799
  %v1801 = vextract.high.u32 %v1799
  %v1802 = vmul.u32 %v1795, %v1786
  %v1803 = vadd.s32 %v1798, %v1800
  %vm1804 = vc.u32 %v1798, %v1800
  %v1805 = vadd.s32 %v1801, 1
  %v1806 = vsel %vm1804, %v1805, %v1801
  %v1807 = vadd.s32 %v1802, %v1806
  %v1808 = vadd.s32 %v1807, 536870912
  %v1809 = vshrl.u32 %v1808, 30
  %v1810 = vshll.u32 %v1809, 30
  %v1811 = vsub.s32 %v1807, %v1810
  %vm1812 = vcmp.lt.s32.totalorder %v1811, 0
  %v1813 = vsub.s32 0, %v1811
  %v1814 = vsel %vm1812, %v1813, %v1811
  %v1815 = vclz %v1814
  %v1816 = vsub.s32 %v1815, 2
  %vm1817 = vcmp.gt.s32.totalorder 0, %v1816
  %v1818 = vsel %vm1817, 0, %v1816
  %v1819 = vsub.s32 32, %v1818
  %v1820 = vshll.u32 %v1811, %v1818
  %v1821 = vshrl.u32 %v1803, %v1819
  %v1822 = vor.u32 %v1820, %v1821
  %v1823 = vsub.s32 4294967266, %v1818
  %v1824 = vadd.s32 %v1823, 127
  %v1825 = vshll.u32 %v1824, 23
  %v1826 = vor.u32 4788187, %v1825
  %v1827 = vand.u32 2147483647, %v1826
  %v1829 = vcvt.s32.f32 %v1822
  %v1830 = vmul.f32 %v1829, %v1827
  %v1831 = vxor.u32 %v1830, 2147483648
  %v1832 = vsel %vm1749, %v1831, %v1830
  %v1833 = vsub.s32 4, %v1809
  %v1834 = vsel %vm1749, %v1833, %v1809
  %v1835 = vsel %vm1748, %v1640, %v1832
  %v1836 = vsel %vm1748, 0, %v1834
  %v1837 = vcosq.f32.pop %v1835
  %v1838 = vsinq.f32.pop %v1835
  %vm1839 = vweird.f32 %v1640
  %v1840 = vadd.s32 %v1836, 3
  %v1841 = vand.u32 %v1840, 3
  %vm1842 = vcmp.lt.s32.totalorder %v1841, 2
  %vm1843 = vcmp.eq.s32.totalorder %v1841, 0
  %v1844 = vxor.u32 %v1838, 2147483648
  %v1845 = vsel %vm1843, %v1837, %v1844
  %vm1846 = vcmp.eq.s32.totalorder %v1841, 2
  %v1847 = vxor.u32 %v1837, 2147483648
  %v1848 = vsel %vm1846, %v1847, %v1838
  %v1849 = vsel %vm1842, %v1845, %v1848
  %v1850 = vsel %vm1839, nan, %v1849
  %v1851 = vand.u32 2147483647, %v1641
  %vm1852 = vcmp.le.f32.partialorder %v1851, 0.7853982
  %vm1853 = vcmp.lt.s32.totalorder %v1641, 0
  %v1854 = vand.u32 %v1641, 2139095040
  %v1855 = vshrl.u32 %v1854, 23
  %v1856 = vsub.s32 %v1855, 127
  %v1857 = vand.u32 2147483647, %v1641
  %v1858 = vand.u32 %v1857, 8388607
  %v1859 = vor.u32 %v1858, 8388608
  %v1860 = vsub.s32 0, %v1859
  %v1861 = vadd.s32 %v1856, 1
  %vm1862 = vcmp.gt.s32.totalorder %v1861, 0
  %v1863 = vsel %vm1862, %v1861, 0
  %v1864 = vshrl.u32 %v1863, 5
  %v1865 = vand.u32 %v1863, 31
  %v1866 = vsub.s32 32, %v1865
  %v1867 = vshrl.u32 683565275, %v1866
  %v1868 = vshll.u32 683565275, %v1865
  %v1869 = vshrl.u32 2475754826, %v1866
  %v1870 = vor.u32 %v1868, %v1869
  %v1871 = vshll.u32 2475754826, %v1865
  %v1872 = vshrl.u32 2131351028, %v1866
  %v1873 = vor.u32 %v1871, %v1872
  %v1874 = vshll.u32 2131351028, %v1865
  %v1875 = vshrl.u32 2102212464, %v1866
  %v1876 = vor.u32 %v1874, %v1875
  %v1877 = vshll.u32 2102212464, %v1865
  %v1878 = vshrl.u32 920167782, %v1866
  %v1879 = vor.u32 %v1877, %v1878
  %v1880 = vshll.u32 920167782, %v1865
  %v1881 = vshrl.u32 1326507024, %v1866
  %v1882 = vor.u32 %v1880, %v1881
  %vm1883 = vcmp.lt.s32.totalorder %v1864, 1
  %vm1884 = vcmp.lt.s32.totalorder %v1864, 2
  %vm1885 = vcmp.lt.s32.totalorder %v1864, 3
  %vm1886 = vcmp.lt.s32.totalorder %v1864, 4
  %v1887 = vsel %vm1883, %v1867, %v1870
  %v1888 = vsel %vm1886, %v1876, 2102212464
  %v1889 = vsel %vm1885, %v1873, %v1888
  %v1890 = vsel %vm1884, %v1887, %v1889
  %v1891 = vsel %vm1883, %v1870, %v1873
  %v1892 = vsel %vm1886, %v1879, 920167782
  %v1893 = vsel %vm1885, %v1876, %v1892
  %v1894 = vsel %vm1884, %v1891, %v1893
  %v1895 = vsel %vm1883, %v1873, %v1876
  %v1896 = vsel %vm1886, %v1882, 1326507024
  %v1897 = vsel %vm1885, %v1879, %v1896
  %v1898 = vsel %vm1884, %v1895, %v1897
  %v1899 = vshll.u32 %v1859, 8
  %v1900 = vmul.u32.u64.compose %v1899, %v1898
  %v1901 = vextract.low.u32 %v1900
  %v1902 = vextract.high.u32 %v1900
  %v1903 = vmul.u32.u64.compose %v1899, %v1894
  %v1904 = vextract.low.u32 %v1903
  %v1905 = vextract.high.u32 %v1903
  %v1906 = vmul.u32 %v1899, %v1890
  %v1907 = vadd.s32 %v1902, %v1904
  %vm1908 = vc.u32 %v1902, %v1904
  %v1909 = vadd.s32 %v1905, 1
  %v1910 = vsel %vm1908, %v1909, %v1905
  %v1911 = vadd.s32 %v1906, %v1910
  %v1912 = vadd.s32 %v1911, 536870912
  %v1913 = vshrl.u32 %v1912, 30
  %v1914 = vshll.u32 %v1913, 30
  %v1915 = vsub.s32 %v1911, %v1914
  %vm1916 = vcmp.lt.s32.totalorder %v1915, 0
  %v1917 = vsub.s32 0, %v1915
  %v1918 = vsel %vm1916, %v1917, %v1915
  %v1919 = vclz %v1918
  %v1920 = vsub.s32 %v1919, 2
  %vm1921 = vcmp.gt.s32.totalorder 0, %v1920
  %v1922 = vsel %vm1921, 0, %v1920
  %v1923 = vsub.s32 32, %v1922
  %v1924 = vshll.u32 %v1915, %v1922
  %v1925 = vshrl.u32 %v1907, %v1923
  %v1926 = vor.u32 %v1924, %v1925
  %v1927 = vsub.s32 4294967266, %v1922
  %v1928 = vadd.s32 %v1927, 127
  %v1929 = vshll.u32 %v1928, 23
  %v1930 = vor.u32 4788187, %v1929
  %v1931 = vand.u32 2147483647, %v1930
  %v1933 = vcvt.s32.f32 %v1926
  %v1934 = vmul.f32 %v1933, %v1931
  %v1935 = vxor.u32 %v1934, 2147483648
  %v1936 = vsel %vm1853, %v1935, %v1934
  %v1937 = vsub.s32 4, %v1913
  %v1938 = vsel %vm1853, %v1937, %v1913
  %v1939 = vsel %vm1852, %v1641, %v1936
  %v1940 = vsel %vm1852, 0, %v1938
  %v1941 = vcosq.f32.pop %v1939
  %v1942 = vsinq.f32.pop %v1939
  %vm1943 = vweird.f32 %v1641
  %v1944 = vadd.s32 %v1940, 3
  %v1945 = vand.u32 %v1944, 3
  %vm1946 = vcmp.lt.s32.totalorder %v1945, 2
  %vm1947 = vcmp.eq.s32.totalorder %v1945, 0
  %v1948 = vxor.u32 %v1942, 2147483648
  %v1949 = vsel %vm1947, %v1941, %v1948
  %vm1950 = vcmp.eq.s32.totalorder %v1945, 2
  %v1951 = vxor.u32 %v1941, 2147483648
  %v1952 = vsel %vm1950, %v1951, %v1942
  %v1953 = vsel %vm1946, %v1949, %v1952
  %v1954 = vsel %vm1943, nan, %v1953
  %v1955 = vand.u32 2147483647, %v1642
  %vm1956 = vcmp.le.f32.partialorder %v1955, 0.7853982
  %vm1957 = vcmp.lt.s32.totalorder %v1642, 0
  %v1958 = vand.u32 %v1642, 2139095040
  %v1959 = vshrl.u32 %v1958, 23
  %v1960 = vsub.s32 %v1959, 127
  %v1961 = vand.u32 2147483647, %v1642
  %v1962 = vand.u32 %v1961, 8388607
  %v1963 = vor.u32 %v1962, 8388608
  %v1964 = vsub.s32 0, %v1963
  %v1965 = vadd.s32 %v1960, 1
  %vm1966 = vcmp.gt.s32.totalorder %v1965, 0
  %v1967 = vsel %vm1966, %v1965, 0
  %v1968 = vshrl.u32 %v1967, 5
  %v1969 = vand.u32 %v1967, 31
  %v1970 = vsub.s32 32, %v1969
  %v1971 = vshrl.u32 683565275, %v1970
  %v1972 = vshll.u32 683565275, %v1969
  %v1973 = vshrl.u32 2475754826, %v1970
  %v1974 = vor.u32 %v1972, %v1973
  %v1975 = vshll.u32 2475754826, %v1969
  %v1976 = vshrl.u32 2131351028, %v1970
  %v1977 = vor.u32 %v1975, %v1976
  %v1978 = vshll.u32 2131351028, %v1969
  %v1979 = vshrl.u32 2102212464, %v1970
  %v1980 = vor.u32 %v1978, %v1979
  %v1981 = vshll.u32 2102212464, %v1969
  %v1982 = vshrl.u32 920167782, %v1970
  %v1983 = vor.u32 %v1981, %v1982
  %v1984 = vshll.u32 920167782, %v1969
  %v1985 = vshrl.u32 1326507024, %v1970
  %v1986 = vor.u32 %v1984, %v1985
  %vm1987 = vcmp.lt.s32.totalorder %v1968, 1
  %vm1988 = vcmp.lt.s32.totalorder %v1968, 2
  %vm1989 = vcmp.lt.s32.totalorder %v1968, 3
  %vm1990 = vcmp.lt.s32.totalorder %v1968, 4
  %v1991 = vsel %vm1987, %v1971, %v1974
  %v1992 = vsel %vm1990, %v1980, 2102212464
  %v1993 = vsel %vm1989, %v1977, %v1992
  %v1994 = vsel %vm1988, %v1991, %v1993
  %v1995 = vsel %vm1987, %v1974, %v1977
  %v1996 = vsel %vm1990, %v1983, 920167782
  %v1997 = vsel %vm1989, %v1980, %v1996
  %v1998 = vsel %vm1988, %v1995, %v1997
  %v1999 = vsel %vm1987, %v1977, %v1980
  %v2000 = vsel %vm1990, %v1986, 1326507024
  %v2001 = vsel %vm1989, %v1983, %v2000
  %v2002 = vsel %vm1988, %v1999, %v2001
  %v2003 = vshll.u32 %v1963, 8
  %v2004 = vmul.u32.u64.compose %v2003, %v2002
  %v2005 = vextract.low.u32 %v2004
  %v2006 = vextract.high.u32 %v2004
  %v2007 = vmul.u32.u64.compose %v2003, %v1998
  %v2008 = vextract.low.u32 %v2007
  %v2009 = vextract.high.u32 %v2007
  %v2010 = vmul.u32 %v2003, %v1994
  %v2011 = vadd.s32 %v2006, %v2008
  %vm2012 = vc.u32 %v2006, %v2008
  %v2013 = vadd.s32 %v2009, 1
  %v2014 = vsel %vm2012, %v2013, %v2009
  %v2015 = vadd.s32 %v2010, %v2014
  %v2016 = vadd.s32 %v2015, 536870912
  %v2017 = vshrl.u32 %v2016, 30
  %v2018 = vshll.u32 %v2017, 30
  %v2019 = vsub.s32 %v2015, %v2018
  %vm2020 = vcmp.lt.s32.totalorder %v2019, 0
  %v2021 = vsub.s32 0, %v2019
  %v2022 = vsel %vm2020, %v2021, %v2019
  %v2023 = vclz %v2022
  %v2024 = vsub.s32 %v2023, 2
  %vm2025 = vcmp.gt.s32.totalorder 0, %v2024
  %v2026 = vsel %vm2025, 0, %v2024
  %v2027 = vsub.s32 32, %v2026
  %v2028 = vshll.u32 %v2019, %v2026
  %v2029 = vshrl.u32 %v2011, %v2027
  %v2030 = vor.u32 %v2028, %v2029
  %v2031 = vsub.s32 4294967266, %v2026
  %v2032 = vadd.s32 %v2031, 127
  %v2033 = vshll.u32 %v2032, 23
  %v2034 = vor.u32 4788187, %v2033
  %v2035 = vand.u32 2147483647, %v2034
  %v2037 = vcvt.s32.f32 %v2030
  %v2038 = vmul.f32 %v2037, %v2035
  %v2039 = vxor.u32 %v2038, 2147483648
  %v2040 = vsel %vm1957, %v2039, %v2038
  %v2041 = vsub.s32 4, %v2017
  %v2042 = vsel %vm1957, %v2041, %v2017
  %v2043 = vsel %vm1956, %v1642, %v2040
  %v2044 = vsel %vm1956, 0, %v2042
  %v2045 = vcosq.f32.pop %v2043
  %v2046 = vsinq.f32.pop %v2043
  %vm2047 = vweird.f32 %v1642
  %v2048 = vadd.s32 %v2044, 3
  %v2049 = vand.u32 %v2048, 3
  %vm2050 = vcmp.lt.s32.totalorder %v2049, 2
  %vm2051 = vcmp.eq.s32.totalorder %v2049, 0
  %v2052 = vxor.u32 %v2046, 2147483648
  %v2053 = vsel %vm2051, %v2045, %v2052
  %vm2054 = vcmp.eq.s32.totalorder %v2049, 2
  %v2055 = vxor.u32 %v2045, 2147483648
  %v2056 = vsel %vm2054, %v2055, %v2046
  %v2057 = vsel %vm2050, %v2053, %v2056
  %v2058 = vsel %vm2047, nan, %v2057
  %v2059 = vand.u32 2147483647, %v1639
  %vm2060 = vcmp.le.f32.partialorder %v2059, 0.7853982
  %vm2061 = vcmp.lt.s32.totalorder %v1639, 0
  %v2062 = vand.u32 %v1639, 2139095040
  %v2063 = vshrl.u32 %v2062, 23
  %v2064 = vsub.s32 %v2063, 127
  %v2065 = vand.u32 2147483647, %v1639
  %v2066 = vand.u32 %v2065, 8388607
  %v2067 = vor.u32 %v2066, 8388608
  %v2068 = vsub.s32 0, %v2067
  %v2069 = vadd.s32 %v2064, 1
  %vm2070 = vcmp.gt.s32.totalorder %v2069, 0
  %v2071 = vsel %vm2070, %v2069, 0
  %v2072 = vshrl.u32 %v2071, 5
  %v2073 = vand.u32 %v2071, 31
  %v2074 = vsub.s32 32, %v2073
  %v2075 = vshrl.u32 683565275, %v2074
  %v2076 = vshll.u32 683565275, %v2073
  %v2077 = vshrl.u32 2475754826, %v2074
  %v2078 = vor.u32 %v2076, %v2077
  %v2079 = vshll.u32 2475754826, %v2073
  %v2080 = vshrl.u32 2131351028, %v2074
  %v2081 = vor.u32 %v2079, %v2080
  %v2082 = vshll.u32 2131351028, %v2073
  %v2083 = vshrl.u32 2102212464, %v2074
  %v2084 = vor.u32 %v2082, %v2083
  %v2085 = vshll.u32 2102212464, %v2073
  %v2086 = vshrl.u32 920167782, %v2074
  %v2087 = vor.u32 %v2085, %v2086
  %v2088 = vshll.u32 920167782, %v2073
  %v2089 = vshrl.u32 1326507024, %v2074
  %v2090 = vor.u32 %v2088, %v2089
  %vm2091 = vcmp.lt.s32.totalorder %v2072, 1
  %vm2092 = vcmp.lt.s32.totalorder %v2072, 2
  %vm2093 = vcmp.lt.s32.totalorder %v2072, 3
  %vm2094 = vcmp.lt.s32.totalorder %v2072, 4
  %v2095 = vsel %vm2091, %v2075, %v2078
  %v2096 = vsel %vm2094, %v2084, 2102212464
  %v2097 = vsel %vm2093, %v2081, %v2096
  %v2098 = vsel %vm2092, %v2095, %v2097
  %v2099 = vsel %vm2091, %v2078, %v2081
  %v2100 = vsel %vm2094, %v2087, 920167782
  %v2101 = vsel %vm2093, %v2084, %v2100
  %v2102 = vsel %vm2092, %v2099, %v2101
  %v2103 = vsel %vm2091, %v2081, %v2084
  %v2104 = vsel %vm2094, %v2090, 1326507024
  %v2105 = vsel %vm2093, %v2087, %v2104
  %v2106 = vsel %vm2092, %v2103, %v2105
  %v2107 = vshll.u32 %v2067, 8
  %v2108 = vmul.u32.u64.compose %v2107, %v2106
  %v2109 = vextract.low.u32 %v2108
  %v2110 = vextract.high.u32 %v2108
  %v2111 = vmul.u32.u64.compose %v2107, %v2102
  %v2112 = vextract.low.u32 %v2111
  %v2113 = vextract.high.u32 %v2111
  %v2114 = vmul.u32 %v2107, %v2098
  %v2115 = vadd.s32 %v2110, %v2112
  %vm2116 = vc.u32 %v2110, %v2112
  %v2117 = vadd.s32 %v2113, 1
  %v2118 = vsel %vm2116, %v2117, %v2113
  %v2119 = vadd.s32 %v2114, %v2118
  %v2120 = vadd.s32 %v2119, 536870912
  %v2121 = vshrl.u32 %v2120, 30
  %v2122 = vshll.u32 %v2121, 30
  %v2123 = vsub.s32 %v2119, %v2122
  %vm2124 = vcmp.lt.s32.totalorder %v2123, 0
  %v2125 = vsub.s32 0, %v2123
  %v2126 = vsel %vm2124, %v2125, %v2123
  %v2127 = vclz %v2126
  %v2128 = vsub.s32 %v2127, 2
  %vm2129 = vcmp.gt.s32.totalorder 0, %v2128
  %v2130 = vsel %vm2129, 0, %v2128
  %v2131 = vsub.s32 32, %v2130
  %v2132 = vshll.u32 %v2123, %v2130
  %v2133 = vshrl.u32 %v2115, %v2131
  %v2134 = vor.u32 %v2132, %v2133
  %v2135 = vsub.s32 4294967266, %v2130
  %v2136 = vadd.s32 %v2135, 127
  %v2137 = vshll.u32 %v2136, 23
  %v2138 = vor.u32 4788187, %v2137
  %v2139 = vand.u32 2147483647, %v2138
  %v2141 = vcvt.s32.f32 %v2134
  %v2142 = vmul.f32 %v2141, %v2139
  %v2143 = vxor.u32 %v2142, 2147483648
  %v2144 = vsel %vm2061, %v2143, %v2142
  %v2145 = vsub.s32 4, %v2121
  %v2146 = vsel %vm2061, %v2145, %v2121
  %v2147 = vsel %vm2060, %v1639, %v2144
  %v2148 = vsel %vm2060, 0, %v2146
  %v2149 = vcosq.f32.pop %v2147
  %v2150 = vsinq.f32.pop %v2147
  %vm2151 = vweird.f32 %v1639
  %v2152 = vand.u32 %v2148, 3
  %vm2153 = vcmp.lt.s32.totalorder %v2152, 2
  %vm2154 = vcmp.eq.s32.totalorder %v2152, 0
  %v2155 = vxor.u32 %v2150, 2147483648
  %v2156 = vsel %vm2154, %v2149, %v2155
  %vm2157 = vcmp.eq.s32.totalorder %v2152, 2
  %v2158 = vxor.u32 %v2149, 2147483648
  %v2159 = vsel %vm2157, %v2158, %v2150
  %v2160 = vsel %vm2153, %v2156, %v2159
  %v2161 = vsel %vm2151, nan, %v2160
  %v2162 = vand.u32 2147483647, %v1640
  %vm2163 = vcmp.le.f32.partialorder %v2162, 0.7853982
  %vm2164 = vcmp.lt.s32.totalorder %v1640, 0
  %v2165 = vand.u32 %v1640, 2139095040
  %v2166 = vshrl.u32 %v2165, 23
  %v2167 = vsub.s32 %v2166, 127
  %v2168 = vand.u32 2147483647, %v1640
  %v2169 = vand.u32 %v2168, 8388607
  %v2170 = vor.u32 %v2169, 8388608
  %v2171 = vsub.s32 0, %v2170
  %v2172 = vadd.s32 %v2167, 1
  %vm2173 = vcmp.gt.s32.totalorder %v2172, 0
  %v2174 = vsel %vm2173, %v2172, 0
  %v2175 = vshrl.u32 %v2174, 5
  %v2176 = vand.u32 %v2174, 31
  %v2177 = vsub.s32 32, %v2176
  %v2178 = vshrl.u32 683565275, %v2177
  %v2179 = vshll.u32 683565275, %v2176
  %v2180 = vshrl.u32 2475754826, %v2177
  %v2181 = vor.u32 %v2179, %v2180
  %v2182 = vshll.u32 2475754826, %v2176
  %v2183 = vshrl.u32 2131351028, %v2177
  %v2184 = vor.u32 %v2182, %v2183
  %v2185 = vshll.u32 2131351028, %v2176
  %v2186 = vshrl.u32 2102212464, %v2177
  %v2187 = vor.u32 %v2185, %v2186
  %v2188 = vshll.u32 2102212464, %v2176
  %v2189 = vshrl.u32 920167782, %v2177
  %v2190 = vor.u32 %v2188, %v2189
  %v2191 = vshll.u32 920167782, %v2176
  %v2192 = vshrl.u32 1326507024, %v2177
  %v2193 = vor.u32 %v2191, %v2192
  %vm2194 = vcmp.lt.s32.totalorder %v2175, 1
  %vm2195 = vcmp.lt.s32.totalorder %v2175, 2
  %vm2196 = vcmp.lt.s32.totalorder %v2175, 3
  %vm2197 = vcmp.lt.s32.totalorder %v2175, 4
  %v2198 = vsel %vm2194, %v2178, %v2181
  %v2199 = vsel %vm2197, %v2187, 2102212464
  %v2200 = vsel %vm2196, %v2184, %v2199
  %v2201 = vsel %vm2195, %v2198, %v2200
  %v2202 = vsel %vm2194, %v2181, %v2184
  %v2203 = vsel %vm2197, %v2190, 920167782
  %v2204 = vsel %vm2196, %v2187, %v2203
  %v2205 = vsel %vm2195, %v2202, %v2204
  %v2206 = vsel %vm2194, %v2184, %v2187
  %v2207 = vsel %vm2197, %v2193, 1326507024
  %v2208 = vsel %vm2196, %v2190, %v2207
  %v2209 = vsel %vm2195, %v2206, %v2208
  %v2210 = vshll.u32 %v2170, 8
  %v2211 = vmul.u32.u64.compose %v2210, %v2209
  %v2212 = vextract.low.u32 %v2211
  %v2213 = vextract.high.u32 %v2211
  %v2214 = vmul.u32.u64.compose %v2210, %v2205
  %v2215 = vextract.low.u32 %v2214
  %v2216 = vextract.high.u32 %v2214
  %v2217 = vmul.u32 %v2210, %v2201
  %v2218 = vadd.s32 %v2213, %v2215
  %vm2219 = vc.u32 %v2213, %v2215
  %v2220 = vadd.s32 %v2216, 1
  %v2221 = vsel %vm2219, %v2220, %v2216
  %v2222 = vadd.s32 %v2217, %v2221
  %v2223 = vadd.s32 %v2222, 536870912
  %v2224 = vshrl.u32 %v2223, 30
  %v2225 = vshll.u32 %v2224, 30
  %v2226 = vsub.s32 %v2222, %v2225
  %vm2227 = vcmp.lt.s32.totalorder %v2226, 0
  %v2228 = vsub.s32 0, %v2226
  %v2229 = vsel %vm2227, %v2228, %v2226
  %v2230 = vclz %v2229
  %v2231 = vsub.s32 %v2230, 2
  %vm2232 = vcmp.gt.s32.totalorder 0, %v2231
  %v2233 = vsel %vm2232, 0, %v2231
  %v2234 = vsub.s32 32, %v2233
  %v2235 = vshll.u32 %v2226, %v2233
  %v2236 = vshrl.u32 %v2218, %v2234
  %v2237 = vor.u32 %v2235, %v2236
  %v2238 = vsub.s32 4294967266, %v2233
  %v2239 = vadd.s32 %v2238, 127
  %v2240 = vshll.u32 %v2239, 23
  %v2241 = vor.u32 4788187, %v2240
  %v2242 = vand.u32 2147483647, %v2241
  %v2244 = vcvt.s32.f32 %v2237
  %v2245 = vmul.f32 %v2244, %v2242
  %v2246 = vxor.u32 %v2245, 2147483648
  %v2247 = vsel %vm2164, %v2246, %v2245
  %v2248 = vsub.s32 4, %v2224
  %v2249 = vsel %vm2164, %v2248, %v2224
  %v2250 = vsel %vm2163, %v1640, %v2247
  %v2251 = vsel %vm2163, 0, %v2249
  %v2252 = vcosq.f32.pop %v2250
  %v2253 = vsinq.f32.pop %v2250
  %vm2254 = vweird.f32 %v1640
  %v2255 = vand.u32 %v2251, 3
  %vm2256 = vcmp.lt.s32.totalorder %v2255, 2
  %vm2257 = vcmp.eq.s32.totalorder %v2255, 0
  %v2258 = vxor.u32 %v2253, 2147483648
  %v2259 = vsel %vm2257, %v2252, %v2258
  %vm2260 = vcmp.eq.s32.totalorder %v2255, 2
  %v2261 = vxor.u32 %v2252, 2147483648
  %v2262 = vsel %vm2260, %v2261, %v2253
  %v2263 = vsel %vm2256, %v2259, %v2262
  %v2264 = vsel %vm2254, nan, %v2263
  %v2265 = vand.u32 2147483647, %v1641
  %vm2266 = vcmp.le.f32.partialorder %v2265, 0.7853982
  %vm2267 = vcmp.lt.s32.totalorder %v1641, 0
  %v2268 = vand.u32 %v1641, 2139095040
  %v2269 = vshrl.u32 %v2268, 23
  %v2270 = vsub.s32 %v2269, 127
  %v2271 = vand.u32 2147483647, %v1641
  %v2272 = vand.u32 %v2271, 8388607
  %v2273 = vor.u32 %v2272, 8388608
  %v2274 = vsub.s32 0, %v2273
  %v2275 = vadd.s32 %v2270, 1
  %vm2276 = vcmp.gt.s32.totalorder %v2275, 0
  %v2277 = vsel %vm2276, %v2275, 0
  %v2278 = vshrl.u32 %v2277, 5
  %v2279 = vand.u32 %v2277, 31
  %v2280 = vsub.s32 32, %v2279
  %v2281 = vshrl.u32 683565275, %v2280
  %v2282 = vshll.u32 683565275, %v2279
  %v2283 = vshrl.u32 2475754826, %v2280
  %v2284 = vor.u32 %v2282, %v2283
  %v2285 = vshll.u32 2475754826, %v2279
  %v2286 = vshrl.u32 2131351028, %v2280
  %v2287 = vor.u32 %v2285, %v2286
  %v2288 = vshll.u32 2131351028, %v2279
  %v2289 = vshrl.u32 2102212464, %v2280
  %v2290 = vor.u32 %v2288, %v2289
  %v2291 = vshll.u32 2102212464, %v2279
  %v2292 = vshrl.u32 920167782, %v2280
  %v2293 = vor.u32 %v2291, %v2292
  %v2294 = vshll.u32 920167782, %v2279
  %v2295 = vshrl.u32 1326507024, %v2280
  %v2296 = vor.u32 %v2294, %v2295
  %vm2297 = vcmp.lt.s32.totalorder %v2278, 1
  %vm2298 = vcmp.lt.s32.totalorder %v2278, 2
  %vm2299 = vcmp.lt.s32.totalorder %v2278, 3
  %vm2300 = vcmp.lt.s32.totalorder %v2278, 4
  %v2301 = vsel %vm2297, %v2281, %v2284
  %v2302 = vsel %vm2300, %v2290, 2102212464
  %v2303 = vsel %vm2299, %v2287, %v2302
  %v2304 = vsel %vm2298, %v2301, %v2303
  %v2305 = vsel %vm2297, %v2284, %v2287
  %v2306 = vsel %vm2300, %v2293, 920167782
  %v2307 = vsel %vm2299, %v2290, %v2306
  %v2308 = vsel %vm2298, %v2305, %v2307
  %v2309 = vsel %vm2297, %v2287, %v2290
  %v2310 = vsel %vm2300, %v2296, 1326507024
  %v2311 = vsel %vm2299, %v2293, %v2310
  %v2312 = vsel %vm2298, %v2309, %v2311
  %v2313 = vshll.u32 %v2273, 8
  %v2314 = vmul.u32.u64.compose %v2313, %v2312
  %v2315 = vextract.low.u32 %v2314
  %v2316 = vextract.high.u32 %v2314
  %v2317 = vmul.u32.u64.compose %v2313, %v2308
  %v2318 = vextract.low.u32 %v2317
  %v2319 = vextract.high.u32 %v2317
  %v2320 = vmul.u32 %v2313, %v2304
  %v2321 = vadd.s32 %v2316, %v2318
  %vm2322 = vc.u32 %v2316, %v2318
  %v2323 = vadd.s32 %v2319, 1
  %v2324 = vsel %vm2322, %v2323, %v2319
  %v2325 = vadd.s32 %v2320, %v2324
  %v2326 = vadd.s32 %v2325, 536870912
  %v2327 = vshrl.u32 %v2326, 30
  %v2328 = vshll.u32 %v2327, 30
  %v2329 = vsub.s32 %v2325, %v2328
  %vm2330 = vcmp.lt.s32.totalorder %v2329, 0
  %v2331 = vsub.s32 0, %v2329
  %v2332 = vsel %vm2330, %v2331, %v2329
  %v2333 = vclz %v2332
  %v2334 = vsub.s32 %v2333, 2
  %vm2335 = vcmp.gt.s32.totalorder 0, %v2334
  %v2336 = vsel %vm2335, 0, %v2334
  %v2337 = vsub.s32 32, %v2336
  %v2338 = vshll.u32 %v2329, %v2336
  %v2339 = vshrl.u32 %v2321, %v2337
  %v2340 = vor.u32 %v2338, %v2339
  %v2341 = vsub.s32 4294967266, %v2336
  %v2342 = vadd.s32 %v2341, 127
  %v2343 = vshll.u32 %v2342, 23
  %v2344 = vor.u32 4788187, %v2343
  %v2345 = vand.u32 2147483647, %v2344
  %v2347 = vcvt.s32.f32 %v2340
  %v2348 = vmul.f32 %v2347, %v2345
  %v2349 = vxor.u32 %v2348, 2147483648
  %v2350 = vsel %vm2267, %v2349, %v2348
  %v2351 = vsub.s32 4, %v2327
  %v2352 = vsel %vm2267, %v2351, %v2327
  %v2353 = vsel %vm2266, %v1641, %v2350
  %v2354 = vsel %vm2266, 0, %v2352
  %v2355 = vcosq.f32.pop %v2353
  %v2356 = vsinq.f32.pop %v2353
  %vm2357 = vweird.f32 %v1641
  %v2358 = vand.u32 %v2354, 3
  %vm2359 = vcmp.lt.s32.totalorder %v2358, 2
  %vm2360 = vcmp.eq.s32.totalorder %v2358, 0
  %v2361 = vxor.u32 %v2356, 2147483648
  %v2362 = vsel %vm2360, %v2355, %v2361
  %vm2363 = vcmp.eq.s32.totalorder %v2358, 2
  %v2364 = vxor.u32 %v2355, 2147483648
  %v2365 = vsel %vm2363, %v2364, %v2356
  %v2366 = vsel %vm2359, %v2362, %v2365
  %v2367 = vsel %vm2357, nan, %v2366
  %v2368 = vand.u32 2147483647, %v1642
  %vm2369 = vcmp.le.f32.partialorder %v2368, 0.7853982
  %vm2370 = vcmp.lt.s32.totalorder %v1642, 0
  %v2371 = vand.u32 %v1642, 2139095040
  %v2372 = vshrl.u32 %v2371, 23
  %v2373 = vsub.s32 %v2372, 127
  %v2374 = vand.u32 2147483647, %v1642
  %v2375 = vand.u32 %v2374, 8388607
  %v2376 = vor.u32 %v2375, 8388608
  %v2377 = vsub.s32 0, %v2376
  %v2378 = vadd.s32 %v2373, 1
  %vm2379 = vcmp.gt.s32.totalorder %v2378, 0
  %v2380 = vsel %vm2379, %v2378, 0
  %v2381 = vshrl.u32 %v2380, 5
  %v2382 = vand.u32 %v2380, 31
  %v2383 = vsub.s32 32, %v2382
  %v2384 = vshrl.u32 683565275, %v2383
  %v2385 = vshll.u32 683565275, %v2382
  %v2386 = vshrl.u32 2475754826, %v2383
  %v2387 = vor.u32 %v2385, %v2386
  %v2388 = vshll.u32 2475754826, %v2382
  %v2389 = vshrl.u32 2131351028, %v2383
  %v2390 = vor.u32 %v2388, %v2389
  %v2391 = vshll.u32 2131351028, %v2382
  %v2392 = vshrl.u32 2102212464, %v2383
  %v2393 = vor.u32 %v2391, %v2392
  %v2394 = vshll.u32 2102212464, %v2382
  %v2395 = vshrl.u32 920167782, %v2383
  %v2396 = vor.u32 %v2394, %v2395
  %v2397 = vshll.u32 920167782, %v2382
  %v2398 = vshrl.u32 1326507024, %v2383
  %v2399 = vor.u32 %v2397, %v2398
  %vm2400 = vcmp.lt.s32.totalorder %v2381, 1
  %vm2401 = vcmp.lt.s32.totalorder %v2381, 2
  %vm2402 = vcmp.lt.s32.totalorder %v2381, 3
  %vm2403 = vcmp.lt.s32.totalorder %v2381, 4
  %v2404 = vsel %vm2400, %v2384, %v2387
  %v2405 = vsel %vm2403, %v2393, 2102212464
  %v2406 = vsel %vm2402, %v2390, %v2405
  %v2407 = vsel %vm2401, %v2404, %v2406
  %v2408 = vsel %vm2400, %v2387, %v2390
  %v2409 = vsel %vm2403, %v2396, 920167782
  %v2410 = vsel %vm2402, %v2393, %v2409
  %v2411 = vsel %vm2401, %v2408, %v2410
  %v2412 = vsel %vm2400, %v2390, %v2393
  %v2413 = vsel %vm2403, %v2399, 1326507024
  %v2414 = vsel %vm2402, %v2396, %v2413
  %v2415 = vsel %vm2401, %v2412, %v2414
  %v2416 = vshll.u32 %v2376, 8
  %v2417 = vmul.u32.u64.compose %v2416, %v2415
  %v2418 = vextract.low.u32 %v2417
  %v2419 = vextract.high.u32 %v2417
  %v2420 = vmul.u32.u64.compose %v2416, %v2411
  %v2421 = vextract.low.u32 %v2420
  %v2422 = vextract.high.u32 %v2420
  %v2423 = vmul.u32 %v2416, %v2407
  %v2424 = vadd.s32 %v2419, %v2421
  %vm2425 = vc.u32 %v2419, %v2421
  %v2426 = vadd.s32 %v2422, 1
  %v2427 = vsel %vm2425, %v2426, %v2422
  %v2428 = vadd.s32 %v2423, %v2427
  %v2429 = vadd.s32 %v2428, 536870912
  %v2430 = vshrl.u32 %v2429, 30
  %v2431 = vshll.u32 %v2430, 30
  %v2432 = vsub.s32 %v2428, %v2431
  %vm2433 = vcmp.lt.s32.totalorder %v2432, 0
  %v2434 = vsub.s32 0, %v2432
  %v2435 = vsel %vm2433, %v2434, %v2432
  %v2436 = vclz %v2435
  %v2437 = vsub.s32 %v2436, 2
  %vm2438 = vcmp.gt.s32.totalorder 0, %v2437
  %v2439 = vsel %vm2438, 0, %v2437
  %v2440 = vsub.s32 32, %v2439
  %v2441 = vshll.u32 %v2432, %v2439
  %v2442 = vshrl.u32 %v2424, %v2440
  %v2443 = vor.u32 %v2441, %v2442
  %v2444 = vsub.s32 4294967266, %v2439
  %v2445 = vadd.s32 %v2444, 127
  %v2446 = vshll.u32 %v2445, 23
  %v2447 = vor.u32 4788187, %v2446
  %v2448 = vand.u32 2147483647, %v2447
  %v2450 = vcvt.s32.f32 %v2443
  %v2451 = vmul.f32 %v2450, %v2448
  %v2452 = vxor.u32 %v2451, 2147483648
  %v2453 = vsel %vm2370, %v2452, %v2451
  %v2454 = vsub.s32 4, %v2430
  %v2455 = vsel %vm2370, %v2454, %v2430
  %v2456 = vsel %vm2369, %v1642, %v2453
  %v2457 = vsel %vm2369, 0, %v2455
  %v2458 = vcosq.f32.pop %v2456
  %v2459 = vsinq.f32.pop %v2456
  %vm2460 = vweird.f32 %v1642
  %v2461 = vand.u32 %v2457, 3
  %vm2462 = vcmp.lt.s32.totalorder %v2461, 2
  %vm2463 = vcmp.eq.s32.totalorder %v2461, 0
  %v2464 = vxor.u32 %v2459, 2147483648
  %v2465 = vsel %vm2463, %v2458, %v2464
  %vm2466 = vcmp.eq.s32.totalorder %v2461, 2
  %v2467 = vxor.u32 %v2458, 2147483648
  %v2468 = vsel %vm2466, %v2467, %v2459
  %v2469 = vsel %vm2462, %v2465, %v2468
  %v2470 = vsel %vm2460, nan, %v2469
  %v2471 = vld [vmem:[%s8] sm:$0x1]
  %v2473 = vlaneseq
  %v2474 = vshrl.u32 %v2473, 7
  %v2475 = vsub.s32 0, %v2474
  %v2476 = vrot.slane %v2471, %v2475
  %v2478 = vadd.f32 %v55, %v2476
  %v2479 = vadd.f32 %v56, %v2476
  %v2480 = vadd.f32 %v57, %v2476
  %v2481 = vadd.f32 %v58, %v2476
  %s2482 = scalar_lea.vmem %s7, 1
  %v2483 = vld [vmem:[%s2482] sm:$0x1]
  %v2485 = vlaneseq
  %v2486 = vshrl.u32 %v2485, 7
  %v2487 = vsub.s32 0, %v2486
  %v2488 = vrot.slane %v2483, %v2487
  %v2490 = vmul.f32 %v1746, %v2488
  %v2491 = vmul.f32 %v1850, %v2488
  %v2492 = vmul.f32 %v1954, %v2488
  %v2493 = vmul.f32 %v2058, %v2488
  %v2494 = vadd.f32 %v2478, %v2490
  %v2495 = vadd.f32 %v2479, %v2491
  %v2496 = vadd.f32 %v2480, %v2492
  %v2497 = vadd.f32 %v2481, %v2493
  %s2498 = scalar_lea.vmem %s8, 1
  %v2499 = vld [vmem:[%s2498] sm:$0x1]
  %v2501 = vlaneseq
  %v2502 = vshrl.u32 %v2501, 7
  %v2503 = vsub.s32 0, %v2502
  %v2504 = vrot.slane %v2499, %v2503
  %v2506 = vmul.f32 %v2161, %v2504
  %v2507 = vmul.f32 %v2264, %v2504
  %v2508 = vmul.f32 %v2367, %v2504
  %v2509 = vmul.f32 %v2470, %v2504
  %v2510 = vadd.f32 %v2494, %v2506
  %v2511 = vadd.f32 %v2495, %v2507
  %v2512 = vadd.f32 %v2496, %v2508
  %v2513 = vadd.f32 %v2497, %v2509
  %v2514 = vmul.f32 %v1746, %v2161
  %v2515 = vmul.f32 %v1850, %v2264
  %v2516 = vmul.f32 %v1954, %v2367
  %v2517 = vmul.f32 %v2058, %v2470
  %v2518 = vadd.f32 %v2514, %v2514
  %v2519 = vadd.f32 %v2515, %v2515
  %v2520 = vadd.f32 %v2516, %v2516
  %v2521 = vadd.f32 %v2517, %v2517
  %v2522 = vmul.f32 %v2161, %v2161
  %v2523 = vmul.f32 %v2264, %v2264
  %v2524 = vmul.f32 %v2367, %v2367
  %v2525 = vmul.f32 %v2470, %v2470
  %v2526 = vmul.f32 %v1746, %v1746
  %v2527 = vmul.f32 %v1850, %v1850
  %v2528 = vmul.f32 %v1954, %v1954
  %v2529 = vmul.f32 %v2058, %v2058
  %v2530 = vsub.f32 %v2522, %v2526
  %v2531 = vsub.f32 %v2523, %v2527
  %v2532 = vsub.f32 %v2524, %v2528
  %v2533 = vsub.f32 %v2525, %v2529
  %s2534 = scalar_lea.vmem %s7, 2
  %v2535 = vld [vmem:[%s2534] sm:$0x1]
  %v2537 = vlaneseq
  %v2538 = vshrl.u32 %v2537, 7
  %v2539 = vsub.s32 0, %v2538
  %v2540 = vrot.slane %v2535, %v2539
  %v2542 = vmul.f32 %v2518, %v2540
  %v2543 = vmul.f32 %v2519, %v2540
  %v2544 = vmul.f32 %v2520, %v2540
  %v2545 = vmul.f32 %v2521, %v2540
  %v2546 = vadd.f32 %v2510, %v2542
  %v2547 = vadd.f32 %v2511, %v2543
  %v2548 = vadd.f32 %v2512, %v2544
  %v2549 = vadd.f32 %v2513, %v2545
  %s2550 = scalar_lea.vmem %s8, 2
  %v2551 = vld [vmem:[%s2550] sm:$0x1]
  %v2553 = vlaneseq
  %v2554 = vshrl.u32 %v2553, 7
  %v2555 = vsub.s32 0, %v2554
  %v2556 = vrot.slane %v2551, %v2555
  %v2558 = vmul.f32 %v2530, %v2556
  %v2559 = vmul.f32 %v2531, %v2556
  %v2560 = vmul.f32 %v2532, %v2556
  %v2561 = vmul.f32 %v2533, %v2556
  %v2562 = vadd.f32 %v2546, %v2558
  %v2563 = vadd.f32 %v2547, %v2559
  %v2564 = vadd.f32 %v2548, %v2560
  %v2565 = vadd.f32 %v2549, %v2561
  %v2566 = vmul.f32 %v2518, %v2161
  %v2567 = vmul.f32 %v2519, %v2264
  %v2568 = vmul.f32 %v2520, %v2367
  %v2569 = vmul.f32 %v2521, %v2470
  %v2570 = vmul.f32 %v2530, %v1746
  %v2571 = vmul.f32 %v2531, %v1850
  %v2572 = vmul.f32 %v2532, %v1954
  %v2573 = vmul.f32 %v2533, %v2058
  %v2574 = vadd.f32 %v2566, %v2570
  %v2575 = vadd.f32 %v2567, %v2571
  %v2576 = vadd.f32 %v2568, %v2572
  %v2577 = vadd.f32 %v2569, %v2573
  %v2578 = vmul.f32 %v2530, %v2161
  %v2579 = vmul.f32 %v2531, %v2264
  %v2580 = vmul.f32 %v2532, %v2367
  %v2581 = vmul.f32 %v2533, %v2470
  %v2582 = vmul.f32 %v2518, %v1746
  %v2583 = vmul.f32 %v2519, %v1850
  %v2584 = vmul.f32 %v2520, %v1954
  %v2585 = vmul.f32 %v2521, %v2058
  %v2586 = vsub.f32 %v2578, %v2582
  %v2587 = vsub.f32 %v2579, %v2583
  %v2588 = vsub.f32 %v2580, %v2584
  %v2589 = vsub.f32 %v2581, %v2585
  %s2590 = scalar_lea.vmem %s7, 3
  %v2591 = vld [vmem:[%s2590] sm:$0x1]
  %v2593 = vlaneseq
  %v2594 = vshrl.u32 %v2593, 7
  %v2595 = vsub.s32 0, %v2594
  %v2596 = vrot.slane %v2591, %v2595
  %v2598 = vmul.f32 %v2574, %v2596
  %v2599 = vmul.f32 %v2575, %v2596
  %v2600 = vmul.f32 %v2576, %v2596
  %v2601 = vmul.f32 %v2577, %v2596
  %v2602 = vadd.f32 %v2562, %v2598
  %v2603 = vadd.f32 %v2563, %v2599
  %v2604 = vadd.f32 %v2564, %v2600
  %v2605 = vadd.f32 %v2565, %v2601
  %s2606 = scalar_lea.vmem %s8, 3
  %v2607 = vld [vmem:[%s2606] sm:$0x1]
  %v2609 = vlaneseq
  %v2610 = vshrl.u32 %v2609, 7
  %v2611 = vsub.s32 0, %v2610
  %v2612 = vrot.slane %v2607, %v2611
  %v2614 = vmul.f32 %v2586, %v2612
  %v2615 = vmul.f32 %v2587, %v2612
  %v2616 = vmul.f32 %v2588, %v2612
  %v2617 = vmul.f32 %v2589, %v2612
  %v2618 = vadd.f32 %v2602, %v2614
  %v2619 = vadd.f32 %v2603, %v2615
  %v2620 = vadd.f32 %v2604, %v2616
  %v2621 = vadd.f32 %v2605, %v2617
  %v2622 = vmul.f32 %v2574, %v2161
  %v2623 = vmul.f32 %v2575, %v2264
  %v2624 = vmul.f32 %v2576, %v2367
  %v2625 = vmul.f32 %v2577, %v2470
  %v2626 = vmul.f32 %v2586, %v1746
  %v2627 = vmul.f32 %v2587, %v1850
  %v2628 = vmul.f32 %v2588, %v1954
  %v2629 = vmul.f32 %v2589, %v2058
  %v2630 = vadd.f32 %v2622, %v2626
  %v2631 = vadd.f32 %v2623, %v2627
  %v2632 = vadd.f32 %v2624, %v2628
  %v2633 = vadd.f32 %v2625, %v2629
  %v2634 = vmul.f32 %v2586, %v2161
  %v2635 = vmul.f32 %v2587, %v2264
  %v2636 = vmul.f32 %v2588, %v2367
  %v2637 = vmul.f32 %v2589, %v2470
  %v2638 = vmul.f32 %v2574, %v1746
  %v2639 = vmul.f32 %v2575, %v1850
  %v2640 = vmul.f32 %v2576, %v1954
  %v2641 = vmul.f32 %v2577, %v2058
  %v2642 = vsub.f32 %v2634, %v2638
  %v2643 = vsub.f32 %v2635, %v2639
  %v2644 = vsub.f32 %v2636, %v2640
  %v2645 = vsub.f32 %v2637, %v2641
  %s2646 = scalar_lea.vmem %s7, 4
  %v2647 = vld [vmem:[%s2646] sm:$0x1]
  %v2649 = vlaneseq
  %v2650 = vshrl.u32 %v2649, 7
  %v2651 = vsub.s32 0, %v2650
  %v2652 = vrot.slane %v2647, %v2651
  %v2654 = vmul.f32 %v2630, %v2652
  %v2655 = vmul.f32 %v2631, %v2652
  %v2656 = vmul.f32 %v2632, %v2652
  %v2657 = vmul.f32 %v2633, %v2652
  %v2658 = vadd.f32 %v2618, %v2654
  %v2659 = vadd.f32 %v2619, %v2655
  %v2660 = vadd.f32 %v2620, %v2656
  %v2661 = vadd.f32 %v2621, %v2657
  %s2662 = scalar_lea.vmem %s8, 4
  %v2663 = vld [vmem:[%s2662] sm:$0x1]
  %v2665 = vlaneseq
  %v2666 = vshrl.u32 %v2665, 7
  %v2667 = vsub.s32 0, %v2666
  %v2668 = vrot.slane %v2663, %v2667
  %v2670 = vmul.f32 %v2642, %v2668
  %v2671 = vmul.f32 %v2643, %v2668
  %v2672 = vmul.f32 %v2644, %v2668
  %v2673 = vmul.f32 %v2645, %v2668
  %v2674 = vadd.f32 %v2658, %v2670
  %v2675 = vadd.f32 %v2659, %v2671
  %v2676 = vadd.f32 %v2660, %v2672
  %v2677 = vadd.f32 %v2661, %v2673
  %v2678 = vmul.f32 %v2630, %v2161
  %v2679 = vmul.f32 %v2631, %v2264
  %v2680 = vmul.f32 %v2632, %v2367
  %v2681 = vmul.f32 %v2633, %v2470
  %v2682 = vmul.f32 %v2642, %v1746
  %v2683 = vmul.f32 %v2643, %v1850
  %v2684 = vmul.f32 %v2644, %v1954
  %v2685 = vmul.f32 %v2645, %v2058
  %v2686 = vadd.f32 %v2678, %v2682
  %v2687 = vadd.f32 %v2679, %v2683
  %v2688 = vadd.f32 %v2680, %v2684
  %v2689 = vadd.f32 %v2681, %v2685
  %v2690 = vmul.f32 %v2642, %v2161
  %v2691 = vmul.f32 %v2643, %v2264
  %v2692 = vmul.f32 %v2644, %v2367
  %v2693 = vmul.f32 %v2645, %v2470
  %v2694 = vmul.f32 %v2630, %v1746
  %v2695 = vmul.f32 %v2631, %v1850
  %v2696 = vmul.f32 %v2632, %v1954
  %v2697 = vmul.f32 %v2633, %v2058
  %v2698 = vsub.f32 %v2690, %v2694
  %v2699 = vsub.f32 %v2691, %v2695
  %v2700 = vsub.f32 %v2692, %v2696
  %v2701 = vsub.f32 %v2693, %v2697
  %s2702 = scalar_lea.vmem %s7, 5
  %v2703 = vld [vmem:[%s2702] sm:$0x1]
  %v2705 = vlaneseq
  %v2706 = vshrl.u32 %v2705, 7
  %v2707 = vsub.s32 0, %v2706
  %v2708 = vrot.slane %v2703, %v2707
  %v2710 = vmul.f32 %v2686, %v2708
  %v2711 = vmul.f32 %v2687, %v2708
  %v2712 = vmul.f32 %v2688, %v2708
  %v2713 = vmul.f32 %v2689, %v2708
  %v2714 = vadd.f32 %v2674, %v2710
  %v2715 = vadd.f32 %v2675, %v2711
  %v2716 = vadd.f32 %v2676, %v2712
  %v2717 = vadd.f32 %v2677, %v2713
  %s2718 = scalar_lea.vmem %s8, 5
  %v2719 = vld [vmem:[%s2718] sm:$0x1]
  %v2721 = vlaneseq
  %v2722 = vshrl.u32 %v2721, 7
  %v2723 = vsub.s32 0, %v2722
  %v2724 = vrot.slane %v2719, %v2723
  %v2726 = vmul.f32 %v2698, %v2724
  %v2727 = vmul.f32 %v2699, %v2724
  %v2728 = vmul.f32 %v2700, %v2724
  %v2729 = vmul.f32 %v2701, %v2724
  %v2730 = vadd.f32 %v2714, %v2726
  %v2731 = vadd.f32 %v2715, %v2727
  %v2732 = vadd.f32 %v2716, %v2728
  %v2733 = vadd.f32 %v2717, %v2729
  %v2734 = vmul.f32 %v2686, %v2161
  %v2735 = vmul.f32 %v2687, %v2264
  %v2736 = vmul.f32 %v2688, %v2367
  %v2737 = vmul.f32 %v2689, %v2470
  %v2738 = vmul.f32 %v2698, %v1746
  %v2739 = vmul.f32 %v2699, %v1850
  %v2740 = vmul.f32 %v2700, %v1954
  %v2741 = vmul.f32 %v2701, %v2058
  %v2742 = vadd.f32 %v2734, %v2738
  %v2743 = vadd.f32 %v2735, %v2739
  %v2744 = vadd.f32 %v2736, %v2740
  %v2745 = vadd.f32 %v2737, %v2741
  %v2746 = vmul.f32 %v2698, %v2161
  %v2747 = vmul.f32 %v2699, %v2264
  %v2748 = vmul.f32 %v2700, %v2367
  %v2749 = vmul.f32 %v2701, %v2470
  %v2750 = vmul.f32 %v2686, %v1746
  %v2751 = vmul.f32 %v2687, %v1850
  %v2752 = vmul.f32 %v2688, %v1954
  %v2753 = vmul.f32 %v2689, %v2058
  %v2754 = vsub.f32 %v2746, %v2750
  %v2755 = vsub.f32 %v2747, %v2751
  %v2756 = vsub.f32 %v2748, %v2752
  %v2757 = vsub.f32 %v2749, %v2753
  %s2758 = scalar_lea.vmem %s7, 6
  %v2759 = vld [vmem:[%s2758] sm:$0x1]
  %v2761 = vlaneseq
  %v2762 = vshrl.u32 %v2761, 7
  %v2763 = vsub.s32 0, %v2762
  %v2764 = vrot.slane %v2759, %v2763
  %v2766 = vmul.f32 %v2742, %v2764
  %v2767 = vmul.f32 %v2743, %v2764
  %v2768 = vmul.f32 %v2744, %v2764
  %v2769 = vmul.f32 %v2745, %v2764
  %v2770 = vadd.f32 %v2730, %v2766
  %v2771 = vadd.f32 %v2731, %v2767
  %v2772 = vadd.f32 %v2732, %v2768
  %v2773 = vadd.f32 %v2733, %v2769
  %s2774 = scalar_lea.vmem %s8, 6
  %v2775 = vld [vmem:[%s2774] sm:$0x1]
  %v2777 = vlaneseq
  %v2778 = vshrl.u32 %v2777, 7
  %v2779 = vsub.s32 0, %v2778
  %v2780 = vrot.slane %v2775, %v2779
  %v2782 = vmul.f32 %v2754, %v2780
  %v2783 = vmul.f32 %v2755, %v2780
  %v2784 = vmul.f32 %v2756, %v2780
  %v2785 = vmul.f32 %v2757, %v2780
  %v2786 = vadd.f32 %v2770, %v2782
  %v2787 = vadd.f32 %v2771, %v2783
  %v2788 = vadd.f32 %v2772, %v2784
  %v2789 = vadd.f32 %v2773, %v2785
  %v2790 = vmul.f32 %v2742, %v2161
  %v2791 = vmul.f32 %v2743, %v2264
  %v2792 = vmul.f32 %v2744, %v2367
  %v2793 = vmul.f32 %v2745, %v2470
  %v2794 = vmul.f32 %v2754, %v1746
  %v2795 = vmul.f32 %v2755, %v1850
  %v2796 = vmul.f32 %v2756, %v1954
  %v2797 = vmul.f32 %v2757, %v2058
  %v2798 = vadd.f32 %v2790, %v2794
  %v2799 = vadd.f32 %v2791, %v2795
  %v2800 = vadd.f32 %v2792, %v2796
  %v2801 = vadd.f32 %v2793, %v2797
  %v2802 = vmul.f32 %v2754, %v2161
  %v2803 = vmul.f32 %v2755, %v2264
  %v2804 = vmul.f32 %v2756, %v2367
  %v2805 = vmul.f32 %v2757, %v2470
  %v2806 = vmul.f32 %v2742, %v1746
  %v2807 = vmul.f32 %v2743, %v1850
  %v2808 = vmul.f32 %v2744, %v1954
  %v2809 = vmul.f32 %v2745, %v2058
  %v2810 = vsub.f32 %v2802, %v2806
  %v2811 = vsub.f32 %v2803, %v2807
  %v2812 = vsub.f32 %v2804, %v2808
  %v2813 = vsub.f32 %v2805, %v2809
  %s2814 = scalar_lea.vmem %s7, 7
  %v2815 = vld [vmem:[%s2814] sm:$0x1]
  %v2817 = vlaneseq
  %v2818 = vshrl.u32 %v2817, 7
  %v2819 = vsub.s32 0, %v2818
  %v2820 = vrot.slane %v2815, %v2819
  %v2822 = vmul.f32 %v2798, %v2820
  %v2823 = vmul.f32 %v2799, %v2820
  %v2824 = vmul.f32 %v2800, %v2820
  %v2825 = vmul.f32 %v2801, %v2820
  %v2826 = vadd.f32 %v2786, %v2822
  %v2827 = vadd.f32 %v2787, %v2823
  %v2828 = vadd.f32 %v2788, %v2824
  %v2829 = vadd.f32 %v2789, %v2825
  %s2830 = scalar_lea.vmem %s8, 7
  %v2831 = vld [vmem:[%s2830] sm:$0x1]
  %v2833 = vlaneseq
  %v2834 = vshrl.u32 %v2833, 7
  %v2835 = vsub.s32 0, %v2834
  %v2836 = vrot.slane %v2831, %v2835
  %v2838 = vmul.f32 %v2810, %v2836
  %v2839 = vmul.f32 %v2811, %v2836
  %v2840 = vmul.f32 %v2812, %v2836
  %v2841 = vmul.f32 %v2813, %v2836
  %v2842 = vadd.f32 %v2826, %v2838
  %v2843 = vadd.f32 %v2827, %v2839
  %v2844 = vadd.f32 %v2828, %v2840
  %v2845 = vadd.f32 %v2829, %v2841
  %v2846 = vmul.f32 %v2798, %v2161
  %v2847 = vmul.f32 %v2799, %v2264
  %v2848 = vmul.f32 %v2800, %v2367
  %v2849 = vmul.f32 %v2801, %v2470
  %v2850 = vmul.f32 %v2810, %v1746
  %v2851 = vmul.f32 %v2811, %v1850
  %v2852 = vmul.f32 %v2812, %v1954
  %v2853 = vmul.f32 %v2813, %v2058
  %v2854 = vadd.f32 %v2846, %v2850
  %v2855 = vadd.f32 %v2847, %v2851
  %v2856 = vadd.f32 %v2848, %v2852
  %v2857 = vadd.f32 %v2849, %v2853
  %v2858 = vmul.f32 %v2810, %v2161
  %v2859 = vmul.f32 %v2811, %v2264
  %v2860 = vmul.f32 %v2812, %v2367
  %v2861 = vmul.f32 %v2813, %v2470
  %v2862 = vmul.f32 %v2798, %v1746
  %v2863 = vmul.f32 %v2799, %v1850
  %v2864 = vmul.f32 %v2800, %v1954
  %v2865 = vmul.f32 %v2801, %v2058
  %v2866 = vsub.f32 %v2858, %v2862
  %v2867 = vsub.f32 %v2859, %v2863
  %v2868 = vsub.f32 %v2860, %v2864
  %v2869 = vsub.f32 %v2861, %v2865
  %s2870 = scalar_lea.vmem %s7, 8
  %v2871 = vld [vmem:[%s2870] sm:$0x1]
  %v2873 = vlaneseq
  %v2874 = vshrl.u32 %v2873, 7
  %v2875 = vsub.s32 0, %v2874
  %v2876 = vrot.slane %v2871, %v2875
  %v2878 = vmul.f32 %v2854, %v2876
  %v2879 = vmul.f32 %v2855, %v2876
  %v2880 = vmul.f32 %v2856, %v2876
  %v2881 = vmul.f32 %v2857, %v2876
  %v2882 = vadd.f32 %v2842, %v2878
  %v2883 = vadd.f32 %v2843, %v2879
  %v2884 = vadd.f32 %v2844, %v2880
  %v2885 = vadd.f32 %v2845, %v2881
  %s2886 = scalar_lea.vmem %s8, 8
  %v2887 = vld [vmem:[%s2886] sm:$0x1]
  %v2889 = vlaneseq
  %v2890 = vshrl.u32 %v2889, 7
  %v2891 = vsub.s32 0, %v2890
  %v2892 = vrot.slane %v2887, %v2891
  %v2894 = vmul.f32 %v2866, %v2892
  %v2895 = vmul.f32 %v2867, %v2892
  %v2896 = vmul.f32 %v2868, %v2892
  %v2897 = vmul.f32 %v2869, %v2892
  %v2898 = vadd.f32 %v2882, %v2894
  %v2899 = vadd.f32 %v2883, %v2895
  %v2900 = vadd.f32 %v2884, %v2896
  %v2901 = vadd.f32 %v2885, %v2897
  %v2902 = vmul.f32 %v2854, %v2161
  %v2903 = vmul.f32 %v2855, %v2264
  %v2904 = vmul.f32 %v2856, %v2367
  %v2905 = vmul.f32 %v2857, %v2470
  %v2906 = vmul.f32 %v2866, %v1746
  %v2907 = vmul.f32 %v2867, %v1850
  %v2908 = vmul.f32 %v2868, %v1954
  %v2909 = vmul.f32 %v2869, %v2058
  %v2910 = vadd.f32 %v2902, %v2906
  %v2911 = vadd.f32 %v2903, %v2907
  %v2912 = vadd.f32 %v2904, %v2908
  %v2913 = vadd.f32 %v2905, %v2909
  %v2914 = vmul.f32 %v2866, %v2161
  %v2915 = vmul.f32 %v2867, %v2264
  %v2916 = vmul.f32 %v2868, %v2367
  %v2917 = vmul.f32 %v2869, %v2470
  %v2918 = vmul.f32 %v2854, %v1746
  %v2919 = vmul.f32 %v2855, %v1850
  %v2920 = vmul.f32 %v2856, %v1954
  %v2921 = vmul.f32 %v2857, %v2058
  %v2922 = vsub.f32 %v2914, %v2918
  %v2923 = vsub.f32 %v2915, %v2919
  %v2924 = vsub.f32 %v2916, %v2920
  %v2925 = vsub.f32 %v2917, %v2921
  %s2926 = scalar_lea.vmem %s7, 9
  %v2927 = vld [vmem:[%s2926] sm:$0x1]
  %v2929 = vlaneseq
  %v2930 = vshrl.u32 %v2929, 7
  %v2931 = vsub.s32 0, %v2930
  %v2932 = vrot.slane %v2927, %v2931
  %v2934 = vmul.f32 %v2910, %v2932
  %v2935 = vmul.f32 %v2911, %v2932
  %v2936 = vmul.f32 %v2912, %v2932
  %v2937 = vmul.f32 %v2913, %v2932
  %v2938 = vadd.f32 %v2898, %v2934
  %v2939 = vadd.f32 %v2899, %v2935
  %v2940 = vadd.f32 %v2900, %v2936
  %v2941 = vadd.f32 %v2901, %v2937
  %s2942 = scalar_lea.vmem %s8, 9
  %v2943 = vld [vmem:[%s2942] sm:$0x1]
  %v2945 = vlaneseq
  %v2946 = vshrl.u32 %v2945, 7
  %v2947 = vsub.s32 0, %v2946
  %v2948 = vrot.slane %v2943, %v2947
  %v2950 = vmul.f32 %v2922, %v2948
  %v2951 = vmul.f32 %v2923, %v2948
  %v2952 = vmul.f32 %v2924, %v2948
  %v2953 = vmul.f32 %v2925, %v2948
  %v2954 = vadd.f32 %v2938, %v2950
  %v2955 = vadd.f32 %v2939, %v2951
  %v2956 = vadd.f32 %v2940, %v2952
  %v2957 = vadd.f32 %v2941, %v2953
  %v2958 = vmul.f32 %v2910, %v2161
  %v2959 = vmul.f32 %v2911, %v2264
  %v2960 = vmul.f32 %v2912, %v2367
  %v2961 = vmul.f32 %v2913, %v2470
  %v2962 = vmul.f32 %v2922, %v1746
  %v2963 = vmul.f32 %v2923, %v1850
  %v2964 = vmul.f32 %v2924, %v1954
  %v2965 = vmul.f32 %v2925, %v2058
  %v2966 = vadd.f32 %v2958, %v2962
  %v2967 = vadd.f32 %v2959, %v2963
  %v2968 = vadd.f32 %v2960, %v2964
  %v2969 = vadd.f32 %v2961, %v2965
  %v2970 = vmul.f32 %v2922, %v2161
  %v2971 = vmul.f32 %v2923, %v2264
  %v2972 = vmul.f32 %v2924, %v2367
  %v2973 = vmul.f32 %v2925, %v2470
  %v2974 = vmul.f32 %v2910, %v1746
  %v2975 = vmul.f32 %v2911, %v1850
  %v2976 = vmul.f32 %v2912, %v1954
  %v2977 = vmul.f32 %v2913, %v2058
  %v2978 = vsub.f32 %v2970, %v2974
  %v2979 = vsub.f32 %v2971, %v2975
  %v2980 = vsub.f32 %v2972, %v2976
  %v2981 = vsub.f32 %v2973, %v2977
  %s2982 = scalar_lea.vmem %s7, 10
  %v2983 = vld [vmem:[%s2982] sm:$0x1]
  %v2985 = vlaneseq
  %v2986 = vshrl.u32 %v2985, 7
  %v2987 = vsub.s32 0, %v2986
  %v2988 = vrot.slane %v2983, %v2987
  %v2990 = vmul.f32 %v2966, %v2988
  %v2991 = vmul.f32 %v2967, %v2988
  %v2992 = vmul.f32 %v2968, %v2988
  %v2993 = vmul.f32 %v2969, %v2988
  %v2994 = vadd.f32 %v2954, %v2990
  %v2995 = vadd.f32 %v2955, %v2991
  %v2996 = vadd.f32 %v2956, %v2992
  %v2997 = vadd.f32 %v2957, %v2993
  %s2998 = scalar_lea.vmem %s8, 10
  %v2999 = vld [vmem:[%s2998] sm:$0x1]
  %v3001 = vlaneseq
  %v3002 = vshrl.u32 %v3001, 7
  %v3003 = vsub.s32 0, %v3002
  %v3004 = vrot.slane %v2999, %v3003
  %v3006 = vmul.f32 %v2978, %v3004
  %v3007 = vmul.f32 %v2979, %v3004
  %v3008 = vmul.f32 %v2980, %v3004
  %v3009 = vmul.f32 %v2981, %v3004
  %v3010 = vadd.f32 %v2994, %v3006
  %v3011 = vadd.f32 %v2995, %v3007
  %v3012 = vadd.f32 %v2996, %v3008
  %v3013 = vadd.f32 %v2997, %v3009
  %v3014 = vmul.f32 %v2966, %v2161
  %v3015 = vmul.f32 %v2967, %v2264
  %v3016 = vmul.f32 %v2968, %v2367
  %v3017 = vmul.f32 %v2969, %v2470
  %v3018 = vmul.f32 %v2978, %v1746
  %v3019 = vmul.f32 %v2979, %v1850
  %v3020 = vmul.f32 %v2980, %v1954
  %v3021 = vmul.f32 %v2981, %v2058
  %v3022 = vadd.f32 %v3014, %v3018
  %v3023 = vadd.f32 %v3015, %v3019
  %v3024 = vadd.f32 %v3016, %v3020
  %v3025 = vadd.f32 %v3017, %v3021
  %v3026 = vmul.f32 %v2978, %v2161
  %v3027 = vmul.f32 %v2979, %v2264
  %v3028 = vmul.f32 %v2980, %v2367
  %v3029 = vmul.f32 %v2981, %v2470
  %v3030 = vmul.f32 %v2966, %v1746
  %v3031 = vmul.f32 %v2967, %v1850
  %v3032 = vmul.f32 %v2968, %v1954
  %v3033 = vmul.f32 %v2969, %v2058
  %v3034 = vsub.f32 %v3026, %v3030
  %v3035 = vsub.f32 %v3027, %v3031
  %v3036 = vsub.f32 %v3028, %v3032
  %v3037 = vsub.f32 %v3029, %v3033
  %s3038 = scalar_lea.vmem %s7, 11
  %v3039 = vld [vmem:[%s3038] sm:$0x1]
  %v3041 = vlaneseq
  %v3042 = vshrl.u32 %v3041, 7
  %v3043 = vsub.s32 0, %v3042
  %v3044 = vrot.slane %v3039, %v3043
  %v3046 = vmul.f32 %v3022, %v3044
  %v3047 = vmul.f32 %v3023, %v3044
  %v3048 = vmul.f32 %v3024, %v3044
  %v3049 = vmul.f32 %v3025, %v3044
  %v3050 = vadd.f32 %v3010, %v3046
  %v3051 = vadd.f32 %v3011, %v3047
  %v3052 = vadd.f32 %v3012, %v3048
  %v3053 = vadd.f32 %v3013, %v3049
  %s3054 = scalar_lea.vmem %s8, 11
  %v3055 = vld [vmem:[%s3054] sm:$0x1]
  %v3057 = vlaneseq
  %v3058 = vshrl.u32 %v3057, 7
  %v3059 = vsub.s32 0, %v3058
  %v3060 = vrot.slane %v3055, %v3059
  %v3062 = vmul.f32 %v3034, %v3060
  %v3063 = vmul.f32 %v3035, %v3060
  %v3064 = vmul.f32 %v3036, %v3060
  %v3065 = vmul.f32 %v3037, %v3060
  %v3066 = vadd.f32 %v3050, %v3062
  %v3067 = vadd.f32 %v3051, %v3063
  %v3068 = vadd.f32 %v3052, %v3064
  %v3069 = vadd.f32 %v3053, %v3065
  %v3070 = vld [vmem:[%s10] sm:$0xff]
  %v3071 = vld [vmem:[%s10 + $0x8] sm:$0xff]
  %v3072 = vld [vmem:[%s10 + $0x10] sm:$0xff]
  %v3073 = vld [vmem:[%s10 + $0x18] sm:$0xff]
  %v3074 = vld [vmem:[%s11] sm:$0x1]
  %v3076 = vsel %vm88, %v76, 0
  %3078 = vmatprep.subr.mxu0 0.0
  %3079 = vmatpush1.msra.mxu0 0.0
  %3080 = vmatprep.subr.mxu0 0.0
  %3081 = vmatpush1.msra.mxu0 0.0
  %3082 = vmatprep.subr.mxu0 0.0
  %3083 = vmatpush1.msra.mxu0 0.0
  %3084 = vmatprep.subr.mxu0 0.0
  %3085 = vmatpush1.msra.mxu0 0.0
  %3086 = vmatprep.subr.mxu0 0.0
  %3087 = vmatpush1.msra.mxu0 0.0
  %3088 = vmatprep.subr.mxu0 0.0
  %3089 = vmatpush1.msra.mxu0 0.0
  %3090 = vmatprep.subr.mxu0 0.0
  %3091 = vmatpush1.msra.mxu0 0.0
  %3092 = vmatprep.subr.mxu0 0.0
  %3093 = vmatpush1.msra.mxu0 0.0
  %3094 = vmatprep.subr.mxu0 0.0
  %3095 = vmatpush1.msra.mxu0 0.0
  %3096 = vmatprep.subr.mxu0 0.0
  %3097 = vmatpush1.msra.mxu0 0.0
  %3098 = vmatprep.subr.mxu0 0.0
  %3099 = vmatpush1.msra.mxu0 0.0
  %3100 = vmatprep.subr.mxu0 0.0
  %3101 = vmatpush1.msra.mxu0 0.0
  %3102 = vmatprep.subr.mxu0 0.0
  %3103 = vmatpush1.msra.mxu0 %v3073
  %3104 = vmatprep.subr.mxu0 0.0
  %3105 = vmatpush1.msra.mxu0 %v3072
  %3106 = vmatprep.subr.mxu0 0.0
  %3107 = vmatpush1.msra.mxu0 %v3071
  %3108 = vmatprep.subr.mxu0 0.0
  %3109 = vmatpush1.msra.mxu0 %v3070
  %3110 = vmatprep.subr.mxu0 0.0
  %3111 = vmatpush2.msra.mxu0 0.0
  %3112 = vmatprep.subr.mxu0 0.0
  %3113 = vmatpush2.msra.mxu0 0.0
  %3114 = vmatprep.subr.mxu0 0.0
  %3115 = vmatpush2.msra.mxu0 0.0
  %3116 = vmatprep.subr.mxu0 0.0
  %3117 = vmatpush2.msra.mxu0 0.0
  %3118 = vmatprep.subr.mxu0 0.0
  %3119 = vmatpush2.msra.mxu0 0.0
  %3120 = vmatprep.subr.mxu0 0.0
  %3121 = vmatpush2.msra.mxu0 0.0
  %3122 = vmatprep.subr.mxu0 0.0
  %3123 = vmatpush2.msra.mxu0 0.0
  %3124 = vmatprep.subr.mxu0 0.0
  %3125 = vmatpush2.msra.mxu0 0.0
  %3126 = vmatprep.subr.mxu0 0.0
  %3127 = vmatpush2.msra.mxu0 0.0
  %3128 = vmatprep.subr.mxu0 0.0
  %3129 = vmatpush2.msra.mxu0 0.0
  %3130 = vmatprep.subr.mxu0 0.0
  %3131 = vmatpush2.msra.mxu0 0.0
  %3132 = vmatprep.subr.mxu0 0.0
  %3133 = vmatpush2.msra.mxu0 0.0
  %3134 = vmatprep.subr.mxu0 0.0
  %3135 = vmatpush2.msra.mxu0 0.0
  %3136 = vmatprep.subr.mxu0 0.0
  %3137 = vmatpush2.msra.mxu0 0.0
  %3138 = vmatprep.subr.mxu0 0.0
  %3139 = vmatpush2.msra.mxu0 0.0
  %3140 = vmatprep.subr.mxu0 0.0
  %3141 = vmatpush2.msra.mxu0 0.0
  %3142 = vmatprep.mubr.f32.mxu0 0.0
  %3143 = vmatmul.mubr.f32.gmra.mxu0 %v3076
  %v3144 = vpop.f32.mrf.mxu0
  %v3145 = vadd.f32 %v3074, %v3144
  %v3146 = vpop.f32.mrf.mxu0
  %3147 = vdwg.mxu0
  %v3148 = vlaneseq
  %v3149 = vshrl.u32 %v3148, 7
  %v3150 = vsub.s32 0, %v3149
  %v3151 = vrot.slane %v3145, %v3150
  %v3152 = vmul.f32 %v3066, %v3151
  %v3153 = vmul.f32 %v3067, %v3151
  %v3155 = vsel %vm88, %v59, 0
  %v3158 = vsel %vm88, %v3152, 0
  %v3161 = vsel %vm88, %v3153, 0
  %3163 = vmatprep.subr.mxu0 0.0
  %3164 = vmatpush1.xpose.msra.mxu0 0.0
  %3165 = vmatprep.subr.mxu0 0.0
  %3166 = vmatpush1.xpose.msra.mxu0 0.0
  %3167 = vmatprep.subr.mxu0 0.0
  %3168 = vmatpush1.xpose.msra.mxu0 0.0
  %3169 = vmatprep.subr.mxu0 0.0
  %3170 = vmatpush1.xpose.msra.mxu0 0.0
  %3171 = vmatprep.subr.mxu0 0.0
  %3172 = vmatpush1.xpose.msra.mxu0 0.0
  %3173 = vmatprep.subr.mxu0 0.0
  %3174 = vmatpush1.xpose.msra.mxu0 0.0
  %3175 = vmatprep.subr.mxu0 0.0
  %3176 = vmatpush1.xpose.msra.mxu0 0.0
  %3177 = vmatprep.subr.mxu0 0.0
  %3178 = vmatpush1.xpose.msra.mxu0 0.0
  %3179 = vmatprep.subr.mxu0 0.0
  %3180 = vmatpush1.xpose.msra.mxu0 0.0
  %3181 = vmatprep.subr.mxu0 0.0
  %3182 = vmatpush1.xpose.msra.mxu0 0.0
  %3183 = vmatprep.subr.mxu0 0.0
  %3184 = vmatpush1.xpose.msra.mxu0 0.0
  %3185 = vmatprep.subr.mxu0 0.0
  %3186 = vmatpush1.xpose.msra.mxu0 0.0
  %3187 = vmatprep.subr.mxu0 0.0
  %3188 = vmatpush1.xpose.msra.mxu0 0.0
  %3189 = vmatprep.subr.mxu0 0.0
  %3190 = vmatpush1.xpose.msra.mxu0 0.0
  %3191 = vmatprep.subr.mxu0 0.0
  %3192 = vmatpush1.xpose.msra.mxu0 %v3161
  %3193 = vmatprep.subr.mxu0 0.0
  %3194 = vmatpush1.xpose.msra.mxu0 %v3158
  %3195 = vmatprep.subr.mxu0 0.0
  %3196 = vmatpush2.xpose.msra.mxu0 0.0
  %3197 = vmatprep.subr.mxu0 0.0
  %3198 = vmatpush2.xpose.msra.mxu0 0.0
  %3199 = vmatprep.subr.mxu0 0.0
  %3200 = vmatpush2.xpose.msra.mxu0 0.0
  %3201 = vmatprep.subr.mxu0 0.0
  %3202 = vmatpush2.xpose.msra.mxu0 0.0
  %3203 = vmatprep.subr.mxu0 0.0
  %3204 = vmatpush2.xpose.msra.mxu0 0.0
  %3205 = vmatprep.subr.mxu0 0.0
  %3206 = vmatpush2.xpose.msra.mxu0 0.0
  %3207 = vmatprep.subr.mxu0 0.0
  %3208 = vmatpush2.xpose.msra.mxu0 0.0
  %3209 = vmatprep.subr.mxu0 0.0
  %3210 = vmatpush2.xpose.msra.mxu0 0.0
  %3211 = vmatprep.subr.mxu0 0.0
  %3212 = vmatpush2.xpose.msra.mxu0 0.0
  %3213 = vmatprep.subr.mxu0 0.0
  %3214 = vmatpush2.xpose.msra.mxu0 0.0
  %3215 = vmatprep.subr.mxu0 0.0
  %3216 = vmatpush2.xpose.msra.mxu0 0.0
  %3217 = vmatprep.subr.mxu0 0.0
  %3218 = vmatpush2.xpose.msra.mxu0 0.0
  %3219 = vmatprep.subr.mxu0 0.0
  %3220 = vmatpush2.xpose.msra.mxu0 0.0
  %3221 = vmatprep.subr.mxu0 0.0
  %3222 = vmatpush2.xpose.msra.mxu0 0.0
  %3223 = vmatprep.subr.mxu0 0.0
  %3224 = vmatpush2.xpose.msra.mxu0 0.0
  %3225 = vmatprep.subr.mxu0 0.0
  %3226 = vmatpush2.xpose.msra.mxu0 0.0
  %3227 = vmatprep.mubr.f32.mxu0 0.0
  %3228 = vmatmul.mubr.f32.gmra.mxu0 %v3155
  %v3229 = vpop.f32.mrf.mxu0
  %v3230 = vadd.f32 0.0, %v3229
  %v3231 = vpop.f32.mrf.mxu0
  %3232 = vdwg.mxu0
  %v3233 = vmul.f32 %v3230, 2.0
  %v3234 = vsel %vm609, %v3233, -inf
  %3235 = vmax.xlane.f32.xlu0 %v3234
  %v3236 = vpop.xlane.xlu0 %3235
  %v3237 = vsub.f32 %v3233, %v3236
  %v3238 = vmul.f32 %v3237, 1.442695
  %v3239 = vpow.pop %v3238
  %v3240 = vsel %vm609, %v3239, 0.0
  %3241 = vadd.xlane.f32.xlu0 %v3240
  %v3242 = vpop.xlane.xlu0 %3241
  %v3243 = vrcp.pop %v3242
  %v3244 = vmul.f32 %v3239, %v3243
  %v3246 = vsel %vm609, %v3244, 0
  %3248 = vmatprep.subr.mxu0 0.0
  %3249 = vmatpush1.msra.mxu0 0.0
  %3250 = vmatprep.subr.mxu0 0.0
  %3251 = vmatpush1.msra.mxu0 0.0
  %3252 = vmatprep.subr.mxu0 0.0
  %3253 = vmatpush1.msra.mxu0 0.0
  %3254 = vmatprep.subr.mxu0 0.0
  %3255 = vmatpush1.msra.mxu0 0.0
  %3256 = vmatprep.subr.mxu0 0.0
  %3257 = vmatpush1.msra.mxu0 0.0
  %3258 = vmatprep.subr.mxu0 0.0
  %3259 = vmatpush1.msra.mxu0 0.0
  %3260 = vmatprep.subr.mxu0 0.0
  %3261 = vmatpush1.msra.mxu0 0.0
  %3262 = vmatprep.subr.mxu0 0.0
  %3263 = vmatpush1.msra.mxu0 0.0
  %3264 = vmatprep.subr.mxu0 0.0
  %3265 = vmatpush1.msra.mxu0 0.0
  %3266 = vmatprep.subr.mxu0 0.0
  %3267 = vmatpush1.msra.mxu0 0.0
  %3268 = vmatprep.subr.mxu0 0.0
  %3269 = vmatpush1.msra.mxu0 0.0
  %3270 = vmatprep.subr.mxu0 0.0
  %3271 = vmatpush1.msra.mxu0 0.0
  %3272 = vmatprep.subr.mxu0 0.0
  %3273 = vmatpush1.msra.mxu0 0.0
  %3274 = vmatprep.subr.mxu0 0.0
  %3275 = vmatpush1.msra.mxu0 0.0
  %3276 = vmatprep.subr.mxu0 0.0
  %3277 = vmatpush1.msra.mxu0 %v3067
  %3278 = vmatprep.subr.mxu0 0.0
  %3279 = vmatpush1.msra.mxu0 %v3066
  %3280 = vmatprep.subr.mxu0 0.0
  %3281 = vmatpush2.msra.mxu0 0.0
  %3282 = vmatprep.subr.mxu0 0.0
  %3283 = vmatpush2.msra.mxu0 0.0
  %3284 = vmatprep.subr.mxu0 0.0
  %3285 = vmatpush2.msra.mxu0 0.0
  %3286 = vmatprep.subr.mxu0 0.0
  %3287 = vmatpush2.msra.mxu0 0.0
  %3288 = vmatprep.subr.mxu0 0.0
  %3289 = vmatpush2.msra.mxu0 0.0
  %3290 = vmatprep.subr.mxu0 0.0
  %3291 = vmatpush2.msra.mxu0 0.0
  %3292 = vmatprep.subr.mxu0 0.0
  %3293 = vmatpush2.msra.mxu0 0.0
  %3294 = vmatprep.subr.mxu0 0.0
  %3295 = vmatpush2.msra.mxu0 0.0
  %3296 = vmatprep.subr.mxu0 0.0
  %3297 = vmatpush2.msra.mxu0 0.0
  %3298 = vmatprep.subr.mxu0 0.0
  %3299 = vmatpush2.msra.mxu0 0.0
  %3300 = vmatprep.subr.mxu0 0.0
  %3301 = vmatpush2.msra.mxu0 0.0
  %3302 = vmatprep.subr.mxu0 0.0
  %3303 = vmatpush2.msra.mxu0 0.0
  %3304 = vmatprep.subr.mxu0 0.0
  %3305 = vmatpush2.msra.mxu0 0.0
  %3306 = vmatprep.subr.mxu0 0.0
  %3307 = vmatpush2.msra.mxu0 0.0
  %3308 = vmatprep.subr.mxu0 0.0
  %3309 = vmatpush2.msra.mxu0 0.0
  %3310 = vmatprep.subr.mxu0 0.0
  %3311 = vmatpush2.msra.mxu0 0.0
  %3312 = vmatprep.mubr.f32.mxu0 0.0
  %3313 = vmatmul.mubr.f32.gmra.mxu0 %v3246
  %v3314 = vpop.f32.mrf.mxu0
  %v3315 = vadd.f32 0.0, %v3314
  %v3316 = vpop.f32.mrf.mxu0
  %3317 = vdwg.mxu0
  %v3318 = vmul.f32 %v3315, %v59
  %v3319 = vsel %vm88, %v3318, 0.0
  %v3320 = vrot.slane %v3319, 4
  %v3321 = vadd.f32 %v3319, %v3320
  %v3322 = vrot.slane %v3321, 2
  %v3323 = vadd.f32 %v3321, %v3322
  %v3324 = vrot.slane %v3323, 1
  %v3325 = vadd.f32 %v3323, %v3324
  %v3326 = vadd.f32 %v3325, %v76
  %v3327 = vmul.f32 %v3068, %v3151
  %v3328 = vmul.f32 %v3069, %v3151
  %v3330 = vsel %vm88, %v3327, 0
  %v3333 = vsel %vm88, %v3328, 0
  %3335 = vmatprep.subr.mxu0 0.0
  %3336 = vmatpush1.xpose.msra.mxu0 0.0
  %3337 = vmatprep.subr.mxu0 0.0
  %3338 = vmatpush1.xpose.msra.mxu0 0.0
  %3339 = vmatprep.subr.mxu0 0.0
  %3340 = vmatpush1.xpose.msra.mxu0 0.0
  %3341 = vmatprep.subr.mxu0 0.0
  %3342 = vmatpush1.xpose.msra.mxu0 0.0
  %3343 = vmatprep.subr.mxu0 0.0
  %3344 = vmatpush1.xpose.msra.mxu0 0.0
  %3345 = vmatprep.subr.mxu0 0.0
  %3346 = vmatpush1.xpose.msra.mxu0 0.0
  %3347 = vmatprep.subr.mxu0 0.0
  %3348 = vmatpush1.xpose.msra.mxu0 0.0
  %3349 = vmatprep.subr.mxu0 0.0
  %3350 = vmatpush1.xpose.msra.mxu0 0.0
  %3351 = vmatprep.subr.mxu0 0.0
  %3352 = vmatpush1.xpose.msra.mxu0 0.0
  %3353 = vmatprep.subr.mxu0 0.0
  %3354 = vmatpush1.xpose.msra.mxu0 0.0
  %3355 = vmatprep.subr.mxu0 0.0
  %3356 = vmatpush1.xpose.msra.mxu0 0.0
  %3357 = vmatprep.subr.mxu0 0.0
  %3358 = vmatpush1.xpose.msra.mxu0 0.0
  %3359 = vmatprep.subr.mxu0 0.0
  %3360 = vmatpush1.xpose.msra.mxu0 0.0
  %3361 = vmatprep.subr.mxu0 0.0
  %3362 = vmatpush1.xpose.msra.mxu0 0.0
  %3363 = vmatprep.subr.mxu0 0.0
  %3364 = vmatpush1.xpose.msra.mxu0 %v3333
  %3365 = vmatprep.subr.mxu0 0.0
  %3366 = vmatpush1.xpose.msra.mxu0 %v3330
  %3367 = vmatprep.subr.mxu0 0.0
  %3368 = vmatpush2.xpose.msra.mxu0 0.0
  %3369 = vmatprep.subr.mxu0 0.0
  %3370 = vmatpush2.xpose.msra.mxu0 0.0
  %3371 = vmatprep.subr.mxu0 0.0
  %3372 = vmatpush2.xpose.msra.mxu0 0.0
  %3373 = vmatprep.subr.mxu0 0.0
  %3374 = vmatpush2.xpose.msra.mxu0 0.0
  %3375 = vmatprep.subr.mxu0 0.0
  %3376 = vmatpush2.xpose.msra.mxu0 0.0
  %3377 = vmatprep.subr.mxu0 0.0
  %3378 = vmatpush2.xpose.msra.mxu0 0.0
  %3379 = vmatprep.subr.mxu0 0.0
  %3380 = vmatpush2.xpose.msra.mxu0 0.0
  %3381 = vmatprep.subr.mxu0 0.0
  %3382 = vmatpush2.xpose.msra.mxu0 0.0
  %3383 = vmatprep.subr.mxu0 0.0
  %3384 = vmatpush2.xpose.msra.mxu0 0.0
  %3385 = vmatprep.subr.mxu0 0.0
  %3386 = vmatpush2.xpose.msra.mxu0 0.0
  %3387 = vmatprep.subr.mxu0 0.0
  %3388 = vmatpush2.xpose.msra.mxu0 0.0
  %3389 = vmatprep.subr.mxu0 0.0
  %3390 = vmatpush2.xpose.msra.mxu0 0.0
  %3391 = vmatprep.subr.mxu0 0.0
  %3392 = vmatpush2.xpose.msra.mxu0 0.0
  %3393 = vmatprep.subr.mxu0 0.0
  %3394 = vmatpush2.xpose.msra.mxu0 0.0
  %3395 = vmatprep.subr.mxu0 0.0
  %3396 = vmatpush2.xpose.msra.mxu0 0.0
  %3397 = vmatprep.subr.mxu0 0.0
  %3398 = vmatpush2.xpose.msra.mxu0 0.0
  %3399 = vmatprep.mubr.f32.mxu0 0.0
  %3400 = vmatmul.mubr.f32.gmra.mxu0 %v3155
  %v3401 = vpop.f32.mrf.mxu0
  %v3402 = vadd.f32 0.0, %v3401
  %v3403 = vpop.f32.mrf.mxu0
  %3404 = vdwg.mxu0
  %v3405 = vmul.f32 %v3402, 2.0
  %v3406 = vsel %vm609, %v3405, -inf
  %3407 = vmax.xlane.f32.xlu0 %v3406
  %v3408 = vpop.xlane.xlu0 %3407
  %v3409 = vsub.f32 %v3405, %v3408
  %v3410 = vmul.f32 %v3409, 1.442695
  %v3411 = vpow.pop %v3410
  %v3412 = vsel %vm609, %v3411, 0.0
  %3413 = vadd.xlane.f32.xlu0 %v3412
  %v3414 = vpop.xlane.xlu0 %3413
  %v3415 = vrcp.pop %v3414
  %v3416 = vmul.f32 %v3411, %v3415
  %v3418 = vsel %vm609, %v3416, 0
  %3420 = vmatprep.subr.mxu0 0.0
  %3421 = vmatpush1.msra.mxu0 0.0
  %3422 = vmatprep.subr.mxu0 0.0
  %3423 = vmatpush1.msra.mxu0 0.0
  %3424 = vmatprep.subr.mxu0 0.0
  %3425 = vmatpush1.msra.mxu0 0.0
  %3426 = vmatprep.subr.mxu0 0.0
  %3427 = vmatpush1.msra.mxu0 0.0
  %3428 = vmatprep.subr.mxu0 0.0
  %3429 = vmatpush1.msra.mxu0 0.0
  %3430 = vmatprep.subr.mxu0 0.0
  %3431 = vmatpush1.msra.mxu0 0.0
  %3432 = vmatprep.subr.mxu0 0.0
  %3433 = vmatpush1.msra.mxu0 0.0
  %3434 = vmatprep.subr.mxu0 0.0
  %3435 = vmatpush1.msra.mxu0 0.0
  %3436 = vmatprep.subr.mxu0 0.0
  %3437 = vmatpush1.msra.mxu0 0.0
  %3438 = vmatprep.subr.mxu0 0.0
  %3439 = vmatpush1.msra.mxu0 0.0
  %3440 = vmatprep.subr.mxu0 0.0
  %3441 = vmatpush1.msra.mxu0 0.0
  %3442 = vmatprep.subr.mxu0 0.0
  %3443 = vmatpush1.msra.mxu0 0.0
  %3444 = vmatprep.subr.mxu0 0.0
  %3445 = vmatpush1.msra.mxu0 0.0
  %3446 = vmatprep.subr.mxu0 0.0
  %3447 = vmatpush1.msra.mxu0 0.0
  %3448 = vmatprep.subr.mxu0 0.0
  %3449 = vmatpush1.msra.mxu0 %v3069
  %3450 = vmatprep.subr.mxu0 0.0
  %3451 = vmatpush1.msra.mxu0 %v3068
  %3452 = vmatprep.subr.mxu0 0.0
  %3453 = vmatpush2.msra.mxu0 0.0
  %3454 = vmatprep.subr.mxu0 0.0
  %3455 = vmatpush2.msra.mxu0 0.0
  %3456 = vmatprep.subr.mxu0 0.0
  %3457 = vmatpush2.msra.mxu0 0.0
  %3458 = vmatprep.subr.mxu0 0.0
  %3459 = vmatpush2.msra.mxu0 0.0
  %3460 = vmatprep.subr.mxu0 0.0
  %3461 = vmatpush2.msra.mxu0 0.0
  %3462 = vmatprep.subr.mxu0 0.0
  %3463 = vmatpush2.msra.mxu0 0.0
  %3464 = vmatprep.subr.mxu0 0.0
  %3465 = vmatpush2.msra.mxu0 0.0
  %3466 = vmatprep.subr.mxu0 0.0
  %3467 = vmatpush2.msra.mxu0 0.0
  %3468 = vmatprep.subr.mxu0 0.0
  %3469 = vmatpush2.msra.mxu0 0.0
  %3470 = vmatprep.subr.mxu0 0.0
  %3471 = vmatpush2.msra.mxu0 0.0
  %3472 = vmatprep.subr.mxu0 0.0
  %3473 = vmatpush2.msra.mxu0 0.0
  %3474 = vmatprep.subr.mxu0 0.0
  %3475 = vmatpush2.msra.mxu0 0.0
  %3476 = vmatprep.subr.mxu0 0.0
  %3477 = vmatpush2.msra.mxu0 0.0
  %3478 = vmatprep.subr.mxu0 0.0
  %3479 = vmatpush2.msra.mxu0 0.0
  %3480 = vmatprep.subr.mxu0 0.0
  %3481 = vmatpush2.msra.mxu0 0.0
  %3482 = vmatprep.subr.mxu0 0.0
  %3483 = vmatpush2.msra.mxu0 0.0
  %3484 = vmatprep.mubr.f32.mxu0 0.0
  %3485 = vmatmul.mubr.f32.gmra.mxu0 %v3418
  %v3486 = vpop.f32.mrf.mxu0
  %v3487 = vadd.f32 0.0, %v3486
  %v3488 = vpop.f32.mrf.mxu0
  %3489 = vdwg.mxu0
  %v3490 = vmul.f32 %v3487, %v59
  %v3491 = vsel %vm88, %v3490, 0.0
  %v3492 = vrot.slane %v3491, 4
  %v3493 = vadd.f32 %v3491, %v3492
  %v3494 = vrot.slane %v3493, 2
  %v3495 = vadd.f32 %v3493, %v3494
  %v3496 = vrot.slane %v3495, 1
  %v3497 = vadd.f32 %v3495, %v3496
  %v3498 = vadd.f32 %v3497, %v76
  %v3500 = vrot.slane %v3498, 7
  %vm3502 = vcmask 1040384
  %v3503 = vsel %vm3502, %v3326, %v3500
  %vm3504 = vcmask 254976
  %3505 = vst.msk [vmem:[%s16] sm:$0x3] %vm3504, %v3503
  %v3506 = vld [vmem:[%s14] sm:$0xff]
  %v3507 = vld [vmem:[%s14 + $0x8] sm:$0xff]
  %v3508 = vld [vmem:[%s14 + $0x10] sm:$0xff]
  %v3509 = vld [vmem:[%s14 + $0x18] sm:$0xff]
  %v3511 = vsel %vm88, %v3503, 0
  %3513 = vmatprep.subr.mxu0 0.0
  %3514 = vmatpush1.msra.mxu0 0.0
  %3515 = vmatprep.subr.mxu0 0.0
  %3516 = vmatpush1.msra.mxu0 0.0
  %3517 = vmatprep.subr.mxu0 0.0
  %3518 = vmatpush1.msra.mxu0 0.0
  %3519 = vmatprep.subr.mxu0 0.0
  %3520 = vmatpush1.msra.mxu0 0.0
  %3521 = vmatprep.subr.mxu0 0.0
  %3522 = vmatpush1.msra.mxu0 0.0
  %3523 = vmatprep.subr.mxu0 0.0
  %3524 = vmatpush1.msra.mxu0 0.0
  %3525 = vmatprep.subr.mxu0 0.0
  %3526 = vmatpush1.msra.mxu0 0.0
  %3527 = vmatprep.subr.mxu0 0.0
  %3528 = vmatpush1.msra.mxu0 0.0
  %3529 = vmatprep.subr.mxu0 0.0
  %3530 = vmatpush1.msra.mxu0 0.0
  %3531 = vmatprep.subr.mxu0 0.0
  %3532 = vmatpush1.msra.mxu0 0.0
  %3533 = vmatprep.subr.mxu0 0.0
  %3534 = vmatpush1.msra.mxu0 0.0
  %3535 = vmatprep.subr.mxu0 0.0
  %3536 = vmatpush1.msra.mxu0 0.0
  %3537 = vmatprep.subr.mxu0 0.0
  %v3538 = vand.u32 %v3509, 4294901760
  %3539 = vmatpush1.msra.mxu0 %v3538
  %3540 = vmatprep.subr.mxu0 0.0
  %v3541 = vand.u32 %v3508, 4294901760
  %3542 = vmatpush1.msra.mxu0 %v3541
  %3543 = vmatprep.subr.mxu0 0.0
  %v3544 = vand.u32 %v3507, 4294901760
  %3545 = vmatpush1.msra.mxu0 %v3544
  %3546 = vmatprep.subr.mxu0 0.0
  %v3547 = vand.u32 %v3506, 4294901760
  %3548 = vmatpush1.msra.mxu0 %v3547
  %3549 = vmatprep.subr.mxu0 0.0
  %3550 = vmatpush2.msra.mxu0 0.0
  %3551 = vmatprep.subr.mxu0 0.0
  %3552 = vmatpush2.msra.mxu0 0.0
  %3553 = vmatprep.subr.mxu0 0.0
  %3554 = vmatpush2.msra.mxu0 0.0
  %3555 = vmatprep.subr.mxu0 0.0
  %3556 = vmatpush2.msra.mxu0 0.0
  %3557 = vmatprep.subr.mxu0 0.0
  %3558 = vmatpush2.msra.mxu0 0.0
  %3559 = vmatprep.subr.mxu0 0.0
  %3560 = vmatpush2.msra.mxu0 0.0
  %3561 = vmatprep.subr.mxu0 0.0
  %3562 = vmatpush2.msra.mxu0 0.0
  %3563 = vmatprep.subr.mxu0 0.0
  %3564 = vmatpush2.msra.mxu0 0.0
  %3565 = vmatprep.subr.mxu0 0.0
  %3566 = vmatpush2.msra.mxu0 0.0
  %3567 = vmatprep.subr.mxu0 0.0
  %3568 = vmatpush2.msra.mxu0 0.0
  %3569 = vmatprep.subr.mxu0 0.0
  %3570 = vmatpush2.msra.mxu0 0.0
  %3571 = vmatprep.subr.mxu0 0.0
  %3572 = vmatpush2.msra.mxu0 0.0
  %3573 = vmatprep.subr.mxu0 0.0
  %3574 = vmatpush2.msra.mxu0 0.0
  %3575 = vmatprep.subr.mxu0 0.0
  %3576 = vmatpush2.msra.mxu0 0.0
  %3577 = vmatprep.subr.mxu0 0.0
  %3578 = vmatpush2.msra.mxu0 0.0
  %3579 = vmatprep.subr.mxu0 0.0
  %3580 = vmatpush2.msra.mxu0 0.0
  %3581 = vmatprep.mubr.f32.mxu0 0.0
  %v3582 = vand.u32 %v3511, 4294901760
  %v3583 = vsub.f32 %v3511, %v3582
  %v3584 = vand.u32 %v3583, 4294901760
  %v3585 = vsub.f32 %v3583, %v3584
  %v3586 = vand.u32 %v3585, 4294901760
  %3587 = vmatmul.mubr.f32.gmra.mxu0 %v3586
  %v3588 = vpop.f32.mrf.mxu0
  %v3589 = vadd.f32 0.0, %v3588
  %v3590 = vpop.f32.mrf.mxu0
  %3591 = vdwg.mxu0
  %3592 = vmatprep.subr.mxu0 0.0
  %3593 = vmatpush1.msra.mxu0 0.0
  %3594 = vmatprep.subr.mxu0 0.0
  %3595 = vmatpush1.msra.mxu0 0.0
  %3596 = vmatprep.subr.mxu0 0.0
  %3597 = vmatpush1.msra.mxu0 0.0
  %3598 = vmatprep.subr.mxu0 0.0
  %3599 = vmatpush1.msra.mxu0 0.0
  %3600 = vmatprep.subr.mxu0 0.0
  %3601 = vmatpush1.msra.mxu0 0.0
  %3602 = vmatprep.subr.mxu0 0.0
  %3603 = vmatpush1.msra.mxu0 0.0
  %3604 = vmatprep.subr.mxu0 0.0
  %3605 = vmatpush1.msra.mxu0 0.0
  %3606 = vmatprep.subr.mxu0 0.0
  %3607 = vmatpush1.msra.mxu0 0.0
  %3608 = vmatprep.subr.mxu0 0.0
  %3609 = vmatpush1.msra.mxu0 0.0
  %3610 = vmatprep.subr.mxu0 0.0
  %3611 = vmatpush1.msra.mxu0 0.0
  %3612 = vmatprep.subr.mxu0 0.0
  %3613 = vmatpush1.msra.mxu0 0.0
  %3614 = vmatprep.subr.mxu0 0.0
  %3615 = vmatpush1.msra.mxu0 0.0
  %3616 = vmatprep.subr.mxu0 0.0
  %v3617 = vand.u32 %v3509, 4294901760
  %v3618 = vsub.f32 %v3509, %v3617
  %v3619 = vand.u32 %v3618, 4294901760
  %v3620 = vsub.f32 %v3618, %v3619
  %v3621 = vand.u32 %v3620, 4294901760
  %3622 = vmatpush1.msra.mxu0 %v3621
  %3623 = vmatprep.subr.mxu0 0.0
  %v3624 = vand.u32 %v3508, 4294901760
  %v3625 = vsub.f32 %v3508, %v3624
  %v3626 = vand.u32 %v3625, 4294901760
  %v3627 = vsub.f32 %v3625, %v3626
  %v3628 = vand.u32 %v3627, 4294901760
  %3629 = vmatpush1.msra.mxu0 %v3628
  %3630 = vmatprep.subr.mxu0 0.0
  %v3631 = vand.u32 %v3507, 4294901760
  %v3632 = vsub.f32 %v3507, %v3631
  %v3633 = vand.u32 %v3632, 4294901760
  %v3634 = vsub.f32 %v3632, %v3633
  %v3635 = vand.u32 %v3634, 4294901760
  %3636 = vmatpush1.msra.mxu0 %v3635
  %3637 = vmatprep.subr.mxu0 0.0
  %v3638 = vand.u32 %v3506, 4294901760
  %v3639 = vsub.f32 %v3506, %v3638
  %v3640 = vand.u32 %v3639, 4294901760
  %v3641 = vsub.f32 %v3639, %v3640
  %v3642 = vand.u32 %v3641, 4294901760
  %3643 = vmatpush1.msra.mxu0 %v3642
  %3644 = vmatprep.subr.mxu0 0.0
  %3645 = vmatpush2.msra.mxu0 0.0
  %3646 = vmatprep.subr.mxu0 0.0
  %3647 = vmatpush2.msra.mxu0 0.0
  %3648 = vmatprep.subr.mxu0 0.0
  %3649 = vmatpush2.msra.mxu0 0.0
  %3650 = vmatprep.subr.mxu0 0.0
  %3651 = vmatpush2.msra.mxu0 0.0
  %3652 = vmatprep.subr.mxu0 0.0
  %3653 = vmatpush2.msra.mxu0 0.0
  %3654 = vmatprep.subr.mxu0 0.0
  %3655 = vmatpush2.msra.mxu0 0.0
  %3656 = vmatprep.subr.mxu0 0.0
  %3657 = vmatpush2.msra.mxu0 0.0
  %3658 = vmatprep.subr.mxu0 0.0
  %3659 = vmatpush2.msra.mxu0 0.0
  %3660 = vmatprep.subr.mxu0 0.0
  %3661 = vmatpush2.msra.mxu0 0.0
  %3662 = vmatprep.subr.mxu0 0.0
  %3663 = vmatpush2.msra.mxu0 0.0
  %3664 = vmatprep.subr.mxu0 0.0
  %3665 = vmatpush2.msra.mxu0 0.0
  %3666 = vmatprep.subr.mxu0 0.0
  %3667 = vmatpush2.msra.mxu0 0.0
  %3668 = vmatprep.subr.mxu0 0.0
  %3669 = vmatpush2.msra.mxu0 0.0
  %3670 = vmatprep.subr.mxu0 0.0
  %3671 = vmatpush2.msra.mxu0 0.0
  %3672 = vmatprep.subr.mxu0 0.0
  %3673 = vmatpush2.msra.mxu0 0.0
  %3674 = vmatprep.subr.mxu0 0.0
  %3675 = vmatpush2.msra.mxu0 0.0
  %3676 = vmatprep.mubr.f32.mxu0 0.0
  %v3677 = vand.u32 %v3511, 4294901760
  %3678 = vmatmul.mubr.f32.gmra.mxu0 %v3677
  %v3679 = vpop.f32.mrf.mxu0
  %v3680 = vadd.f32 %v3589, %v3679
  %v3681 = vpop.f32.mrf.mxu0
  %3682 = vdwg.mxu0
  %3683 = vmatprep.subr.mxu0 0.0
  %3684 = vmatpush1.msra.mxu0 0.0
  %3685 = vmatprep.subr.mxu0 0.0
  %3686 = vmatpush1.msra.mxu0 0.0
  %3687 = vmatprep.subr.mxu0 0.0
  %3688 = vmatpush1.msra.mxu0 0.0
  %3689 = vmatprep.subr.mxu0 0.0
  %3690 = vmatpush1.msra.mxu0 0.0
  %3691 = vmatprep.subr.mxu0 0.0
  %3692 = vmatpush1.msra.mxu0 0.0
  %3693 = vmatprep.subr.mxu0 0.0
  %3694 = vmatpush1.msra.mxu0 0.0
  %3695 = vmatprep.subr.mxu0 0.0
  %3696 = vmatpush1.msra.mxu0 0.0
  %3697 = vmatprep.subr.mxu0 0.0
  %3698 = vmatpush1.msra.mxu0 0.0
  %3699 = vmatprep.subr.mxu0 0.0
  %3700 = vmatpush1.msra.mxu0 0.0
  %3701 = vmatprep.subr.mxu0 0.0
  %3702 = vmatpush1.msra.mxu0 0.0
  %3703 = vmatprep.subr.mxu0 0.0
  %3704 = vmatpush1.msra.mxu0 0.0
  %3705 = vmatprep.subr.mxu0 0.0
  %3706 = vmatpush1.msra.mxu0 0.0
  %3707 = vmatprep.subr.mxu0 0.0
  %v3708 = vand.u32 %v3509, 4294901760
  %v3709 = vsub.f32 %v3509, %v3708
  %3710 = vmatpush1.msra.mxu0 %v3709
  %3711 = vmatprep.subr.mxu0 0.0
  %v3712 = vand.u32 %v3508, 4294901760
  %v3713 = vsub.f32 %v3508, %v3712
  %3714 = vmatpush1.msra.mxu0 %v3713
  %3715 = vmatprep.subr.mxu0 0.0
  %v3716 = vand.u32 %v3507, 4294901760
  %v3717 = vsub.f32 %v3507, %v3716
  %3718 = vmatpush1.msra.mxu0 %v3717
  %3719 = vmatprep.subr.mxu0 0.0
  %v3720 = vand.u32 %v3506, 4294901760
  %v3721 = vsub.f32 %v3506, %v3720
  %3722 = vmatpush1.msra.mxu0 %v3721
  %3723 = vmatprep.subr.mxu0 0.0
  %3724 = vmatpush2.msra.mxu0 0.0
  %3725 = vmatprep.subr.mxu0 0.0
  %3726 = vmatpush2.msra.mxu0 0.0
  %3727 = vmatprep.subr.mxu0 0.0
  %3728 = vmatpush2.msra.mxu0 0.0
  %3729 = vmatprep.subr.mxu0 0.0
  %3730 = vmatpush2.msra.mxu0 0.0
  %3731 = vmatprep.subr.mxu0 0.0
  %3732 = vmatpush2.msra.mxu0 0.0
  %3733 = vmatprep.subr.mxu0 0.0
  %3734 = vmatpush2.msra.mxu0 0.0
  %3735 = vmatprep.subr.mxu0 0.0
  %3736 = vmatpush2.msra.mxu0 0.0
  %3737 = vmatprep.subr.mxu0 0.0
  %3738 = vmatpush2.msra.mxu0 0.0
  %3739 = vmatprep.subr.mxu0 0.0
  %3740 = vmatpush2.msra.mxu0 0.0
  %3741 = vmatprep.subr.mxu0 0.0
  %3742 = vmatpush2.msra.mxu0 0.0
  %3743 = vmatprep.subr.mxu0 0.0
  %3744 = vmatpush2.msra.mxu0 0.0
  %3745 = vmatprep.subr.mxu0 0.0
  %3746 = vmatpush2.msra.mxu0 0.0
  %3747 = vmatprep.subr.mxu0 0.0
  %3748 = vmatpush2.msra.mxu0 0.0
  %3749 = vmatprep.subr.mxu0 0.0
  %3750 = vmatpush2.msra.mxu0 0.0
  %3751 = vmatprep.subr.mxu0 0.0
  %3752 = vmatpush2.msra.mxu0 0.0
  %3753 = vmatprep.subr.mxu0 0.0
  %3754 = vmatpush2.msra.mxu0 0.0
  %3755 = vmatprep.mubr.f32.mxu0 0.0
  %v3756 = vand.u32 %v3511, 4294901760
  %v3757 = vsub.f32 %v3511, %v3756
  %3758 = vmatmul.mubr.f32.gmra.mxu0 %v3757
  %v3759 = vpop.f32.mrf.mxu0
  %v3760 = vadd.f32 %v3680, %v3759
  %v3761 = vpop.f32.mrf.mxu0
  %3762 = vdwg.mxu0
  %3763 = vmatprep.subr.mxu0 0.0
  %3764 = vmatpush1.msra.mxu0 0.0
  %3765 = vmatprep.subr.mxu0 0.0
  %3766 = vmatpush1.msra.mxu0 0.0
  %3767 = vmatprep.subr.mxu0 0.0
  %3768 = vmatpush1.msra.mxu0 0.0
  %3769 = vmatprep.subr.mxu0 0.0
  %3770 = vmatpush1.msra.mxu0 0.0
  %3771 = vmatprep.subr.mxu0 0.0
  %3772 = vmatpush1.msra.mxu0 0.0
  %3773 = vmatprep.subr.mxu0 0.0
  %3774 = vmatpush1.msra.mxu0 0.0
  %3775 = vmatprep.subr.mxu0 0.0
  %3776 = vmatpush1.msra.mxu0 0.0
  %3777 = vmatprep.subr.mxu0 0.0
  %3778 = vmatpush1.msra.mxu0 0.0
  %3779 = vmatprep.subr.mxu0 0.0
  %3780 = vmatpush1.msra.mxu0 0.0
  %3781 = vmatprep.subr.mxu0 0.0
  %3782 = vmatpush1.msra.mxu0 0.0
  %3783 = vmatprep.subr.mxu0 0.0
  %3784 = vmatpush1.msra.mxu0 0.0
  %3785 = vmatprep.subr.mxu0 0.0
  %3786 = vmatpush1.msra.mxu0 0.0
  %3787 = vmatprep.subr.mxu0 0.0
  %v3788 = vand.u32 %v3509, 4294901760
  %3789 = vmatpush1.msra.mxu0 %v3788
  %3790 = vmatprep.subr.mxu0 0.0
  %v3791 = vand.u32 %v3508, 4294901760
  %3792 = vmatpush1.msra.mxu0 %v3791
  %3793 = vmatprep.subr.mxu0 0.0
  %v3794 = vand.u32 %v3507, 4294901760
  %3795 = vmatpush1.msra.mxu0 %v3794
  %3796 = vmatprep.subr.mxu0 0.0
  %v3797 = vand.u32 %v3506, 4294901760
  %3798 = vmatpush1.msra.mxu0 %v3797
  %3799 = vmatprep.subr.mxu0 0.0
  %3800 = vmatpush2.msra.mxu0 0.0
  %3801 = vmatprep.subr.mxu0 0.0
  %3802 = vmatpush2.msra.mxu0 0.0
  %3803 = vmatprep.subr.mxu0 0.0
  %3804 = vmatpush2.msra.mxu0 0.0
  %3805 = vmatprep.subr.mxu0 0.0
  %3806 = vmatpush2.msra.mxu0 0.0
  %3807 = vmatprep.subr.mxu0 0.0
  %3808 = vmatpush2.msra.mxu0 0.0
  %3809 = vmatprep.subr.mxu0 0.0
  %3810 = vmatpush2.msra.mxu0 0.0
  %3811 = vmatprep.subr.mxu0 0.0
  %3812 = vmatpush2.msra.mxu0 0.0
  %3813 = vmatprep.subr.mxu0 0.0
  %3814 = vmatpush2.msra.mxu0 0.0
  %3815 = vmatprep.subr.mxu0 0.0
  %3816 = vmatpush2.msra.mxu0 0.0
  %3817 = vmatprep.subr.mxu0 0.0
  %3818 = vmatpush2.msra.mxu0 0.0
  %3819 = vmatprep.subr.mxu0 0.0
  %3820 = vmatpush2.msra.mxu0 0.0
  %3821 = vmatprep.subr.mxu0 0.0
  %3822 = vmatpush2.msra.mxu0 0.0
  %3823 = vmatprep.subr.mxu0 0.0
  %3824 = vmatpush2.msra.mxu0 0.0
  %3825 = vmatprep.subr.mxu0 0.0
  %3826 = vmatpush2.msra.mxu0 0.0
  %3827 = vmatprep.subr.mxu0 0.0
  %3828 = vmatpush2.msra.mxu0 0.0
  %3829 = vmatprep.subr.mxu0 0.0
  %3830 = vmatpush2.msra.mxu0 0.0
  %3831 = vmatprep.mubr.f32.mxu0 0.0
  %v3832 = vand.u32 %v3511, 4294901760
  %v3833 = vsub.f32 %v3511, %v3832
  %v3834 = vand.u32 %v3833, 4294901760
  %3835 = vmatmul.mubr.f32.gmra.mxu0 %v3834
  %v3836 = vpop.f32.mrf.mxu0
  %v3837 = vadd.f32 %v3760, %v3836
  %v3838 = vpop.f32.mrf.mxu0
  %3839 = vdwg.mxu0
  %3840 = vmatprep.subr.mxu0 0.0
  %3841 = vmatpush1.msra.mxu0 0.0
  %3842 = vmatprep.subr.mxu0 0.0
  %3843 = vmatpush1.msra.mxu0 0.0
  %3844 = vmatprep.subr.mxu0 0.0
  %3845 = vmatpush1.msra.mxu0 0.0
  %3846 = vmatprep.subr.mxu0 0.0
  %3847 = vmatpush1.msra.mxu0 0.0
  %3848 = vmatprep.subr.mxu0 0.0
  %3849 = vmatpush1.msra.mxu0 0.0
  %3850 = vmatprep.subr.mxu0 0.0
  %3851 = vmatpush1.msra.mxu0 0.0
  %3852 = vmatprep.subr.mxu0 0.0
  %3853 = vmatpush1.msra.mxu0 0.0
  %3854 = vmatprep.subr.mxu0 0.0
  %3855 = vmatpush1.msra.mxu0 0.0
  %3856 = vmatprep.subr.mxu0 0.0
  %3857 = vmatpush1.msra.mxu0 0.0
  %3858 = vmatprep.subr.mxu0 0.0
  %3859 = vmatpush1.msra.mxu0 0.0
  %3860 = vmatprep.subr.mxu0 0.0
  %3861 = vmatpush1.msra.mxu0 0.0
  %3862 = vmatprep.subr.mxu0 0.0
  %3863 = vmatpush1.msra.mxu0 0.0
  %3864 = vmatprep.subr.mxu0 0.0
  %v3865 = vand.u32 %v3509, 4294901760
  %v3866 = vsub.f32 %v3509, %v3865
  %v3867 = vand.u32 %v3866, 4294901760
  %3868 = vmatpush1.msra.mxu0 %v3867
  %3869 = vmatprep.subr.mxu0 0.0
  %v3870 = vand.u32 %v3508, 4294901760
  %v3871 = vsub.f32 %v3508, %v3870
  %v3872 = vand.u32 %v3871, 4294901760
  %3873 = vmatpush1.msra.mxu0 %v3872
  %3874 = vmatprep.subr.mxu0 0.0
  %v3875 = vand.u32 %v3507, 4294901760
  %v3876 = vsub.f32 %v3507, %v3875
  %v3877 = vand.u32 %v3876, 4294901760
  %3878 = vmatpush1.msra.mxu0 %v3877
  %3879 = vmatprep.subr.mxu0 0.0
  %v3880 = vand.u32 %v3506, 4294901760
  %v3881 = vsub.f32 %v3506, %v3880
  %v3882 = vand.u32 %v3881, 4294901760
  %3883 = vmatpush1.msra.mxu0 %v3882
  %3884 = vmatprep.subr.mxu0 0.0
  %3885 = vmatpush2.msra.mxu0 0.0
  %3886 = vmatprep.subr.mxu0 0.0
  %3887 = vmatpush2.msra.mxu0 0.0
  %3888 = vmatprep.subr.mxu0 0.0
  %3889 = vmatpush2.msra.mxu0 0.0
  %3890 = vmatprep.subr.mxu0 0.0
  %3891 = vmatpush2.msra.mxu0 0.0
  %3892 = vmatprep.subr.mxu0 0.0
  %3893 = vmatpush2.msra.mxu0 0.0
  %3894 = vmatprep.subr.mxu0 0.0
  %3895 = vmatpush2.msra.mxu0 0.0
  %3896 = vmatprep.subr.mxu0 0.0
  %3897 = vmatpush2.msra.mxu0 0.0
  %3898 = vmatprep.subr.mxu0 0.0
  %3899 = vmatpush2.msra.mxu0 0.0
  %3900 = vmatprep.subr.mxu0 0.0
  %3901 = vmatpush2.msra.mxu0 0.0
  %3902 = vmatprep.subr.mxu0 0.0
  %3903 = vmatpush2.msra.mxu0 0.0
  %3904 = vmatprep.subr.mxu0 0.0
  %3905 = vmatpush2.msra.mxu0 0.0
  %3906 = vmatprep.subr.mxu0 0.0
  %3907 = vmatpush2.msra.mxu0 0.0
  %3908 = vmatprep.subr.mxu0 0.0
  %3909 = vmatpush2.msra.mxu0 0.0
  %3910 = vmatprep.subr.mxu0 0.0
  %3911 = vmatpush2.msra.mxu0 0.0
  %3912 = vmatprep.subr.mxu0 0.0
  %3913 = vmatpush2.msra.mxu0 0.0
  %3914 = vmatprep.subr.mxu0 0.0
  %3915 = vmatpush2.msra.mxu0 0.0
  %3916 = vmatprep.mubr.f32.mxu0 0.0
  %v3917 = vand.u32 %v3511, 4294901760
  %3918 = vmatmul.mubr.f32.gmra.mxu0 %v3917
  %v3919 = vpop.f32.mrf.mxu0
  %v3920 = vadd.f32 %v3837, %v3919
  %v3921 = vpop.f32.mrf.mxu0
  %3922 = vdwg.mxu0
  %3923 = vmatprep.subr.mxu0 0.0
  %3924 = vmatpush1.msra.mxu0 0.0
  %3925 = vmatprep.subr.mxu0 0.0
  %3926 = vmatpush1.msra.mxu0 0.0
  %3927 = vmatprep.subr.mxu0 0.0
  %3928 = vmatpush1.msra.mxu0 0.0
  %3929 = vmatprep.subr.mxu0 0.0
  %3930 = vmatpush1.msra.mxu0 0.0
  %3931 = vmatprep.subr.mxu0 0.0
  %3932 = vmatpush1.msra.mxu0 0.0
  %3933 = vmatprep.subr.mxu0 0.0
  %3934 = vmatpush1.msra.mxu0 0.0
  %3935 = vmatprep.subr.mxu0 0.0
  %3936 = vmatpush1.msra.mxu0 0.0
  %3937 = vmatprep.subr.mxu0 0.0
  %3938 = vmatpush1.msra.mxu0 0.0
  %3939 = vmatprep.subr.mxu0 0.0
  %3940 = vmatpush1.msra.mxu0 0.0
  %3941 = vmatprep.subr.mxu0 0.0
  %3942 = vmatpush1.msra.mxu0 0.0
  %3943 = vmatprep.subr.mxu0 0.0
  %3944 = vmatpush1.msra.mxu0 0.0
  %3945 = vmatprep.subr.mxu0 0.0
  %3946 = vmatpush1.msra.mxu0 0.0
  %3947 = vmatprep.subr.mxu0 0.0
  %v3948 = vand.u32 %v3509, 4294901760
  %3949 = vmatpush1.msra.mxu0 %v3948
  %3950 = vmatprep.subr.mxu0 0.0
  %v3951 = vand.u32 %v3508, 4294901760
  %3952 = vmatpush1.msra.mxu0 %v3951
  %3953 = vmatprep.subr.mxu0 0.0
  %v3954 = vand.u32 %v3507, 4294901760
  %3955 = vmatpush1.msra.mxu0 %v3954
  %3956 = vmatprep.subr.mxu0 0.0
  %v3957 = vand.u32 %v3506, 4294901760
  %3958 = vmatpush1.msra.mxu0 %v3957
  %3959 = vmatprep.subr.mxu0 0.0
  %3960 = vmatpush2.msra.mxu0 0.0
  %3961 = vmatprep.subr.mxu0 0.0
  %3962 = vmatpush2.msra.mxu0 0.0
  %3963 = vmatprep.subr.mxu0 0.0
  %3964 = vmatpush2.msra.mxu0 0.0
  %3965 = vmatprep.subr.mxu0 0.0
  %3966 = vmatpush2.msra.mxu0 0.0
  %3967 = vmatprep.subr.mxu0 0.0
  %3968 = vmatpush2.msra.mxu0 0.0
  %3969 = vmatprep.subr.mxu0 0.0
  %3970 = vmatpush2.msra.mxu0 0.0
  %3971 = vmatprep.subr.mxu0 0.0
  %3972 = vmatpush2.msra.mxu0 0.0
  %3973 = vmatprep.subr.mxu0 0.0
  %3974 = vmatpush2.msra.mxu0 0.0
  %3975 = vmatprep.subr.mxu0 0.0
  %3976 = vmatpush2.msra.mxu0 0.0
  %3977 = vmatprep.subr.mxu0 0.0
  %3978 = vmatpush2.msra.mxu0 0.0
  %3979 = vmatprep.subr.mxu0 0.0
  %3980 = vmatpush2.msra.mxu0 0.0
  %3981 = vmatprep.subr.mxu0 0.0
  %3982 = vmatpush2.msra.mxu0 0.0
  %3983 = vmatprep.subr.mxu0 0.0
  %3984 = vmatpush2.msra.mxu0 0.0
  %3985 = vmatprep.subr.mxu0 0.0
  %3986 = vmatpush2.msra.mxu0 0.0
  %3987 = vmatprep.subr.mxu0 0.0
  %3988 = vmatpush2.msra.mxu0 0.0
  %3989 = vmatprep.subr.mxu0 0.0
  %3990 = vmatpush2.msra.mxu0 0.0
  %3991 = vmatprep.mubr.f32.mxu0 0.0
  %v3992 = vand.u32 %v3511, 4294901760
  %3993 = vmatmul.mubr.f32.gmra.mxu0 %v3992
  %v3994 = vpop.f32.mrf.mxu0
  %v3995 = vadd.f32 %v3920, %v3994
  %v3996 = vpop.f32.mrf.mxu0
  %3997 = vdwg.mxu0
  %v3998 = vsel %vm3504, %v3995, 0.0
  %v3999 = vrot.slane %v3998, 4
  %v4000 = vadd.f32 %v3998, %v3999
  %v4001 = vrot.slane %v4000, 2
  %v4002 = vadd.f32 %v4000, %v4001
  %v4003 = vrot.slane %v4002, 1
  %v4004 = vadd.f32 %v4002, %v4003
  %v4005 = vrcp.pop 2.0
  %v4006 = vmul.f32 %v4004, %v4005
  %v4007 = vsub.f32 %v3995, %v4006
  %v4008 = vmul.f32 %v4007, %v4007
  %v4009 = vsel %vm3504, %v4008, 0.0
  %v4010 = vrot.slane %v4009, 4
  %v4011 = vadd.f32 %v4009, %v4010
  %v4012 = vrot.slane %v4011, 2
  %v4013 = vadd.f32 %v4011, %v4012
  %v4014 = vrot.slane %v4013, 1
  %v4015 = vadd.f32 %v4013, %v4014
  %v4016 = vmul.f32 %v4015, %v4005
  %v4017 = vadd.f32 %v4016, 1e-05
  %v4018 = vrsqrt.pop %v4017
  %v4019 = vmul.f32 %v4007, %v4018
  %vm4020 = vcmp.ge.f32.partialorder %v4019, 0.0
  %v4021 = vmul.f32 %v4019, 0.2
  %v4022 = vsel %vm4020, %v4019, %v4021
  %v4023 = vld [vmem:[%s15] sm:$0xff]
  %v4024 = vld [vmem:[%s15 + $0x8] sm:$0xff]
  %v4025 = vld [vmem:[%s15 + $0x10] sm:$0xff]
  %v4026 = vld [vmem:[%s15 + $0x18] sm:$0xff]
  %v4028 = vsel %vm88, %v4022, 0
  %4030 = vmatprep.subr.mxu0 0.0
  %4031 = vmatpush1.msra.mxu0 0.0
  %4032 = vmatprep.subr.mxu0 0.0
  %4033 = vmatpush1.msra.mxu0 0.0
  %4034 = vmatprep.subr.mxu0 0.0
  %4035 = vmatpush1.msra.mxu0 0.0
  %4036 = vmatprep.subr.mxu0 0.0
  %4037 = vmatpush1.msra.mxu0 0.0
  %4038 = vmatprep.subr.mxu0 0.0
  %4039 = vmatpush1.msra.mxu0 0.0
  %4040 = vmatprep.subr.mxu0 0.0
  %4041 = vmatpush1.msra.mxu0 0.0
  %4042 = vmatprep.subr.mxu0 0.0
  %4043 = vmatpush1.msra.mxu0 0.0
  %4044 = vmatprep.subr.mxu0 0.0
  %4045 = vmatpush1.msra.mxu0 0.0
  %4046 = vmatprep.subr.mxu0 0.0
  %4047 = vmatpush1.msra.mxu0 0.0
  %4048 = vmatprep.subr.mxu0 0.0
  %4049 = vmatpush1.msra.mxu0 0.0
  %4050 = vmatprep.subr.mxu0 0.0
  %4051 = vmatpush1.msra.mxu0 0.0
  %4052 = vmatprep.subr.mxu0 0.0
  %4053 = vmatpush1.msra.mxu0 0.0
  %4054 = vmatprep.subr.mxu0 0.0
  %v4055 = vand.u32 %v4026, 4294901760
  %4056 = vmatpush1.msra.mxu0 %v4055
  %4057 = vmatprep.subr.mxu0 0.0
  %v4058 = vand.u32 %v4025, 4294901760
  %4059 = vmatpush1.msra.mxu0 %v4058
  %4060 = vmatprep.subr.mxu0 0.0
  %v4061 = vand.u32 %v4024, 4294901760
  %4062 = vmatpush1.msra.mxu0 %v4061
  %4063 = vmatprep.subr.mxu0 0.0
  %v4064 = vand.u32 %v4023, 4294901760
  %4065 = vmatpush1.msra.mxu0 %v4064
  %4066 = vmatprep.subr.mxu0 0.0
  %4067 = vmatpush2.msra.mxu0 0.0
  %4068 = vmatprep.subr.mxu0 0.0
  %4069 = vmatpush2.msra.mxu0 0.0
  %4070 = vmatprep.subr.mxu0 0.0
  %4071 = vmatpush2.msra.mxu0 0.0
  %4072 = vmatprep.subr.mxu0 0.0
  %4073 = vmatpush2.msra.mxu0 0.0
  %4074 = vmatprep.subr.mxu0 0.0
  %4075 = vmatpush2.msra.mxu0 0.0
  %4076 = vmatprep.subr.mxu0 0.0
  %4077 = vmatpush2.msra.mxu0 0.0
  %4078 = vmatprep.subr.mxu0 0.0
  %4079 = vmatpush2.msra.mxu0 0.0
  %4080 = vmatprep.subr.mxu0 0.0
  %4081 = vmatpush2.msra.mxu0 0.0
  %4082 = vmatprep.subr.mxu0 0.0
  %4083 = vmatpush2.msra.mxu0 0.0
  %4084 = vmatprep.subr.mxu0 0.0
  %4085 = vmatpush2.msra.mxu0 0.0
  %4086 = vmatprep.subr.mxu0 0.0
  %4087 = vmatpush2.msra.mxu0 0.0
  %4088 = vmatprep.subr.mxu0 0.0
  %4089 = vmatpush2.msra.mxu0 0.0
  %4090 = vmatprep.subr.mxu0 0.0
  %4091 = vmatpush2.msra.mxu0 0.0
  %4092 = vmatprep.subr.mxu0 0.0
  %4093 = vmatpush2.msra.mxu0 0.0
  %4094 = vmatprep.subr.mxu0 0.0
  %4095 = vmatpush2.msra.mxu0 0.0
  %4096 = vmatprep.subr.mxu0 0.0
  %4097 = vmatpush2.msra.mxu0 0.0
  %4098 = vmatprep.mubr.f32.mxu0 0.0
  %v4099 = vand.u32 %v4028, 4294901760
  %v4100 = vsub.f32 %v4028, %v4099
  %v4101 = vand.u32 %v4100, 4294901760
  %v4102 = vsub.f32 %v4100, %v4101
  %v4103 = vand.u32 %v4102, 4294901760
  %4104 = vmatmul.mubr.f32.gmra.mxu0 %v4103
  %v4105 = vpop.f32.mrf.mxu0
  %v4106 = vadd.f32 0.0, %v4105
  %v4107 = vpop.f32.mrf.mxu0
  %4108 = vdwg.mxu0
  %4109 = vmatprep.subr.mxu0 0.0
  %4110 = vmatpush1.msra.mxu0 0.0
  %4111 = vmatprep.subr.mxu0 0.0
  %4112 = vmatpush1.msra.mxu0 0.0
  %4113 = vmatprep.subr.mxu0 0.0
  %4114 = vmatpush1.msra.mxu0 0.0
  %4115 = vmatprep.subr.mxu0 0.0
  %4116 = vmatpush1.msra.mxu0 0.0
  %4117 = vmatprep.subr.mxu0 0.0
  %4118 = vmatpush1.msra.mxu0 0.0
  %4119 = vmatprep.subr.mxu0 0.0
  %4120 = vmatpush1.msra.mxu0 0.0
  %4121 = vmatprep.subr.mxu0 0.0
  %4122 = vmatpush1.msra.mxu0 0.0
  %4123 = vmatprep.subr.mxu0 0.0
  %4124 = vmatpush1.msra.mxu0 0.0
  %4125 = vmatprep.subr.mxu0 0.0
  %4126 = vmatpush1.msra.mxu0 0.0
  %4127 = vmatprep.subr.mxu0 0.0
  %4128 = vmatpush1.msra.mxu0 0.0
  %4129 = vmatprep.subr.mxu0 0.0
  %4130 = vmatpush1.msra.mxu0 0.0
  %4131 = vmatprep.subr.mxu0 0.0
  %4132 = vmatpush1.msra.mxu0 0.0
  %4133 = vmatprep.subr.mxu0 0.0
  %v4134 = vand.u32 %v4026, 4294901760
  %v4135 = vsub.f32 %v4026, %v4134
  %v4136 = vand.u32 %v4135, 4294901760
  %v4137 = vsub.f32 %v4135, %v4136
  %v4138 = vand.u32 %v4137, 4294901760
  %4139 = vmatpush1.msra.mxu0 %v4138
  %4140 = vmatprep.subr.mxu0 0.0
  %v4141 = vand.u32 %v4025, 4294901760
  %v4142 = vsub.f32 %v4025, %v4141
  %v4143 = vand.u32 %v4142, 4294901760
  %v4144 = vsub.f32 %v4142, %v4143
  %v4145 = vand.u32 %v4144, 4294901760
  %4146 = vmatpush1.msra.mxu0 %v4145
  %4147 = vmatprep.subr.mxu0 0.0
  %v4148 = vand.u32 %v4024, 4294901760
  %v4149 = vsub.f32 %v4024, %v4148
  %v4150 = vand.u32 %v4149, 4294901760
  %v4151 = vsub.f32 %v4149, %v4150
  %v4152 = vand.u32 %v4151, 4294901760
  %4153 = vmatpush1.msra.mxu0 %v4152
  %4154 = vmatprep.subr.mxu0 0.0
  %v4155 = vand.u32 %v4023, 4294901760
  %v4156 = vsub.f32 %v4023, %v4155
  %v4157 = vand.u32 %v4156, 4294901760
  %v4158 = vsub.f32 %v4156, %v4157
  %v4159 = vand.u32 %v4158, 4294901760
  %4160 = vmatpush1.msra.mxu0 %v4159
  %4161 = vmatprep.subr.mxu0 0.0
  %4162 = vmatpush2.msra.mxu0 0.0
  %4163 = vmatprep.subr.mxu0 0.0
  %4164 = vmatpush2.msra.mxu0 0.0
  %4165 = vmatprep.subr.mxu0 0.0
  %4166 = vmatpush2.msra.mxu0 0.0
  %4167 = vmatprep.subr.mxu0 0.0
  %4168 = vmatpush2.msra.mxu0 0.0
  %4169 = vmatprep.subr.mxu0 0.0
  %4170 = vmatpush2.msra.mxu0 0.0
  %4171 = vmatprep.subr.mxu0 0.0
  %4172 = vmatpush2.msra.mxu0 0.0
  %4173 = vmatprep.subr.mxu0 0.0
  %4174 = vmatpush2.msra.mxu0 0.0
  %4175 = vmatprep.subr.mxu0 0.0
  %4176 = vmatpush2.msra.mxu0 0.0
  %4177 = vmatprep.subr.mxu0 0.0
  %4178 = vmatpush2.msra.mxu0 0.0
  %4179 = vmatprep.subr.mxu0 0.0
  %4180 = vmatpush2.msra.mxu0 0.0
  %4181 = vmatprep.subr.mxu0 0.0
  %4182 = vmatpush2.msra.mxu0 0.0
  %4183 = vmatprep.subr.mxu0 0.0
  %4184 = vmatpush2.msra.mxu0 0.0
  %4185 = vmatprep.subr.mxu0 0.0
  %4186 = vmatpush2.msra.mxu0 0.0
  %4187 = vmatprep.subr.mxu0 0.0
  %4188 = vmatpush2.msra.mxu0 0.0
  %4189 = vmatprep.subr.mxu0 0.0
  %4190 = vmatpush2.msra.mxu0 0.0
  %4191 = vmatprep.subr.mxu0 0.0
  %4192 = vmatpush2.msra.mxu0 0.0
  %4193 = vmatprep.mubr.f32.mxu0 0.0
  %v4194 = vand.u32 %v4028, 4294901760
  %4195 = vmatmul.mubr.f32.gmra.mxu0 %v4194
  %v4196 = vpop.f32.mrf.mxu0
  %v4197 = vadd.f32 %v4106, %v4196
  %v4198 = vpop.f32.mrf.mxu0
  %4199 = vdwg.mxu0
  %4200 = vmatprep.subr.mxu0 0.0
  %4201 = vmatpush1.msra.mxu0 0.0
  %4202 = vmatprep.subr.mxu0 0.0
  %4203 = vmatpush1.msra.mxu0 0.0
  %4204 = vmatprep.subr.mxu0 0.0
  %4205 = vmatpush1.msra.mxu0 0.0
  %4206 = vmatprep.subr.mxu0 0.0
  %4207 = vmatpush1.msra.mxu0 0.0
  %4208 = vmatprep.subr.mxu0 0.0
  %4209 = vmatpush1.msra.mxu0 0.0
  %4210 = vmatprep.subr.mxu0 0.0
  %4211 = vmatpush1.msra.mxu0 0.0
  %4212 = vmatprep.subr.mxu0 0.0
  %4213 = vmatpush1.msra.mxu0 0.0
  %4214 = vmatprep.subr.mxu0 0.0
  %4215 = vmatpush1.msra.mxu0 0.0
  %4216 = vmatprep.subr.mxu0 0.0
  %4217 = vmatpush1.msra.mxu0 0.0
  %4218 = vmatprep.subr.mxu0 0.0
  %4219 = vmatpush1.msra.mxu0 0.0
  %4220 = vmatprep.subr.mxu0 0.0
  %4221 = vmatpush1.msra.mxu0 0.0
  %4222 = vmatprep.subr.mxu0 0.0
  %4223 = vmatpush1.msra.mxu0 0.0
  %4224 = vmatprep.subr.mxu0 0.0
  %v4225 = vand.u32 %v4026, 4294901760
  %v4226 = vsub.f32 %v4026, %v4225
  %4227 = vmatpush1.msra.mxu0 %v4226
  %4228 = vmatprep.subr.mxu0 0.0
  %v4229 = vand.u32 %v4025, 4294901760
  %v4230 = vsub.f32 %v4025, %v4229
  %4231 = vmatpush1.msra.mxu0 %v4230
  %4232 = vmatprep.subr.mxu0 0.0
  %v4233 = vand.u32 %v4024, 4294901760
  %v4234 = vsub.f32 %v4024, %v4233
  %4235 = vmatpush1.msra.mxu0 %v4234
  %4236 = vmatprep.subr.mxu0 0.0
  %v4237 = vand.u32 %v4023, 4294901760
  %v4238 = vsub.f32 %v4023, %v4237
  %4239 = vmatpush1.msra.mxu0 %v4238
  %4240 = vmatprep.subr.mxu0 0.0
  %4241 = vmatpush2.msra.mxu0 0.0
  %4242 = vmatprep.subr.mxu0 0.0
  %4243 = vmatpush2.msra.mxu0 0.0
  %4244 = vmatprep.subr.mxu0 0.0
  %4245 = vmatpush2.msra.mxu0 0.0
  %4246 = vmatprep.subr.mxu0 0.0
  %4247 = vmatpush2.msra.mxu0 0.0
  %4248 = vmatprep.subr.mxu0 0.0
  %4249 = vmatpush2.msra.mxu0 0.0
  %4250 = vmatprep.subr.mxu0 0.0
  %4251 = vmatpush2.msra.mxu0 0.0
  %4252 = vmatprep.subr.mxu0 0.0
  %4253 = vmatpush2.msra.mxu0 0.0
  %4254 = vmatprep.subr.mxu0 0.0
  %4255 = vmatpush2.msra.mxu0 0.0
  %4256 = vmatprep.subr.mxu0 0.0
  %4257 = vmatpush2.msra.mxu0 0.0
  %4258 = vmatprep.subr.mxu0 0.0
  %4259 = vmatpush2.msra.mxu0 0.0
  %4260 = vmatprep.subr.mxu0 0.0
  %4261 = vmatpush2.msra.mxu0 0.0
  %4262 = vmatprep.subr.mxu0 0.0
  %4263 = vmatpush2.msra.mxu0 0.0
  %4264 = vmatprep.subr.mxu0 0.0
  %4265 = vmatpush2.msra.mxu0 0.0
  %4266 = vmatprep.subr.mxu0 0.0
  %4267 = vmatpush2.msra.mxu0 0.0
  %4268 = vmatprep.subr.mxu0 0.0
  %4269 = vmatpush2.msra.mxu0 0.0
  %4270 = vmatprep.subr.mxu0 0.0
  %4271 = vmatpush2.msra.mxu0 0.0
  %4272 = vmatprep.mubr.f32.mxu0 0.0
  %v4273 = vand.u32 %v4028, 4294901760
  %v4274 = vsub.f32 %v4028, %v4273
  %4275 = vmatmul.mubr.f32.gmra.mxu0 %v4274
  %v4276 = vpop.f32.mrf.mxu0
  %v4277 = vadd.f32 %v4197, %v4276
  %v4278 = vpop.f32.mrf.mxu0
  %4279 = vdwg.mxu0
  %4280 = vmatprep.subr.mxu0 0.0
  %4281 = vmatpush1.msra.mxu0 0.0
  %4282 = vmatprep.subr.mxu0 0.0
  %4283 = vmatpush1.msra.mxu0 0.0
  %4284 = vmatprep.subr.mxu0 0.0
  %4285 = vmatpush1.msra.mxu0 0.0
  %4286 = vmatprep.subr.mxu0 0.0
  %4287 = vmatpush1.msra.mxu0 0.0
  %4288 = vmatprep.subr.mxu0 0.0
  %4289 = vmatpush1.msra.mxu0 0.0
  %4290 = vmatprep.subr.mxu0 0.0
  %4291 = vmatpush1.msra.mxu0 0.0
  %4292 = vmatprep.subr.mxu0 0.0
  %4293 = vmatpush1.msra.mxu0 0.0
  %4294 = vmatprep.subr.mxu0 0.0
  %4295 = vmatpush1.msra.mxu0 0.0
  %4296 = vmatprep.subr.mxu0 0.0
  %4297 = vmatpush1.msra.mxu0 0.0
  %4298 = vmatprep.subr.mxu0 0.0
  %4299 = vmatpush1.msra.mxu0 0.0
  %4300 = vmatprep.subr.mxu0 0.0
  %4301 = vmatpush1.msra.mxu0 0.0
  %4302 = vmatprep.subr.mxu0 0.0
  %4303 = vmatpush1.msra.mxu0 0.0
  %4304 = vmatprep.subr.mxu0 0.0
  %v4305 = vand.u32 %v4026, 4294901760
  %4306 = vmatpush1.msra.mxu0 %v4305
  %4307 = vmatprep.subr.mxu0 0.0
  %v4308 = vand.u32 %v4025, 4294901760
  %4309 = vmatpush1.msra.mxu0 %v4308
  %4310 = vmatprep.subr.mxu0 0.0
  %v4311 = vand.u32 %v4024, 4294901760
  %4312 = vmatpush1.msra.mxu0 %v4311
  %4313 = vmatprep.subr.mxu0 0.0
  %v4314 = vand.u32 %v4023, 4294901760
  %4315 = vmatpush1.msra.mxu0 %v4314
  %4316 = vmatprep.subr.mxu0 0.0
  %4317 = vmatpush2.msra.mxu0 0.0
  %4318 = vmatprep.subr.mxu0 0.0
  %4319 = vmatpush2.msra.mxu0 0.0
  %4320 = vmatprep.subr.mxu0 0.0
  %4321 = vmatpush2.msra.mxu0 0.0
  %4322 = vmatprep.subr.mxu0 0.0
  %4323 = vmatpush2.msra.mxu0 0.0
  %4324 = vmatprep.subr.mxu0 0.0
  %4325 = vmatpush2.msra.mxu0 0.0
  %4326 = vmatprep.subr.mxu0 0.0
  %4327 = vmatpush2.msra.mxu0 0.0
  %4328 = vmatprep.subr.mxu0 0.0
  %4329 = vmatpush2.msra.mxu0 0.0
  %4330 = vmatprep.subr.mxu0 0.0
  %4331 = vmatpush2.msra.mxu0 0.0
  %4332 = vmatprep.subr.mxu0 0.0
  %4333 = vmatpush2.msra.mxu0 0.0
  %4334 = vmatprep.subr.mxu0 0.0
  %4335 = vmatpush2.msra.mxu0 0.0
  %4336 = vmatprep.subr.mxu0 0.0
  %4337 = vmatpush2.msra.mxu0 0.0
  %4338 = vmatprep.subr.mxu0 0.0
  %4339 = vmatpush2.msra.mxu0 0.0
  %4340 = vmatprep.subr.mxu0 0.0
  %4341 = vmatpush2.msra.mxu0 0.0
  %4342 = vmatprep.subr.mxu0 0.0
  %4343 = vmatpush2.msra.mxu0 0.0
  %4344 = vmatprep.subr.mxu0 0.0
  %4345 = vmatpush2.msra.mxu0 0.0
  %4346 = vmatprep.subr.mxu0 0.0
  %4347 = vmatpush2.msra.mxu0 0.0
  %4348 = vmatprep.mubr.f32.mxu0 0.0
  %v4349 = vand.u32 %v4028, 4294901760
  %v4350 = vsub.f32 %v4028, %v4349
  %v4351 = vand.u32 %v4350, 4294901760
  %4352 = vmatmul.mubr.f32.gmra.mxu0 %v4351
  %v4353 = vpop.f32.mrf.mxu0
  %v4354 = vadd.f32 %v4277, %v4353
  %v4355 = vpop.f32.mrf.mxu0
  %4356 = vdwg.mxu0
  %4357 = vmatprep.subr.mxu0 0.0
  %4358 = vmatpush1.msra.mxu0 0.0
  %4359 = vmatprep.subr.mxu0 0.0
  %4360 = vmatpush1.msra.mxu0 0.0
  %4361 = vmatprep.subr.mxu0 0.0
  %4362 = vmatpush1.msra.mxu0 0.0
  %4363 = vmatprep.subr.mxu0 0.0
  %4364 = vmatpush1.msra.mxu0 0.0
  %4365 = vmatprep.subr.mxu0 0.0
  %4366 = vmatpush1.msra.mxu0 0.0
  %4367 = vmatprep.subr.mxu0 0.0
  %4368 = vmatpush1.msra.mxu0 0.0
  %4369 = vmatprep.subr.mxu0 0.0
  %4370 = vmatpush1.msra.mxu0 0.0
  %4371 = vmatprep.subr.mxu0 0.0
  %4372 = vmatpush1.msra.mxu0 0.0
  %4373 = vmatprep.subr.mxu0 0.0
  %4374 = vmatpush1.msra.mxu0 0.0
  %4375 = vmatprep.subr.mxu0 0.0
  %4376 = vmatpush1.msra.mxu0 0.0
  %4377 = vmatprep.subr.mxu0 0.0
  %4378 = vmatpush1.msra.mxu0 0.0
  %4379 = vmatprep.subr.mxu0 0.0
  %4380 = vmatpush1.msra.mxu0 0.0
  %4381 = vmatprep.subr.mxu0 0.0
  %v4382 = vand.u32 %v4026, 4294901760
  %v4383 = vsub.f32 %v4026, %v4382
  %v4384 = vand.u32 %v4383, 4294901760
  %4385 = vmatpush1.msra.mxu0 %v4384
  %4386 = vmatprep.subr.mxu0 0.0
  %v4387 = vand.u32 %v4025, 4294901760
  %v4388 = vsub.f32 %v4025, %v4387
  %v4389 = vand.u32 %v4388, 4294901760
  %4390 = vmatpush1.msra.mxu0 %v4389
  %4391 = vmatprep.subr.mxu0 0.0
  %v4392 = vand.u32 %v4024, 4294901760
  %v4393 = vsub.f32 %v4024, %v4392
  %v4394 = vand.u32 %v4393, 4294901760
  %4395 = vmatpush1.msra.mxu0 %v4394
  %4396 = vmatprep.subr.mxu0 0.0
  %v4397 = vand.u32 %v4023, 4294901760
  %v4398 = vsub.f32 %v4023, %v4397
  %v4399 = vand.u32 %v4398, 4294901760
  %4400 = vmatpush1.msra.mxu0 %v4399
  %4401 = vmatprep.subr.mxu0 0.0
  %4402 = vmatpush2.msra.mxu0 0.0
  %4403 = vmatprep.subr.mxu0 0.0
  %4404 = vmatpush2.msra.mxu0 0.0
  %4405 = vmatprep.subr.mxu0 0.0
  %4406 = vmatpush2.msra.mxu0 0.0
  %4407 = vmatprep.subr.mxu0 0.0
  %4408 = vmatpush2.msra.mxu0 0.0
  %4409 = vmatprep.subr.mxu0 0.0
  %4410 = vmatpush2.msra.mxu0 0.0
  %4411 = vmatprep.subr.mxu0 0.0
  %4412 = vmatpush2.msra.mxu0 0.0
  %4413 = vmatprep.subr.mxu0 0.0
  %4414 = vmatpush2.msra.mxu0 0.0
  %4415 = vmatprep.subr.mxu0 0.0
  %4416 = vmatpush2.msra.mxu0 0.0
  %4417 = vmatprep.subr.mxu0 0.0
  %4418 = vmatpush2.msra.mxu0 0.0
  %4419 = vmatprep.subr.mxu0 0.0
  %4420 = vmatpush2.msra.mxu0 0.0
  %4421 = vmatprep.subr.mxu0 0.0
  %4422 = vmatpush2.msra.mxu0 0.0
  %4423 = vmatprep.subr.mxu0 0.0
  %4424 = vmatpush2.msra.mxu0 0.0
  %4425 = vmatprep.subr.mxu0 0.0
  %4426 = vmatpush2.msra.mxu0 0.0
  %4427 = vmatprep.subr.mxu0 0.0
  %4428 = vmatpush2.msra.mxu0 0.0
  %4429 = vmatprep.subr.mxu0 0.0
  %4430 = vmatpush2.msra.mxu0 0.0
  %4431 = vmatprep.subr.mxu0 0.0
  %4432 = vmatpush2.msra.mxu0 0.0
  %4433 = vmatprep.mubr.f32.mxu0 0.0
  %v4434 = vand.u32 %v4028, 4294901760
  %4435 = vmatmul.mubr.f32.gmra.mxu0 %v4434
  %v4436 = vpop.f32.mrf.mxu0
  %v4437 = vadd.f32 %v4354, %v4436
  %v4438 = vpop.f32.mrf.mxu0
  %4439 = vdwg.mxu0
  %4440 = vmatprep.subr.mxu0 0.0
  %4441 = vmatpush1.msra.mxu0 0.0
  %4442 = vmatprep.subr.mxu0 0.0
  %4443 = vmatpush1.msra.mxu0 0.0
  %4444 = vmatprep.subr.mxu0 0.0
  %4445 = vmatpush1.msra.mxu0 0.0
  %4446 = vmatprep.subr.mxu0 0.0
  %4447 = vmatpush1.msra.mxu0 0.0
  %4448 = vmatprep.subr.mxu0 0.0
  %4449 = vmatpush1.msra.mxu0 0.0
  %4450 = vmatprep.subr.mxu0 0.0
  %4451 = vmatpush1.msra.mxu0 0.0
  %4452 = vmatprep.subr.mxu0 0.0
  %4453 = vmatpush1.msra.mxu0 0.0
  %4454 = vmatprep.subr.mxu0 0.0
  %4455 = vmatpush1.msra.mxu0 0.0
  %4456 = vmatprep.subr.mxu0 0.0
  %4457 = vmatpush1.msra.mxu0 0.0
  %4458 = vmatprep.subr.mxu0 0.0
  %4459 = vmatpush1.msra.mxu0 0.0
  %4460 = vmatprep.subr.mxu0 0.0
  %4461 = vmatpush1.msra.mxu0 0.0
  %4462 = vmatprep.subr.mxu0 0.0
  %4463 = vmatpush1.msra.mxu0 0.0
  %4464 = vmatprep.subr.mxu0 0.0
  %v4465 = vand.u32 %v4026, 4294901760
  %4466 = vmatpush1.msra.mxu0 %v4465
  %4467 = vmatprep.subr.mxu0 0.0
  %v4468 = vand.u32 %v4025, 4294901760
  %4469 = vmatpush1.msra.mxu0 %v4468
  %4470 = vmatprep.subr.mxu0 0.0
  %v4471 = vand.u32 %v4024, 4294901760
  %4472 = vmatpush1.msra.mxu0 %v4471
  %4473 = vmatprep.subr.mxu0 0.0
  %v4474 = vand.u32 %v4023, 4294901760
  %4475 = vmatpush1.msra.mxu0 %v4474
  %4476 = vmatprep.subr.mxu0 0.0
  %4477 = vmatpush2.msra.mxu0 0.0
  %4478 = vmatprep.subr.mxu0 0.0
  %4479 = vmatpush2.msra.mxu0 0.0
  %4480 = vmatprep.subr.mxu0 0.0
  %4481 = vmatpush2.msra.mxu0 0.0
  %4482 = vmatprep.subr.mxu0 0.0
  %4483 = vmatpush2.msra.mxu0 0.0
  %4484 = vmatprep.subr.mxu0 0.0
  %4485 = vmatpush2.msra.mxu0 0.0
  %4486 = vmatprep.subr.mxu0 0.0
  %4487 = vmatpush2.msra.mxu0 0.0
  %4488 = vmatprep.subr.mxu0 0.0
  %4489 = vmatpush2.msra.mxu0 0.0
  %4490 = vmatprep.subr.mxu0 0.0
  %4491 = vmatpush2.msra.mxu0 0.0
  %4492 = vmatprep.subr.mxu0 0.0
  %4493 = vmatpush2.msra.mxu0 0.0
  %4494 = vmatprep.subr.mxu0 0.0
  %4495 = vmatpush2.msra.mxu0 0.0
  %4496 = vmatprep.subr.mxu0 0.0
  %4497 = vmatpush2.msra.mxu0 0.0
  %4498 = vmatprep.subr.mxu0 0.0
  %4499 = vmatpush2.msra.mxu0 0.0
  %4500 = vmatprep.subr.mxu0 0.0
  %4501 = vmatpush2.msra.mxu0 0.0
  %4502 = vmatprep.subr.mxu0 0.0
  %4503 = vmatpush2.msra.mxu0 0.0
  %4504 = vmatprep.subr.mxu0 0.0
  %4505 = vmatpush2.msra.mxu0 0.0
  %4506 = vmatprep.subr.mxu0 0.0
  %4507 = vmatpush2.msra.mxu0 0.0
  %4508 = vmatprep.mubr.f32.mxu0 0.0
  %v4509 = vand.u32 %v4028, 4294901760
  %4510 = vmatmul.mubr.f32.gmra.mxu0 %v4509
  %v4511 = vpop.f32.mrf.mxu0
  %v4512 = vadd.f32 %v4437, %v4511
  %v4513 = vpop.f32.mrf.mxu0
  %4514 = vdwg.mxu0
  %vm4515 = vcmask 17408
  %v4516 = vsel %vm4515, %v4512, 0.0
  %v4517 = vrot.slane %v4516, 4
  %v4518 = vadd.f32 %v4516, %v4517
  %v4519 = vrot.slane %v4518, 2
  %v4520 = vadd.f32 %v4518, %v4519
  %v4521 = vrot.slane %v4520, 1
  %v4522 = vadd.f32 %v4520, %v4521
  %v4523 = vmul.f32 %v4522, %v4005
  %v4524 = vsub.f32 %v4512, %v4523
  %v4525 = vmul.f32 %v4524, %v4524
  %v4526 = vsel %vm4515, %v4525, 0.0
  %v4527 = vrot.slane %v4526, 4
  %v4528 = vadd.f32 %v4526, %v4527
  %v4529 = vrot.slane %v4528, 2
  %v4530 = vadd.f32 %v4528, %v4529
  %v4531 = vrot.slane %v4530, 1
  %v4532 = vadd.f32 %v4530, %v4531
  %v4533 = vmul.f32 %v4532, %v4005
  %v4534 = vadd.f32 %v4533, 1e-05
  %v4535 = vrsqrt.pop %v4534
  %v4536 = vmul.f32 %v4524, %v4535
  %vm4537 = vcmp.ge.f32.partialorder %v4536, 0.0
  %v4538 = vmul.f32 %v4536, 0.2
  %v4539 = vsel %vm4537, %v4536, %v4538
  %4540 = vst.msk [vmem:[%s17] sm:$0x3] %vm4515, %v4539
  // Predicated region
  $region66: #{latent_attn_forward.1} parent=0 // pred_check
    _
  $region67: #{latent_attn_forward.1} parent=0 // pred_check_branch
    %4542 = sbr.rel (0) target = $region69
  $region68: #{latent_attn_forward.1} parent=0 // pred_region
    _
  $region69: #{latent_attn_forward.1} parent=0 // pred_fallthru
    _
  // Predicated region
  $region70: #{latent_attn_forward.1} parent=0 // pred_check
    _
  $region71: #{latent_attn_forward.1} parent=0 // pred_check_branch
    %4544 = sbr.rel (0) target = $region73
  $region72: #{latent_attn_forward.1} parent=0 // pred_region
    _
  $region73: #{latent_attn_forward.1} parent=0 // pred_fallthru
    _
  // Predicated region
  $region74: #{latent_attn_forward.1} parent=0 // pred_check
    _
  $region75: #{latent_attn_forward.1} parent=0 // pred_check_branch
    %4546 = sbr.rel (0) target = $region77
  $region76: #{latent_attn_forward.1} parent=0 // pred_region
    _
  $region77: #{latent_attn_forward.1} parent=0 // pred_fallthru
    _
  // Predicated region
  $region78: #{latent_attn_forward.1} parent=0 // pred_check
    _
  $region79: #{latent_attn_forward.1} parent=0 // pred_check_branch
    %4548 = sbr.rel (0) target = $region81
  $region80: #{latent_attn_forward.1} parent=0 // pred_region
    _
  $region81: #{latent_attn_forward.1} parent=0 // pred_fallthru
    _

</llo_original>
